<compile_context>
chip_gen: v7x
topology: tpu7x:2x2x1
jax: 0.10.0
libtpu: 0.0.40
codegen_flags: <defaults>
</compile_context>

<pallas_src>
import functools
import math

import jax
import jax.numpy as jnp
from jax.experimental import pallas as pl
from jax.experimental.pallas import tpu as pltpu

# ----------------------------- config -------------------------------------
VOCAB_SIZE = 256
D_MODEL = 128
NUM_HEADS = 4
HEAD_DIM = D_MODEL // NUM_HEADS
NUM_LAYERS = 2
D_FF = 256
NUM_TRACKS = 4
TRACK_EMB_DIM = D_MODEL          # == d_model  -> no track_projection
MAX_POS = 512
LN_EPS = 1e-5                    # torch.nn.LayerNorm default

# bf16 matmul operands + f32 accumulation (MXU fast path). Elementwise math
# (LayerNorm / softmax / GELU / residuals) stays f32.
MM_DTYPE = jnp.bfloat16


# ----------------------------- in-kernel helpers ---------------------------
def _ln_normalize(x):
    # Affine (gamma/beta) is folded into the downstream matmul at prep time.
    mean = jnp.mean(x, axis=-1, keepdims=True)
    xc = x - mean
    var = jnp.mean(xc * xc, axis=-1, keepdims=True)
    return xc * jax.lax.rsqrt(var + LN_EPS)


def _gelu_exact(x):
    # exact (erf) GELU, matching torch.nn.GELU() default
    return 0.5 * x * (1.0 + jax.lax.erf(x * 0.7071067811865476))


# ----------------------------- fused kernel --------------------------------
def _fused_kernel(*refs, num_layers, num_heads, head_dim, has_mask):
    """Full Museformer forward (all layers + final LN + LM head) for one
    batch element.  Pre-norm residual blocks; LN affine and softmax scale are
    pre-folded into the weights."""
    idx = 0
    x_ref = refs[idx]; idx += 1
    if has_mask:
        bias_ref = refs[idx]; idx += 1
    (wqkv_ref, bqkv_ref, wo_ref, bo_ref,
     wff1_ref, bff1_ref, wff2_ref, bff2_ref,
     fing_ref, finb_ref, lmw_ref) = refs[idx:idx + 11]
    h_ref, logits_ref = refs[idx + 11], refs[idx + 12]

    x = x_ref[0].astype(jnp.float32)                      # [S, D]
    if has_mask:
        bias = bias_ref[0].astype(jnp.float32)            # [1, S] key-padding additive bias
    d = num_heads * head_dim
    S = x.shape[0]

    for l in range(num_layers):                           # static unroll (L=2)
        # --- attention sub-block (pre-norm residual) ---
        n1 = _ln_normalize(x)
        qkv = jnp.dot(n1.astype(MM_DTYPE), wqkv_ref[l],
                      preferred_element_type=jnp.float32) + bqkv_ref[l]  # [S, 3D]
        q = qkv[:, :d]                                    # already scaled by 1/sqrt(Dh)
        k = qkv[:, d:2 * d]
        v = qkv[:, 2 * d:]
        wo_l = wo_ref[l]                                  # [D, D] bf16

        acc = jnp.zeros((S, d), jnp.float32)
        for h in range(num_heads):                        # static unroll over heads
            sl = slice(h * head_dim, (h + 1) * head_dim)
            qh = q[:, sl].astype(MM_DTYPE)                # [S, Dh]
            kh = k[:, sl].astype(MM_DTYPE)
            vh = v[:, sl].astype(MM_DTYPE)
            s = jax.lax.dot_general(qh, kh, (((1,), (1,)), ((), ())),
                                    preferred_element_type=jnp.float32)  # [S, S]
            if has_mask:
                s = s + bias
            s = s - jnp.max(s, axis=-1, keepdims=True)
            p = jnp.exp(s)
            p = p * pl.reciprocal(jnp.sum(p, axis=-1, keepdims=True), approx=True)
            oh = jnp.dot(p.astype(MM_DTYPE), vh,
                         preferred_element_type=jnp.float32)             # [S, Dh]
            # per-head partial product against W_o rows (no concatenate)
            acc = acc + jnp.dot(oh.astype(MM_DTYPE), wo_l[sl, :],
                                preferred_element_type=jnp.float32)      # [S, D]
        x = x + acc + bo_ref[l]                           # residual 1 (fused)

        # --- feed-forward sub-block (pre-norm residual) ---
        n2 = _ln_normalize(x)
        f1 = jnp.dot(n2.astype(MM_DTYPE), wff1_ref[l],
                     preferred_element_type=jnp.float32) + bff1_ref[l]
        f1 = _gelu_exact(f1)
        f2 = jnp.dot(f1.astype(MM_DTYPE), wff2_ref[l],
                     preferred_element_type=jnp.float32) + bff2_ref[l]
        x = x + f2                                        # residual 2 (fused)

    # --- final LayerNorm (full affine; output is returned) + LM head ---
    hf = _ln_normalize(x) * fing_ref[...] + finb_ref[...]
    h_ref[0] = hf.astype(h_ref.dtype)
    logits_ref[0] = jnp.dot(hf.astype(MM_DTYPE), lmw_ref[...],
                            preferred_element_type=jnp.float32
                            ).astype(logits_ref.dtype)


# ----------------------------- wrappers ------------------------------------
def _full_spec(ndim, shape):
    """Full-array (untiled, VMEM-resident) block for a small weight tensor."""
    return pl.BlockSpec(shape, lambda b, _n=ndim: (0,) * _n)


def museformer_fused(x, key_bias3, prep):
    """x: [B, S, D] f32; key_bias3: [B, 1, S] f32 or None; prep: prepared weights."""
    B, S, D = x.shape
    V = prep["lm_head_w"].shape[1]
    has_mask = key_bias3 is not None

    kernel = functools.partial(_fused_kernel, num_layers=NUM_LAYERS,
                               num_heads=NUM_HEADS, head_dim=HEAD_DIM,
                               has_mask=has_mask)

    weights = [prep["w_qkv"], prep["b_qkv"], prep["w_o"], prep["b_o"],
               prep["w_ff1"], prep["b_ff1"], prep["w_ff2"], prep["b_ff2"],
               prep["final_ln_g"], prep["final_ln_b"], prep["lm_head_w"]]

    in_specs = [pl.BlockSpec((1, S, D), lambda b: (b, 0, 0))]
    args = [x]
    if has_mask:
        in_specs.append(pl.BlockSpec((1, 1, S), lambda b: (b, 0, 0)))
        args.append(key_bias3)
    in_specs += [_full_spec(w.ndim, w.shape) for w in weights]
    args += weights

    return pl.pallas_call(
        kernel,
        out_shape=(jax.ShapeDtypeStruct((B, S, D), jnp.float32),
                   jax.ShapeDtypeStruct((B, S, V), jnp.float32)),
        grid=(B,),
        in_specs=in_specs,
        out_specs=(pl.BlockSpec((1, S, D), lambda b: (b, 0, 0)),
                   pl.BlockSpec((1, S, V), lambda b: (b, 0, 0))),
        compiler_params=pltpu.CompilerParams(
            dimension_semantics=("parallel",)),
    )(*args)


# ----------------------------- parameter prep ------------------------------
def prepare_params(params):
    """One-time weight preparation:
       * fold LayerNorm gamma/beta into the following matmul (exact algebra),
       * fold softmax 1/sqrt(Dh) into the Q columns of W_qkv / b_qkv,
       * cast matmul weights to bf16, stack per-layer weights as [L, ...]."""
    D = D_MODEL
    scale = 1.0 / math.sqrt(HEAD_DIM)

    wqkv_l, bqkv_l, wo_l, bo_l = [], [], [], []
    wff1_l, bff1_l, wff2_l, bff2_l = [], [], [], []
    for layer in params["layers"]:
        g1, b1 = layer["ln1_g"], layer["ln1_b"]
        w_qkv = layer["w_qkv"] * g1[:, None]
        b_qkv = layer["b_qkv"] + b1 @ layer["w_qkv"]
        w_qkv = w_qkv.at[:, :D].multiply(scale)           # fold softmax scale into Q
        b_qkv = b_qkv.at[:D].multiply(scale)

        g2, b2 = layer["ln2_g"], layer["ln2_b"]
        w_ff1 = layer["w_ff1"] * g2[:, None]
        b_ff1 = layer["b_ff1"] + b2 @ layer["w_ff1"]

        wqkv_l.append(w_qkv.astype(MM_DTYPE))
        bqkv_l.append(b_qkv.reshape(1, -1))
        wo_l.append(layer["w_o"].astype(MM_DTYPE))
        bo_l.append(layer["b_o"].reshape(1, -1))
        wff1_l.append(w_ff1.astype(MM_DTYPE))
        bff1_l.append(b_ff1.reshape(1, -1))
        wff2_l.append(layer["w_ff2"].astype(MM_DTYPE))
        bff2_l.append(layer["b_ff2"].reshape(1, -1))

    return {
        "token_emb": params["token_emb"],
        "track_emb": params["track_emb"],
        "pos_emb": params["pos_emb"],
        "w_qkv": jnp.stack(wqkv_l), "b_qkv": jnp.stack(bqkv_l),
        "w_o": jnp.stack(wo_l), "b_o": jnp.stack(bo_l),
        "w_ff1": jnp.stack(wff1_l), "b_ff1": jnp.stack(bff1_l),
        "w_ff2": jnp.stack(wff2_l), "b_ff2": jnp.stack(bff2_l),
        "final_ln_g": params["final_ln_g"].reshape(1, D),
        "final_ln_b": params["final_ln_b"].reshape(1, D),
        "lm_head_w": params["lm_head_w"].astype(MM_DTYPE),
    }


# ----------------------------- parameters ----------------------------------
def init_params(key):
    def normal(k, shape):
        return 0.02 * jax.random.normal(k, shape, dtype=jnp.float32)

    keys = jax.random.split(key, 4 + NUM_LAYERS)
    params = {
        "token_emb": normal(keys[0], (VOCAB_SIZE, D_MODEL)),
        "track_emb": normal(keys[1], (NUM_TRACKS, TRACK_EMB_DIM)),
        "pos_emb": normal(keys[2], (MAX_POS, D_MODEL)),
        "final_ln_g": jnp.ones((D_MODEL,), jnp.float32),
        "final_ln_b": jnp.zeros((D_MODEL,), jnp.float32),
        "lm_head_w": normal(keys[3], (D_MODEL, VOCAB_SIZE)),   # no bias
        "layers": [],
    }
    for l in range(NUM_LAYERS):
        lk = jax.random.split(keys[4 + l], 4)
        params["layers"].append({
            "ln1_g": jnp.ones((D_MODEL,), jnp.float32),
            "ln1_b": jnp.zeros((D_MODEL,), jnp.float32),
            "w_qkv": normal(lk[0], (D_MODEL, 3 * D_MODEL)),
            "b_qkv": jnp.zeros((3 * D_MODEL,), jnp.float32),
            "w_o": normal(lk[1], (D_MODEL, D_MODEL)),
            "b_o": jnp.zeros((D_MODEL,), jnp.float32),
            "ln2_g": jnp.ones((D_MODEL,), jnp.float32),
            "ln2_b": jnp.zeros((D_MODEL,), jnp.float32),
            "w_ff1": normal(lk[2], (D_MODEL, D_FF)),
            "b_ff1": jnp.zeros((D_FF,), jnp.float32),
            "w_ff2": normal(lk[3], (D_FF, D_MODEL)),
            "b_ff2": jnp.zeros((D_MODEL,), jnp.float32),
        })
    return params


# ----------------------------- forward -------------------------------------
def museformer_forward(prep, input_ids, attention_mask=None, track_ids=None):
    B, S = input_ids.shape

    # Embeddings (gathers kept as plain JAX glue).
    h = prep["token_emb"][input_ids]                            # [B, S, D]
    if track_ids is not None:
        tid = jnp.clip(track_ids, 0, NUM_TRACKS - 1)
        h = h + prep["track_emb"][tid]                          # track_projection is None
    pos_ids = jnp.clip(jnp.arange(S), 0, MAX_POS - 1)
    h = h + prep["pos_emb"][pos_ids][None, :, :]
    # dropout: eval mode -> identity

    # key_padding_mask = ~attention_mask -> additive bias on keys
    if attention_mask is not None:
        key_bias3 = jnp.where(attention_mask > 0, 0.0, -1e9
                              ).astype(jnp.float32).reshape(B, 1, S)
    else:
        key_bias3 = None                                        # specialized no-mask kernel

    last_hidden, logits = museformer_fused(h, key_bias3, prep)
    return last_hidden, logits


# ----------------------------- main ----------------------------------------
if __name__ == "__main__":
    root = jax.random.PRNGKey(0)
    k_params, k_ids, k_tracks = jax.random.split(root, 3)

    params = init_params(k_params)
    prep = prepare_params(params)           # one-time weight prep (LN/scale folding, bf16)

    B, S = 2, 16
    input_ids = jax.random.randint(k_ids, (B, S), 0, VOCAB_SIZE, dtype=jnp.int32)
    track_ids = jax.random.randint(k_tracks, (B, S), 0, NUM_TRACKS, dtype=jnp.int32)
    attention_mask = jnp.ones((B, S), dtype=jnp.int32)

    fwd = jax.jit(museformer_forward)
    last_hidden, logits = fwd(prep, input_ids,
                              attention_mask=attention_mask,
                              track_ids=track_ids)
    jax.block_until_ready(logits)

    assert last_hidden.shape == (B, S, D_MODEL)
    assert logits.shape == (B, S, VOCAB_SIZE)
    assert bool(jnp.all(jnp.isfinite(logits)))
    assert bool(jnp.all(jnp.isfinite(last_hidden)))
    print("KERNEL_OK")
</pallas_src>

<mosaic_0001>
module attributes {stable_mosaic.version = 11 : i64} {
  func.func @_fused_kernel(%arg0: i32, %arg1: memref<1x16x128xf32, #tpu.memory_space<vmem>>, %arg2: memref<1x1x16xf32, #tpu.memory_space<vmem>>, %arg3: memref<2x128x384xbf16, #tpu.memory_space<vmem>>, %arg4: memref<2x1x384xf32, #tpu.memory_space<vmem>>, %arg5: memref<2x128x128xbf16, #tpu.memory_space<vmem>>, %arg6: memref<2x1x128xf32, #tpu.memory_space<vmem>>, %arg7: memref<2x128x256xbf16, #tpu.memory_space<vmem>>, %arg8: memref<2x1x256xf32, #tpu.memory_space<vmem>>, %arg9: memref<2x256x128xbf16, #tpu.memory_space<vmem>>, %arg10: memref<2x1x128xf32, #tpu.memory_space<vmem>>, %arg11: memref<1x128xf32, #tpu.memory_space<vmem>>, %arg12: memref<1x128xf32, #tpu.memory_space<vmem>>, %arg13: memref<128x256xbf16, #tpu.memory_space<vmem>>, %arg14: memref<1x16x128xf32, #tpu.memory_space<vmem>>, %arg15: memref<1x16x256xf32, #tpu.memory_space<vmem>>) attributes {dimension_semantics = [#tpu.dimension_semantics<parallel>], iteration_bounds = array<i64: 2>, scalar_prefetch = 0 : i64, scratch_operands = 0 : i64, tpu.core_type = #tpu.core_type<tc>, window_params = [{transform_indices = @transform_0, window_bounds = array<i64: 1, 16, 128>}, {transform_indices = @transform_1, window_bounds = array<i64: 1, 1, 16>}, {pipeline_mode = #tpu.pipeline_mode<synchronous>, transform_indices = @transform_2, window_bounds = array<i64: 2, 128, 384>}, {pipeline_mode = #tpu.pipeline_mode<synchronous>, transform_indices = @transform_3, window_bounds = array<i64: 2, 1, 384>}, {pipeline_mode = #tpu.pipeline_mode<synchronous>, transform_indices = @transform_4, window_bounds = array<i64: 2, 128, 128>}, {pipeline_mode = #tpu.pipeline_mode<synchronous>, transform_indices = @transform_5, window_bounds = array<i64: 2, 1, 128>}, {pipeline_mode = #tpu.pipeline_mode<synchronous>, transform_indices = @transform_6, window_bounds = array<i64: 2, 128, 256>}, {pipeline_mode = #tpu.pipeline_mode<synchronous>, transform_indices = @transform_7, window_bounds = array<i64: 2, 1, 256>}, {pipeline_mode = #tpu.pipeline_mode<synchronous>, transform_indices = @transform_8, window_bounds = array<i64: 2, 256, 128>}, {pipeline_mode = #tpu.pipeline_mode<synchronous>, transform_indices = @transform_9, window_bounds = array<i64: 2, 1, 128>}, {pipeline_mode = #tpu.pipeline_mode<synchronous>, transform_indices = @transform_10, window_bounds = array<i64: 1, 128>}, {pipeline_mode = #tpu.pipeline_mode<synchronous>, transform_indices = @transform_11, window_bounds = array<i64: 1, 128>}, {pipeline_mode = #tpu.pipeline_mode<synchronous>, transform_indices = @transform_12, window_bounds = array<i64: 128, 256>}, {transform_indices = @transform_13, window_bounds = array<i64: 1, 16, 128>}, {transform_indices = @transform_14, window_bounds = array<i64: 1, 16, 256>}]} {
    %c0 = arith.constant 0 : index
    %c0_0 = arith.constant 0 : index
    %c0_1 = arith.constant 0 : index
    %0 = vector.load %arg1[%c0, %c0_0, %c0_1] : memref<1x16x128xf32, #tpu.memory_space<vmem>>, vector<1x16x128xf32>
    %1 = vector.shape_cast %0 : vector<1x16x128xf32> to vector<16x128xf32>
    %c0_2 = arith.constant 0 : index
    %c0_3 = arith.constant 0 : index
    %c0_4 = arith.constant 0 : index
    %2 = vector.load %arg2[%c0_2, %c0_3, %c0_4] : memref<1x1x16xf32, #tpu.memory_space<vmem>>, vector<1x1x16xf32>
    %3 = vector.shape_cast %2 : vector<1x1x16xf32> to vector<1x16xf32>
    %cst = arith.constant dense<0.000000e+00> : vector<16xf32>
    %4 = vector.multi_reduction <add>, %1, %cst [1] : vector<16x128xf32> to vector<16xf32>
    %5 = vector.shape_cast %4 : vector<16xf32> to vector<16x1xf32>
    %cst_5 = arith.constant 1.280000e+02 : f32
    %6 = vector.broadcast %cst_5 : f32 to vector<16x1xf32>
    %7 = arith.divf %5, %6 : vector<16x1xf32>
    %8 = vector.broadcast %7 : vector<16x1xf32> to vector<16x128xf32>
    %9 = arith.subf %1, %8 : vector<16x128xf32>
    %10 = arith.mulf %9, %9 : vector<16x128xf32>
    %cst_6 = arith.constant dense<0.000000e+00> : vector<16xf32>
    %11 = vector.multi_reduction <add>, %10, %cst_6 [1] : vector<16x128xf32> to vector<16xf32>
    %12 = vector.shape_cast %11 : vector<16xf32> to vector<16x1xf32>
    %cst_7 = arith.constant 1.280000e+02 : f32
    %13 = vector.broadcast %cst_7 : f32 to vector<16x1xf32>
    %14 = arith.divf %12, %13 : vector<16x1xf32>
    %cst_8 = arith.constant 9.99999974E-6 : f32
    %15 = vector.broadcast %cst_8 : f32 to vector<16x1xf32>
    %16 = arith.addf %14, %15 : vector<16x1xf32>
    %17 = math.rsqrt %16 : vector<16x1xf32>
    %18 = vector.broadcast %17 : vector<16x1xf32> to vector<16x128xf32>
    %19 = arith.mulf %9, %18 : vector<16x128xf32>
    %20 = arith.truncf %19 : vector<16x128xf32> to vector<16x128xbf16>
    %c0_9 = arith.constant 0 : index
    %c0_10 = arith.constant 0 : index
    %c0_11 = arith.constant 0 : index
    %21 = vector.load %arg3[%c0_9, %c0_10, %c0_11] : memref<2x128x384xbf16, #tpu.memory_space<vmem>>, vector<1x128x384xbf16>
    %22 = vector.shape_cast %21 : vector<1x128x384xbf16> to vector<128x384xbf16>
    %cst_12 = arith.constant dense<0.000000e+00> : vector<16x384xf32>
    %23 = tpu.matmul %20, %22, %cst_12 {dimension_numbers = #tpu.dot_dimension_numbers<[1], [0], [0], [1], [0, 0, 1, 1], [], []>} : vector<16x128xbf16>, vector<128x384xbf16>, vector<16x384xf32> -> vector<16x384xf32>
    %c0_13 = arith.constant 0 : index
    %c0_14 = arith.constant 0 : index
    %c0_15 = arith.constant 0 : index
    %24 = vector.load %arg4[%c0_13, %c0_14, %c0_15] : memref<2x1x384xf32, #tpu.memory_space<vmem>>, vector<1x1x384xf32>
    %25 = vector.shape_cast %24 : vector<1x1x384xf32> to vector<1x384xf32>
    %26 = vector.broadcast %25 : vector<1x384xf32> to vector<16x384xf32>
    %27 = arith.addf %23, %26 : vector<16x384xf32>
    %28 = vector.extract_strided_slice %27 {offsets = [0, 0], sizes = [16, 128], strides = [1, 1]} : vector<16x384xf32> to vector<16x128xf32>
    %29 = vector.extract_strided_slice %27 {offsets = [0, 128], sizes = [16, 128], strides = [1, 1]} : vector<16x384xf32> to vector<16x128xf32>
    %30 = vector.extract_strided_slice %27 {offsets = [0, 256], sizes = [16, 128], strides = [1, 1]} : vector<16x384xf32> to vector<16x128xf32>
    %c0_16 = arith.constant 0 : index
    %c0_17 = arith.constant 0 : index
    %c0_18 = arith.constant 0 : index
    %31 = vector.load %arg5[%c0_16, %c0_17, %c0_18] : memref<2x128x128xbf16, #tpu.memory_space<vmem>>, vector<1x128x128xbf16>
    %32 = vector.shape_cast %31 : vector<1x128x128xbf16> to vector<128x128xbf16>
    %cst_19 = arith.constant 0.000000e+00 : f32
    %33 = vector.broadcast %cst_19 : f32 to vector<16x128xf32>
    %34 = vector.extract_strided_slice %28 {offsets = [0, 0], sizes = [16, 32], strides = [1, 1]} : vector<16x128xf32> to vector<16x32xf32>
    %35 = arith.truncf %34 : vector<16x32xf32> to vector<16x32xbf16>
    %36 = vector.extract_strided_slice %29 {offsets = [0, 0], sizes = [16, 32], strides = [1, 1]} : vector<16x128xf32> to vector<16x32xf32>
    %37 = arith.truncf %36 : vector<16x32xf32> to vector<16x32xbf16>
    %38 = vector.extract_strided_slice %30 {offsets = [0, 0], sizes = [16, 32], strides = [1, 1]} : vector<16x128xf32> to vector<16x32xf32>
    %39 = arith.truncf %38 : vector<16x32xf32> to vector<16x32xbf16>
    %cst_20 = arith.constant dense<0.000000e+00> : vector<16x16xf32>
    %40 = tpu.matmul %35, %37, %cst_20 {dimension_numbers = #tpu.dot_dimension_numbers<[1], [1], [0], [0], [0, 0, 1, 0], [], []>} : vector<16x32xbf16>, vector<16x32xbf16>, vector<16x16xf32> -> vector<16x16xf32>
    %41 = vector.broadcast %3 : vector<1x16xf32> to vector<16x16xf32>
    %42 = arith.addf %40, %41 : vector<16x16xf32>
    %cst_21 = arith.constant dense<0xFF800000> : vector<16xf32>
    %43 = vector.multi_reduction <maximumf>, %42, %cst_21 [1] : vector<16x16xf32> to vector<16xf32>
    %44 = vector.shape_cast %43 : vector<16xf32> to vector<16x1xf32>
    %45 = vector.broadcast %44 : vector<16x1xf32> to vector<16x16xf32>
    %46 = arith.subf %42, %45 : vector<16x16xf32>
    %47 = math.exp %46 : vector<16x16xf32>
    %cst_22 = arith.constant dense<0.000000e+00> : vector<16xf32>
    %48 = vector.multi_reduction <add>, %47, %cst_22 [1] : vector<16x16xf32> to vector<16xf32>
    %49 = vector.shape_cast %48 : vector<16xf32> to vector<16x1xf32>
    %50 = tpu.reciprocal %49 {approx = true} : vector<16x1xf32> -> vector<16x1xf32>
    %51 = vector.broadcast %50 : vector<16x1xf32> to vector<16x16xf32>
    %52 = arith.mulf %47, %51 : vector<16x16xf32>
    %53 = arith.truncf %52 : vector<16x16xf32> to vector<16x16xbf16>
    %cst_23 = arith.constant dense<0.000000e+00> : vector<16x32xf32>
    %54 = tpu.matmul %53, %39, %cst_23 {dimension_numbers = #tpu.dot_dimension_numbers<[1], [0], [0], [1], [0, 0, 1, 1], [], []>} : vector<16x16xbf16>, vector<16x32xbf16>, vector<16x32xf32> -> vector<16x32xf32>
    %55 = arith.truncf %54 : vector<16x32xf32> to vector<16x32xbf16>
    %56 = vector.extract_strided_slice %32 {offsets = [0, 0], sizes = [32, 128], strides = [1, 1]} : vector<128x128xbf16> to vector<32x128xbf16>
    %cst_24 = arith.constant dense<0.000000e+00> : vector<16x128xf32>
    %57 = tpu.matmul %55, %56, %cst_24 {dimension_numbers = #tpu.dot_dimension_numbers<[1], [0], [0], [1], [0, 0, 1, 1], [], []>} : vector<16x32xbf16>, vector<32x128xbf16>, vector<16x128xf32> -> vector<16x128xf32>
    %58 = arith.addf %33, %57 : vector<16x128xf32>
    %59 = vector.extract_strided_slice %28 {offsets = [0, 32], sizes = [16, 32], strides = [1, 1]} : vector<16x128xf32> to vector<16x32xf32>
    %60 = arith.truncf %59 : vector<16x32xf32> to vector<16x32xbf16>
    %61 = vector.extract_strided_slice %29 {offsets = [0, 32], sizes = [16, 32], strides = [1, 1]} : vector<16x128xf32> to vector<16x32xf32>
    %62 = arith.truncf %61 : vector<16x32xf32> to vector<16x32xbf16>
    %63 = vector.extract_strided_slice %30 {offsets = [0, 32], sizes = [16, 32], strides = [1, 1]} : vector<16x128xf32> to vector<16x32xf32>
    %64 = arith.truncf %63 : vector<16x32xf32> to vector<16x32xbf16>
    %cst_25 = arith.constant dense<0.000000e+00> : vector<16x16xf32>
    %65 = tpu.matmul %60, %62, %cst_25 {dimension_numbers = #tpu.dot_dimension_numbers<[1], [1], [0], [0], [0, 0, 1, 0], [], []>} : vector<16x32xbf16>, vector<16x32xbf16>, vector<16x16xf32> -> vector<16x16xf32>
    %66 = vector.broadcast %3 : vector<1x16xf32> to vector<16x16xf32>
    %67 = arith.addf %65, %66 : vector<16x16xf32>
    %cst_26 = arith.constant dense<0xFF800000> : vector<16xf32>
    %68 = vector.multi_reduction <maximumf>, %67, %cst_26 [1] : vector<16x16xf32> to vector<16xf32>
    %69 = vector.shape_cast %68 : vector<16xf32> to vector<16x1xf32>
    %70 = vector.broadcast %69 : vector<16x1xf32> to vector<16x16xf32>
    %71 = arith.subf %67, %70 : vector<16x16xf32>
    %72 = math.exp %71 : vector<16x16xf32>
    %cst_27 = arith.constant dense<0.000000e+00> : vector<16xf32>
    %73 = vector.multi_reduction <add>, %72, %cst_27 [1] : vector<16x16xf32> to vector<16xf32>
    %74 = vector.shape_cast %73 : vector<16xf32> to vector<16x1xf32>
    %75 = tpu.reciprocal %74 {approx = true} : vector<16x1xf32> -> vector<16x1xf32>
    %76 = vector.broadcast %75 : vector<16x1xf32> to vector<16x16xf32>
    %77 = arith.mulf %72, %76 : vector<16x16xf32>
    %78 = arith.truncf %77 : vector<16x16xf32> to vector<16x16xbf16>
    %cst_28 = arith.constant dense<0.000000e+00> : vector<16x32xf32>
    %79 = tpu.matmul %78, %64, %cst_28 {dimension_numbers = #tpu.dot_dimension_numbers<[1], [0], [0], [1], [0, 0, 1, 1], [], []>} : vector<16x16xbf16>, vector<16x32xbf16>, vector<16x32xf32> -> vector<16x32xf32>
    %80 = arith.truncf %79 : vector<16x32xf32> to vector<16x32xbf16>
    %81 = vector.extract_strided_slice %32 {offsets = [32, 0], sizes = [32, 128], strides = [1, 1]} : vector<128x128xbf16> to vector<32x128xbf16>
    %cst_29 = arith.constant dense<0.000000e+00> : vector<16x128xf32>
    %82 = tpu.matmul %80, %81, %cst_29 {dimension_numbers = #tpu.dot_dimension_numbers<[1], [0], [0], [1], [0, 0, 1, 1], [], []>} : vector<16x32xbf16>, vector<32x128xbf16>, vector<16x128xf32> -> vector<16x128xf32>
    %83 = arith.addf %58, %82 : vector<16x128xf32>
    %84 = vector.extract_strided_slice %28 {offsets = [0, 64], sizes = [16, 32], strides = [1, 1]} : vector<16x128xf32> to vector<16x32xf32>
    %85 = arith.truncf %84 : vector<16x32xf32> to vector<16x32xbf16>
    %86 = vector.extract_strided_slice %29 {offsets = [0, 64], sizes = [16, 32], strides = [1, 1]} : vector<16x128xf32> to vector<16x32xf32>
    %87 = arith.truncf %86 : vector<16x32xf32> to vector<16x32xbf16>
    %88 = vector.extract_strided_slice %30 {offsets = [0, 64], sizes = [16, 32], strides = [1, 1]} : vector<16x128xf32> to vector<16x32xf32>
    %89 = arith.truncf %88 : vector<16x32xf32> to vector<16x32xbf16>
    %cst_30 = arith.constant dense<0.000000e+00> : vector<16x16xf32>
    %90 = tpu.matmul %85, %87, %cst_30 {dimension_numbers = #tpu.dot_dimension_numbers<[1], [1], [0], [0], [0, 0, 1, 0], [], []>} : vector<16x32xbf16>, vector<16x32xbf16>, vector<16x16xf32> -> vector<16x16xf32>
    %91 = vector.broadcast %3 : vector<1x16xf32> to vector<16x16xf32>
    %92 = arith.addf %90, %91 : vector<16x16xf32>
    %cst_31 = arith.constant dense<0xFF800000> : vector<16xf32>
    %93 = vector.multi_reduction <maximumf>, %92, %cst_31 [1] : vector<16x16xf32> to vector<16xf32>
    %94 = vector.shape_cast %93 : vector<16xf32> to vector<16x1xf32>
    %95 = vector.broadcast %94 : vector<16x1xf32> to vector<16x16xf32>
    %96 = arith.subf %92, %95 : vector<16x16xf32>
    %97 = math.exp %96 : vector<16x16xf32>
    %cst_32 = arith.constant dense<0.000000e+00> : vector<16xf32>
    %98 = vector.multi_reduction <add>, %97, %cst_32 [1] : vector<16x16xf32> to vector<16xf32>
    %99 = vector.shape_cast %98 : vector<16xf32> to vector<16x1xf32>
    %100 = tpu.reciprocal %99 {approx = true} : vector<16x1xf32> -> vector<16x1xf32>
    %101 = vector.broadcast %100 : vector<16x1xf32> to vector<16x16xf32>
    %102 = arith.mulf %97, %101 : vector<16x16xf32>
    %103 = arith.truncf %102 : vector<16x16xf32> to vector<16x16xbf16>
    %cst_33 = arith.constant dense<0.000000e+00> : vector<16x32xf32>
    %104 = tpu.matmul %103, %89, %cst_33 {dimension_numbers = #tpu.dot_dimension_numbers<[1], [0], [0], [1], [0, 0, 1, 1], [], []>} : vector<16x16xbf16>, vector<16x32xbf16>, vector<16x32xf32> -> vector<16x32xf32>
    %105 = arith.truncf %104 : vector<16x32xf32> to vector<16x32xbf16>
    %106 = vector.extract_strided_slice %32 {offsets = [64, 0], sizes = [32, 128], strides = [1, 1]} : vector<128x128xbf16> to vector<32x128xbf16>
    %cst_34 = arith.constant dense<0.000000e+00> : vector<16x128xf32>
    %107 = tpu.matmul %105, %106, %cst_34 {dimension_numbers = #tpu.dot_dimension_numbers<[1], [0], [0], [1], [0, 0, 1, 1], [], []>} : vector<16x32xbf16>, vector<32x128xbf16>, vector<16x128xf32> -> vector<16x128xf32>
    %108 = arith.addf %83, %107 : vector<16x128xf32>
    %109 = vector.extract_strided_slice %28 {offsets = [0, 96], sizes = [16, 32], strides = [1, 1]} : vector<16x128xf32> to vector<16x32xf32>
    %110 = arith.truncf %109 : vector<16x32xf32> to vector<16x32xbf16>
    %111 = vector.extract_strided_slice %29 {offsets = [0, 96], sizes = [16, 32], strides = [1, 1]} : vector<16x128xf32> to vector<16x32xf32>
    %112 = arith.truncf %111 : vector<16x32xf32> to vector<16x32xbf16>
    %113 = vector.extract_strided_slice %30 {offsets = [0, 96], sizes = [16, 32], strides = [1, 1]} : vector<16x128xf32> to vector<16x32xf32>
    %114 = arith.truncf %113 : vector<16x32xf32> to vector<16x32xbf16>
    %cst_35 = arith.constant dense<0.000000e+00> : vector<16x16xf32>
    %115 = tpu.matmul %110, %112, %cst_35 {dimension_numbers = #tpu.dot_dimension_numbers<[1], [1], [0], [0], [0, 0, 1, 0], [], []>} : vector<16x32xbf16>, vector<16x32xbf16>, vector<16x16xf32> -> vector<16x16xf32>
    %116 = vector.broadcast %3 : vector<1x16xf32> to vector<16x16xf32>
    %117 = arith.addf %115, %116 : vector<16x16xf32>
    %cst_36 = arith.constant dense<0xFF800000> : vector<16xf32>
    %118 = vector.multi_reduction <maximumf>, %117, %cst_36 [1] : vector<16x16xf32> to vector<16xf32>
    %119 = vector.shape_cast %118 : vector<16xf32> to vector<16x1xf32>
    %120 = vector.broadcast %119 : vector<16x1xf32> to vector<16x16xf32>
    %121 = arith.subf %117, %120 : vector<16x16xf32>
    %122 = math.exp %121 : vector<16x16xf32>
    %cst_37 = arith.constant dense<0.000000e+00> : vector<16xf32>
    %123 = vector.multi_reduction <add>, %122, %cst_37 [1] : vector<16x16xf32> to vector<16xf32>
    %124 = vector.shape_cast %123 : vector<16xf32> to vector<16x1xf32>
    %125 = tpu.reciprocal %124 {approx = true} : vector<16x1xf32> -> vector<16x1xf32>
    %126 = vector.broadcast %125 : vector<16x1xf32> to vector<16x16xf32>
    %127 = arith.mulf %122, %126 : vector<16x16xf32>
    %128 = arith.truncf %127 : vector<16x16xf32> to vector<16x16xbf16>
    %cst_38 = arith.constant dense<0.000000e+00> : vector<16x32xf32>
    %129 = tpu.matmul %128, %114, %cst_38 {dimension_numbers = #tpu.dot_dimension_numbers<[1], [0], [0], [1], [0, 0, 1, 1], [], []>} : vector<16x16xbf16>, vector<16x32xbf16>, vector<16x32xf32> -> vector<16x32xf32>
    %130 = arith.truncf %129 : vector<16x32xf32> to vector<16x32xbf16>
    %131 = vector.extract_strided_slice %32 {offsets = [96, 0], sizes = [32, 128], strides = [1, 1]} : vector<128x128xbf16> to vector<32x128xbf16>
    %cst_39 = arith.constant dense<0.000000e+00> : vector<16x128xf32>
    %132 = tpu.matmul %130, %131, %cst_39 {dimension_numbers = #tpu.dot_dimension_numbers<[1], [0], [0], [1], [0, 0, 1, 1], [], []>} : vector<16x32xbf16>, vector<32x128xbf16>, vector<16x128xf32> -> vector<16x128xf32>
    %133 = arith.addf %108, %132 : vector<16x128xf32>
    %134 = arith.addf %1, %133 : vector<16x128xf32>
    %c0_40 = arith.constant 0 : index
    %c0_41 = arith.constant 0 : index
    %c0_42 = arith.constant 0 : index
    %135 = vector.load %arg6[%c0_40, %c0_41, %c0_42] : memref<2x1x128xf32, #tpu.memory_space<vmem>>, vector<1x1x128xf32>
    %136 = vector.shape_cast %135 : vector<1x1x128xf32> to vector<1x128xf32>
    %137 = vector.broadcast %136 : vector<1x128xf32> to vector<16x128xf32>
    %138 = arith.addf %134, %137 : vector<16x128xf32>
    %cst_43 = arith.constant dense<0.000000e+00> : vector<16xf32>
    %139 = vector.multi_reduction <add>, %138, %cst_43 [1] : vector<16x128xf32> to vector<16xf32>
    %140 = vector.shape_cast %139 : vector<16xf32> to vector<16x1xf32>
    %cst_44 = arith.constant 1.280000e+02 : f32
    %141 = vector.broadcast %cst_44 : f32 to vector<16x1xf32>
    %142 = arith.divf %140, %141 : vector<16x1xf32>
    %143 = vector.broadcast %142 : vector<16x1xf32> to vector<16x128xf32>
    %144 = arith.subf %138, %143 : vector<16x128xf32>
    %145 = arith.mulf %144, %144 : vector<16x128xf32>
    %cst_45 = arith.constant dense<0.000000e+00> : vector<16xf32>
    %146 = vector.multi_reduction <add>, %145, %cst_45 [1] : vector<16x128xf32> to vector<16xf32>
    %147 = vector.shape_cast %146 : vector<16xf32> to vector<16x1xf32>
    %cst_46 = arith.constant 1.280000e+02 : f32
    %148 = vector.broadcast %cst_46 : f32 to vector<16x1xf32>
    %149 = arith.divf %147, %148 : vector<16x1xf32>
    %cst_47 = arith.constant 9.99999974E-6 : f32
    %150 = vector.broadcast %cst_47 : f32 to vector<16x1xf32>
    %151 = arith.addf %149, %150 : vector<16x1xf32>
    %152 = math.rsqrt %151 : vector<16x1xf32>
    %153 = vector.broadcast %152 : vector<16x1xf32> to vector<16x128xf32>
    %154 = arith.mulf %144, %153 : vector<16x128xf32>
    %155 = arith.truncf %154 : vector<16x128xf32> to vector<16x128xbf16>
    %c0_48 = arith.constant 0 : index
    %c0_49 = arith.constant 0 : index
    %c0_50 = arith.constant 0 : index
    %156 = vector.load %arg7[%c0_48, %c0_49, %c0_50] : memref<2x128x256xbf16, #tpu.memory_space<vmem>>, vector<1x128x256xbf16>
    %157 = vector.shape_cast %156 : vector<1x128x256xbf16> to vector<128x256xbf16>
    %cst_51 = arith.constant dense<0.000000e+00> : vector<16x256xf32>
    %158 = tpu.matmul %155, %157, %cst_51 {dimension_numbers = #tpu.dot_dimension_numbers<[1], [0], [0], [1], [0, 0, 1, 1], [], []>} : vector<16x128xbf16>, vector<128x256xbf16>, vector<16x256xf32> -> vector<16x256xf32>
    %c0_52 = arith.constant 0 : index
    %c0_53 = arith.constant 0 : index
    %c0_54 = arith.constant 0 : index
    %159 = vector.load %arg8[%c0_52, %c0_53, %c0_54] : memref<2x1x256xf32, #tpu.memory_space<vmem>>, vector<1x1x256xf32>
    %160 = vector.shape_cast %159 : vector<1x1x256xf32> to vector<1x256xf32>
    %161 = vector.broadcast %160 : vector<1x256xf32> to vector<16x256xf32>
    %162 = arith.addf %158, %161 : vector<16x256xf32>
    %cst_55 = arith.constant 5.000000e-01 : f32
    %163 = vector.broadcast %cst_55 : f32 to vector<16x256xf32>
    %164 = arith.mulf %163, %162 : vector<16x256xf32>
    %cst_56 = arith.constant 0.707106769 : f32
    %165 = vector.broadcast %cst_56 : f32 to vector<16x256xf32>
    %166 = arith.mulf %162, %165 : vector<16x256xf32>
    %167 = math.erf %166 : vector<16x256xf32>
    %cst_57 = arith.constant 1.000000e+00 : f32
    %168 = vector.broadcast %cst_57 : f32 to vector<16x256xf32>
    %169 = arith.addf %168, %167 : vector<16x256xf32>
    %170 = arith.mulf %164, %169 : vector<16x256xf32>
    %171 = arith.truncf %170 : vector<16x256xf32> to vector<16x256xbf16>
    %c0_58 = arith.constant 0 : index
    %c0_59 = arith.constant 0 : index
    %c0_60 = arith.constant 0 : index
    %172 = vector.load %arg9[%c0_58, %c0_59, %c0_60] : memref<2x256x128xbf16, #tpu.memory_space<vmem>>, vector<1x256x128xbf16>
    %173 = vector.shape_cast %172 : vector<1x256x128xbf16> to vector<256x128xbf16>
    %cst_61 = arith.constant dense<0.000000e+00> : vector<16x128xf32>
    %174 = tpu.matmul %171, %173, %cst_61 {dimension_numbers = #tpu.dot_dimension_numbers<[1], [0], [0], [1], [0, 0, 1, 1], [], []>} : vector<16x256xbf16>, vector<256x128xbf16>, vector<16x128xf32> -> vector<16x128xf32>
    %c0_62 = arith.constant 0 : index
    %c0_63 = arith.constant 0 : index
    %c0_64 = arith.constant 0 : index
    %175 = vector.load %arg10[%c0_62, %c0_63, %c0_64] : memref<2x1x128xf32, #tpu.memory_space<vmem>>, vector<1x1x128xf32>
    %176 = vector.shape_cast %175 : vector<1x1x128xf32> to vector<1x128xf32>
    %177 = vector.broadcast %176 : vector<1x128xf32> to vector<16x128xf32>
    %178 = arith.addf %174, %177 : vector<16x128xf32>
    %179 = arith.addf %138, %178 : vector<16x128xf32>
    %cst_65 = arith.constant dense<0.000000e+00> : vector<16xf32>
    %180 = vector.multi_reduction <add>, %179, %cst_65 [1] : vector<16x128xf32> to vector<16xf32>
    %181 = vector.shape_cast %180 : vector<16xf32> to vector<16x1xf32>
    %cst_66 = arith.constant 1.280000e+02 : f32
    %182 = vector.broadcast %cst_66 : f32 to vector<16x1xf32>
    %183 = arith.divf %181, %182 : vector<16x1xf32>
    %184 = vector.broadcast %183 : vector<16x1xf32> to vector<16x128xf32>
    %185 = arith.subf %179, %184 : vector<16x128xf32>
    %186 = arith.mulf %185, %185 : vector<16x128xf32>
    %cst_67 = arith.constant dense<0.000000e+00> : vector<16xf32>
    %187 = vector.multi_reduction <add>, %186, %cst_67 [1] : vector<16x128xf32> to vector<16xf32>
    %188 = vector.shape_cast %187 : vector<16xf32> to vector<16x1xf32>
    %cst_68 = arith.constant 1.280000e+02 : f32
    %189 = vector.broadcast %cst_68 : f32 to vector<16x1xf32>
    %190 = arith.divf %188, %189 : vector<16x1xf32>
    %cst_69 = arith.constant 9.99999974E-6 : f32
    %191 = vector.broadcast %cst_69 : f32 to vector<16x1xf32>
    %192 = arith.addf %190, %191 : vector<16x1xf32>
    %193 = math.rsqrt %192 : vector<16x1xf32>
    %194 = vector.broadcast %193 : vector<16x1xf32> to vector<16x128xf32>
    %195 = arith.mulf %185, %194 : vector<16x128xf32>
    %196 = arith.truncf %195 : vector<16x128xf32> to vector<16x128xbf16>
    %c1 = arith.constant 1 : index
    %c0_70 = arith.constant 0 : index
    %c0_71 = arith.constant 0 : index
    %197 = vector.load %arg3[%c1, %c0_70, %c0_71] : memref<2x128x384xbf16, #tpu.memory_space<vmem>>, vector<1x128x384xbf16>
    %198 = vector.shape_cast %197 : vector<1x128x384xbf16> to vector<128x384xbf16>
    %cst_72 = arith.constant dense<0.000000e+00> : vector<16x384xf32>
    %199 = tpu.matmul %196, %198, %cst_72 {dimension_numbers = #tpu.dot_dimension_numbers<[1], [0], [0], [1], [0, 0, 1, 1], [], []>} : vector<16x128xbf16>, vector<128x384xbf16>, vector<16x384xf32> -> vector<16x384xf32>
    %c1_73 = arith.constant 1 : index
    %c0_74 = arith.constant 0 : index
    %c0_75 = arith.constant 0 : index
    %200 = vector.load %arg4[%c1_73, %c0_74, %c0_75] : memref<2x1x384xf32, #tpu.memory_space<vmem>>, vector<1x1x384xf32>
    %201 = vector.shape_cast %200 : vector<1x1x384xf32> to vector<1x384xf32>
    %202 = vector.broadcast %201 : vector<1x384xf32> to vector<16x384xf32>
    %203 = arith.addf %199, %202 : vector<16x384xf32>
    %204 = vector.extract_strided_slice %203 {offsets = [0, 0], sizes = [16, 128], strides = [1, 1]} : vector<16x384xf32> to vector<16x128xf32>
    %205 = vector.extract_strided_slice %203 {offsets = [0, 128], sizes = [16, 128], strides = [1, 1]} : vector<16x384xf32> to vector<16x128xf32>
    %206 = vector.extract_strided_slice %203 {offsets = [0, 256], sizes = [16, 128], strides = [1, 1]} : vector<16x384xf32> to vector<16x128xf32>
    %c1_76 = arith.constant 1 : index
    %c0_77 = arith.constant 0 : index
    %c0_78 = arith.constant 0 : index
    %207 = vector.load %arg5[%c1_76, %c0_77, %c0_78] : memref<2x128x128xbf16, #tpu.memory_space<vmem>>, vector<1x128x128xbf16>
    %208 = vector.shape_cast %207 : vector<1x128x128xbf16> to vector<128x128xbf16>
    %cst_79 = arith.constant 0.000000e+00 : f32
    %209 = vector.broadcast %cst_79 : f32 to vector<16x128xf32>
    %210 = vector.extract_strided_slice %204 {offsets = [0, 0], sizes = [16, 32], strides = [1, 1]} : vector<16x128xf32> to vector<16x32xf32>
    %211 = arith.truncf %210 : vector<16x32xf32> to vector<16x32xbf16>
    %212 = vector.extract_strided_slice %205 {offsets = [0, 0], sizes = [16, 32], strides = [1, 1]} : vector<16x128xf32> to vector<16x32xf32>
    %213 = arith.truncf %212 : vector<16x32xf32> to vector<16x32xbf16>
    %214 = vector.extract_strided_slice %206 {offsets = [0, 0], sizes = [16, 32], strides = [1, 1]} : vector<16x128xf32> to vector<16x32xf32>
    %215 = arith.truncf %214 : vector<16x32xf32> to vector<16x32xbf16>
    %cst_80 = arith.constant dense<0.000000e+00> : vector<16x16xf32>
    %216 = tpu.matmul %211, %213, %cst_80 {dimension_numbers = #tpu.dot_dimension_numbers<[1], [1], [0], [0], [0, 0, 1, 0], [], []>} : vector<16x32xbf16>, vector<16x32xbf16>, vector<16x16xf32> -> vector<16x16xf32>
    %217 = vector.broadcast %3 : vector<1x16xf32> to vector<16x16xf32>
    %218 = arith.addf %216, %217 : vector<16x16xf32>
    %cst_81 = arith.constant dense<0xFF800000> : vector<16xf32>
    %219 = vector.multi_reduction <maximumf>, %218, %cst_81 [1] : vector<16x16xf32> to vector<16xf32>
    %220 = vector.shape_cast %219 : vector<16xf32> to vector<16x1xf32>
    %221 = vector.broadcast %220 : vector<16x1xf32> to vector<16x16xf32>
    %222 = arith.subf %218, %221 : vector<16x16xf32>
    %223 = math.exp %222 : vector<16x16xf32>
    %cst_82 = arith.constant dense<0.000000e+00> : vector<16xf32>
    %224 = vector.multi_reduction <add>, %223, %cst_82 [1] : vector<16x16xf32> to vector<16xf32>
    %225 = vector.shape_cast %224 : vector<16xf32> to vector<16x1xf32>
    %226 = tpu.reciprocal %225 {approx = true} : vector<16x1xf32> -> vector<16x1xf32>
    %227 = vector.broadcast %226 : vector<16x1xf32> to vector<16x16xf32>
    %228 = arith.mulf %223, %227 : vector<16x16xf32>
    %229 = arith.truncf %228 : vector<16x16xf32> to vector<16x16xbf16>
    %cst_83 = arith.constant dense<0.000000e+00> : vector<16x32xf32>
    %230 = tpu.matmul %229, %215, %cst_83 {dimension_numbers = #tpu.dot_dimension_numbers<[1], [0], [0], [1], [0, 0, 1, 1], [], []>} : vector<16x16xbf16>, vector<16x32xbf16>, vector<16x32xf32> -> vector<16x32xf32>
    %231 = arith.truncf %230 : vector<16x32xf32> to vector<16x32xbf16>
    %232 = vector.extract_strided_slice %208 {offsets = [0, 0], sizes = [32, 128], strides = [1, 1]} : vector<128x128xbf16> to vector<32x128xbf16>
    %cst_84 = arith.constant dense<0.000000e+00> : vector<16x128xf32>
    %233 = tpu.matmul %231, %232, %cst_84 {dimension_numbers = #tpu.dot_dimension_numbers<[1], [0], [0], [1], [0, 0, 1, 1], [], []>} : vector<16x32xbf16>, vector<32x128xbf16>, vector<16x128xf32> -> vector<16x128xf32>
    %234 = arith.addf %209, %233 : vector<16x128xf32>
    %235 = vector.extract_strided_slice %204 {offsets = [0, 32], sizes = [16, 32], strides = [1, 1]} : vector<16x128xf32> to vector<16x32xf32>
    %236 = arith.truncf %235 : vector<16x32xf32> to vector<16x32xbf16>
    %237 = vector.extract_strided_slice %205 {offsets = [0, 32], sizes = [16, 32], strides = [1, 1]} : vector<16x128xf32> to vector<16x32xf32>
    %238 = arith.truncf %237 : vector<16x32xf32> to vector<16x32xbf16>
    %239 = vector.extract_strided_slice %206 {offsets = [0, 32], sizes = [16, 32], strides = [1, 1]} : vector<16x128xf32> to vector<16x32xf32>
    %240 = arith.truncf %239 : vector<16x32xf32> to vector<16x32xbf16>
    %cst_85 = arith.constant dense<0.000000e+00> : vector<16x16xf32>
    %241 = tpu.matmul %236, %238, %cst_85 {dimension_numbers = #tpu.dot_dimension_numbers<[1], [1], [0], [0], [0, 0, 1, 0], [], []>} : vector<16x32xbf16>, vector<16x32xbf16>, vector<16x16xf32> -> vector<16x16xf32>
    %242 = vector.broadcast %3 : vector<1x16xf32> to vector<16x16xf32>
    %243 = arith.addf %241, %242 : vector<16x16xf32>
    %cst_86 = arith.constant dense<0xFF800000> : vector<16xf32>
    %244 = vector.multi_reduction <maximumf>, %243, %cst_86 [1] : vector<16x16xf32> to vector<16xf32>
    %245 = vector.shape_cast %244 : vector<16xf32> to vector<16x1xf32>
    %246 = vector.broadcast %245 : vector<16x1xf32> to vector<16x16xf32>
    %247 = arith.subf %243, %246 : vector<16x16xf32>
    %248 = math.exp %247 : vector<16x16xf32>
    %cst_87 = arith.constant dense<0.000000e+00> : vector<16xf32>
    %249 = vector.multi_reduction <add>, %248, %cst_87 [1] : vector<16x16xf32> to vector<16xf32>
    %250 = vector.shape_cast %249 : vector<16xf32> to vector<16x1xf32>
    %251 = tpu.reciprocal %250 {approx = true} : vector<16x1xf32> -> vector<16x1xf32>
    %252 = vector.broadcast %251 : vector<16x1xf32> to vector<16x16xf32>
    %253 = arith.mulf %248, %252 : vector<16x16xf32>
    %254 = arith.truncf %253 : vector<16x16xf32> to vector<16x16xbf16>
    %cst_88 = arith.constant dense<0.000000e+00> : vector<16x32xf32>
    %255 = tpu.matmul %254, %240, %cst_88 {dimension_numbers = #tpu.dot_dimension_numbers<[1], [0], [0], [1], [0, 0, 1, 1], [], []>} : vector<16x16xbf16>, vector<16x32xbf16>, vector<16x32xf32> -> vector<16x32xf32>
    %256 = arith.truncf %255 : vector<16x32xf32> to vector<16x32xbf16>
    %257 = vector.extract_strided_slice %208 {offsets = [32, 0], sizes = [32, 128], strides = [1, 1]} : vector<128x128xbf16> to vector<32x128xbf16>
    %cst_89 = arith.constant dense<0.000000e+00> : vector<16x128xf32>
    %258 = tpu.matmul %256, %257, %cst_89 {dimension_numbers = #tpu.dot_dimension_numbers<[1], [0], [0], [1], [0, 0, 1, 1], [], []>} : vector<16x32xbf16>, vector<32x128xbf16>, vector<16x128xf32> -> vector<16x128xf32>
    %259 = arith.addf %234, %258 : vector<16x128xf32>
    %260 = vector.extract_strided_slice %204 {offsets = [0, 64], sizes = [16, 32], strides = [1, 1]} : vector<16x128xf32> to vector<16x32xf32>
    %261 = arith.truncf %260 : vector<16x32xf32> to vector<16x32xbf16>
    %262 = vector.extract_strided_slice %205 {offsets = [0, 64], sizes = [16, 32], strides = [1, 1]} : vector<16x128xf32> to vector<16x32xf32>
    %263 = arith.truncf %262 : vector<16x32xf32> to vector<16x32xbf16>
    %264 = vector.extract_strided_slice %206 {offsets = [0, 64], sizes = [16, 32], strides = [1, 1]} : vector<16x128xf32> to vector<16x32xf32>
    %265 = arith.truncf %264 : vector<16x32xf32> to vector<16x32xbf16>
    %cst_90 = arith.constant dense<0.000000e+00> : vector<16x16xf32>
    %266 = tpu.matmul %261, %263, %cst_90 {dimension_numbers = #tpu.dot_dimension_numbers<[1], [1], [0], [0], [0, 0, 1, 0], [], []>} : vector<16x32xbf16>, vector<16x32xbf16>, vector<16x16xf32> -> vector<16x16xf32>
    %267 = vector.broadcast %3 : vector<1x16xf32> to vector<16x16xf32>
    %268 = arith.addf %266, %267 : vector<16x16xf32>
    %cst_91 = arith.constant dense<0xFF800000> : vector<16xf32>
    %269 = vector.multi_reduction <maximumf>, %268, %cst_91 [1] : vector<16x16xf32> to vector<16xf32>
    %270 = vector.shape_cast %269 : vector<16xf32> to vector<16x1xf32>
    %271 = vector.broadcast %270 : vector<16x1xf32> to vector<16x16xf32>
    %272 = arith.subf %268, %271 : vector<16x16xf32>
    %273 = math.exp %272 : vector<16x16xf32>
    %cst_92 = arith.constant dense<0.000000e+00> : vector<16xf32>
    %274 = vector.multi_reduction <add>, %273, %cst_92 [1] : vector<16x16xf32> to vector<16xf32>
    %275 = vector.shape_cast %274 : vector<16xf32> to vector<16x1xf32>
    %276 = tpu.reciprocal %275 {approx = true} : vector<16x1xf32> -> vector<16x1xf32>
    %277 = vector.broadcast %276 : vector<16x1xf32> to vector<16x16xf32>
    %278 = arith.mulf %273, %277 : vector<16x16xf32>
    %279 = arith.truncf %278 : vector<16x16xf32> to vector<16x16xbf16>
    %cst_93 = arith.constant dense<0.000000e+00> : vector<16x32xf32>
    %280 = tpu.matmul %279, %265, %cst_93 {dimension_numbers = #tpu.dot_dimension_numbers<[1], [0], [0], [1], [0, 0, 1, 1], [], []>} : vector<16x16xbf16>, vector<16x32xbf16>, vector<16x32xf32> -> vector<16x32xf32>
    %281 = arith.truncf %280 : vector<16x32xf32> to vector<16x32xbf16>
    %282 = vector.extract_strided_slice %208 {offsets = [64, 0], sizes = [32, 128], strides = [1, 1]} : vector<128x128xbf16> to vector<32x128xbf16>
    %cst_94 = arith.constant dense<0.000000e+00> : vector<16x128xf32>
    %283 = tpu.matmul %281, %282, %cst_94 {dimension_numbers = #tpu.dot_dimension_numbers<[1], [0], [0], [1], [0, 0, 1, 1], [], []>} : vector<16x32xbf16>, vector<32x128xbf16>, vector<16x128xf32> -> vector<16x128xf32>
    %284 = arith.addf %259, %283 : vector<16x128xf32>
    %285 = vector.extract_strided_slice %204 {offsets = [0, 96], sizes = [16, 32], strides = [1, 1]} : vector<16x128xf32> to vector<16x32xf32>
    %286 = arith.truncf %285 : vector<16x32xf32> to vector<16x32xbf16>
    %287 = vector.extract_strided_slice %205 {offsets = [0, 96], sizes = [16, 32], strides = [1, 1]} : vector<16x128xf32> to vector<16x32xf32>
    %288 = arith.truncf %287 : vector<16x32xf32> to vector<16x32xbf16>
    %289 = vector.extract_strided_slice %206 {offsets = [0, 96], sizes = [16, 32], strides = [1, 1]} : vector<16x128xf32> to vector<16x32xf32>
    %290 = arith.truncf %289 : vector<16x32xf32> to vector<16x32xbf16>
    %cst_95 = arith.constant dense<0.000000e+00> : vector<16x16xf32>
    %291 = tpu.matmul %286, %288, %cst_95 {dimension_numbers = #tpu.dot_dimension_numbers<[1], [1], [0], [0], [0, 0, 1, 0], [], []>} : vector<16x32xbf16>, vector<16x32xbf16>, vector<16x16xf32> -> vector<16x16xf32>
    %292 = vector.broadcast %3 : vector<1x16xf32> to vector<16x16xf32>
    %293 = arith.addf %291, %292 : vector<16x16xf32>
    %cst_96 = arith.constant dense<0xFF800000> : vector<16xf32>
    %294 = vector.multi_reduction <maximumf>, %293, %cst_96 [1] : vector<16x16xf32> to vector<16xf32>
    %295 = vector.shape_cast %294 : vector<16xf32> to vector<16x1xf32>
    %296 = vector.broadcast %295 : vector<16x1xf32> to vector<16x16xf32>
    %297 = arith.subf %293, %296 : vector<16x16xf32>
    %298 = math.exp %297 : vector<16x16xf32>
    %cst_97 = arith.constant dense<0.000000e+00> : vector<16xf32>
    %299 = vector.multi_reduction <add>, %298, %cst_97 [1] : vector<16x16xf32> to vector<16xf32>
    %300 = vector.shape_cast %299 : vector<16xf32> to vector<16x1xf32>
    %301 = tpu.reciprocal %300 {approx = true} : vector<16x1xf32> -> vector<16x1xf32>
    %302 = vector.broadcast %301 : vector<16x1xf32> to vector<16x16xf32>
    %303 = arith.mulf %298, %302 : vector<16x16xf32>
    %304 = arith.truncf %303 : vector<16x16xf32> to vector<16x16xbf16>
    %cst_98 = arith.constant dense<0.000000e+00> : vector<16x32xf32>
    %305 = tpu.matmul %304, %290, %cst_98 {dimension_numbers = #tpu.dot_dimension_numbers<[1], [0], [0], [1], [0, 0, 1, 1], [], []>} : vector<16x16xbf16>, vector<16x32xbf16>, vector<16x32xf32> -> vector<16x32xf32>
    %306 = arith.truncf %305 : vector<16x32xf32> to vector<16x32xbf16>
    %307 = vector.extract_strided_slice %208 {offsets = [96, 0], sizes = [32, 128], strides = [1, 1]} : vector<128x128xbf16> to vector<32x128xbf16>
    %cst_99 = arith.constant dense<0.000000e+00> : vector<16x128xf32>
    %308 = tpu.matmul %306, %307, %cst_99 {dimension_numbers = #tpu.dot_dimension_numbers<[1], [0], [0], [1], [0, 0, 1, 1], [], []>} : vector<16x32xbf16>, vector<32x128xbf16>, vector<16x128xf32> -> vector<16x128xf32>
    %309 = arith.addf %284, %308 : vector<16x128xf32>
    %310 = arith.addf %179, %309 : vector<16x128xf32>
    %c1_100 = arith.constant 1 : index
    %c0_101 = arith.constant 0 : index
    %c0_102 = arith.constant 0 : index
    %311 = vector.load %arg6[%c1_100, %c0_101, %c0_102] : memref<2x1x128xf32, #tpu.memory_space<vmem>>, vector<1x1x128xf32>
    %312 = vector.shape_cast %311 : vector<1x1x128xf32> to vector<1x128xf32>
    %313 = vector.broadcast %312 : vector<1x128xf32> to vector<16x128xf32>
    %314 = arith.addf %310, %313 : vector<16x128xf32>
    %cst_103 = arith.constant dense<0.000000e+00> : vector<16xf32>
    %315 = vector.multi_reduction <add>, %314, %cst_103 [1] : vector<16x128xf32> to vector<16xf32>
    %316 = vector.shape_cast %315 : vector<16xf32> to vector<16x1xf32>
    %cst_104 = arith.constant 1.280000e+02 : f32
    %317 = vector.broadcast %cst_104 : f32 to vector<16x1xf32>
    %318 = arith.divf %316, %317 : vector<16x1xf32>
    %319 = vector.broadcast %318 : vector<16x1xf32> to vector<16x128xf32>
    %320 = arith.subf %314, %319 : vector<16x128xf32>
    %321 = arith.mulf %320, %320 : vector<16x128xf32>
    %cst_105 = arith.constant dense<0.000000e+00> : vector<16xf32>
    %322 = vector.multi_reduction <add>, %321, %cst_105 [1] : vector<16x128xf32> to vector<16xf32>
    %323 = vector.shape_cast %322 : vector<16xf32> to vector<16x1xf32>
    %cst_106 = arith.constant 1.280000e+02 : f32
    %324 = vector.broadcast %cst_106 : f32 to vector<16x1xf32>
    %325 = arith.divf %323, %324 : vector<16x1xf32>
    %cst_107 = arith.constant 9.99999974E-6 : f32
    %326 = vector.broadcast %cst_107 : f32 to vector<16x1xf32>
    %327 = arith.addf %325, %326 : vector<16x1xf32>
    %328 = math.rsqrt %327 : vector<16x1xf32>
    %329 = vector.broadcast %328 : vector<16x1xf32> to vector<16x128xf32>
    %330 = arith.mulf %320, %329 : vector<16x128xf32>
    %331 = arith.truncf %330 : vector<16x128xf32> to vector<16x128xbf16>
    %c1_108 = arith.constant 1 : index
    %c0_109 = arith.constant 0 : index
    %c0_110 = arith.constant 0 : index
    %332 = vector.load %arg7[%c1_108, %c0_109, %c0_110] : memref<2x128x256xbf16, #tpu.memory_space<vmem>>, vector<1x128x256xbf16>
    %333 = vector.shape_cast %332 : vector<1x128x256xbf16> to vector<128x256xbf16>
    %cst_111 = arith.constant dense<0.000000e+00> : vector<16x256xf32>
    %334 = tpu.matmul %331, %333, %cst_111 {dimension_numbers = #tpu.dot_dimension_numbers<[1], [0], [0], [1], [0, 0, 1, 1], [], []>} : vector<16x128xbf16>, vector<128x256xbf16>, vector<16x256xf32> -> vector<16x256xf32>
    %c1_112 = arith.constant 1 : index
    %c0_113 = arith.constant 0 : index
    %c0_114 = arith.constant 0 : index
    %335 = vector.load %arg8[%c1_112, %c0_113, %c0_114] : memref<2x1x256xf32, #tpu.memory_space<vmem>>, vector<1x1x256xf32>
    %336 = vector.shape_cast %335 : vector<1x1x256xf32> to vector<1x256xf32>
    %337 = vector.broadcast %336 : vector<1x256xf32> to vector<16x256xf32>
    %338 = arith.addf %334, %337 : vector<16x256xf32>
    %cst_115 = arith.constant 5.000000e-01 : f32
    %339 = vector.broadcast %cst_115 : f32 to vector<16x256xf32>
    %340 = arith.mulf %339, %338 : vector<16x256xf32>
    %cst_116 = arith.constant 0.707106769 : f32
    %341 = vector.broadcast %cst_116 : f32 to vector<16x256xf32>
    %342 = arith.mulf %338, %341 : vector<16x256xf32>
    %343 = math.erf %342 : vector<16x256xf32>
    %cst_117 = arith.constant 1.000000e+00 : f32
    %344 = vector.broadcast %cst_117 : f32 to vector<16x256xf32>
    %345 = arith.addf %344, %343 : vector<16x256xf32>
    %346 = arith.mulf %340, %345 : vector<16x256xf32>
    %347 = arith.truncf %346 : vector<16x256xf32> to vector<16x256xbf16>
    %c1_118 = arith.constant 1 : index
    %c0_119 = arith.constant 0 : index
    %c0_120 = arith.constant 0 : index
    %348 = vector.load %arg9[%c1_118, %c0_119, %c0_120] : memref<2x256x128xbf16, #tpu.memory_space<vmem>>, vector<1x256x128xbf16>
    %349 = vector.shape_cast %348 : vector<1x256x128xbf16> to vector<256x128xbf16>
    %cst_121 = arith.constant dense<0.000000e+00> : vector<16x128xf32>
    %350 = tpu.matmul %347, %349, %cst_121 {dimension_numbers = #tpu.dot_dimension_numbers<[1], [0], [0], [1], [0, 0, 1, 1], [], []>} : vector<16x256xbf16>, vector<256x128xbf16>, vector<16x128xf32> -> vector<16x128xf32>
    %c1_122 = arith.constant 1 : index
    %c0_123 = arith.constant 0 : index
    %c0_124 = arith.constant 0 : index
    %351 = vector.load %arg10[%c1_122, %c0_123, %c0_124] : memref<2x1x128xf32, #tpu.memory_space<vmem>>, vector<1x1x128xf32>
    %352 = vector.shape_cast %351 : vector<1x1x128xf32> to vector<1x128xf32>
    %353 = vector.broadcast %352 : vector<1x128xf32> to vector<16x128xf32>
    %354 = arith.addf %350, %353 : vector<16x128xf32>
    %355 = arith.addf %314, %354 : vector<16x128xf32>
    %cst_125 = arith.constant dense<0.000000e+00> : vector<16xf32>
    %356 = vector.multi_reduction <add>, %355, %cst_125 [1] : vector<16x128xf32> to vector<16xf32>
    %357 = vector.shape_cast %356 : vector<16xf32> to vector<16x1xf32>
    %cst_126 = arith.constant 1.280000e+02 : f32
    %358 = vector.broadcast %cst_126 : f32 to vector<16x1xf32>
    %359 = arith.divf %357, %358 : vector<16x1xf32>
    %360 = vector.broadcast %359 : vector<16x1xf32> to vector<16x128xf32>
    %361 = arith.subf %355, %360 : vector<16x128xf32>
    %362 = arith.mulf %361, %361 : vector<16x128xf32>
    %cst_127 = arith.constant dense<0.000000e+00> : vector<16xf32>
    %363 = vector.multi_reduction <add>, %362, %cst_127 [1] : vector<16x128xf32> to vector<16xf32>
    %364 = vector.shape_cast %363 : vector<16xf32> to vector<16x1xf32>
    %cst_128 = arith.constant 1.280000e+02 : f32
    %365 = vector.broadcast %cst_128 : f32 to vector<16x1xf32>
    %366 = arith.divf %364, %365 : vector<16x1xf32>
    %cst_129 = arith.constant 9.99999974E-6 : f32
    %367 = vector.broadcast %cst_129 : f32 to vector<16x1xf32>
    %368 = arith.addf %366, %367 : vector<16x1xf32>
    %369 = math.rsqrt %368 : vector<16x1xf32>
    %370 = vector.broadcast %369 : vector<16x1xf32> to vector<16x128xf32>
    %371 = arith.mulf %361, %370 : vector<16x128xf32>
    %c0_130 = arith.constant 0 : index
    %c0_131 = arith.constant 0 : index
    %372 = vector.load %arg11[%c0_130, %c0_131] : memref<1x128xf32, #tpu.memory_space<vmem>>, vector<1x128xf32>
    %373 = vector.broadcast %372 : vector<1x128xf32> to vector<16x128xf32>
    %374 = arith.mulf %371, %373 : vector<16x128xf32>
    %c0_132 = arith.constant 0 : index
    %c0_133 = arith.constant 0 : index
    %375 = vector.load %arg12[%c0_132, %c0_133] : memref<1x128xf32, #tpu.memory_space<vmem>>, vector<1x128xf32>
    %376 = vector.broadcast %375 : vector<1x128xf32> to vector<16x128xf32>
    %377 = arith.addf %374, %376 : vector<16x128xf32>
    %c0_134 = arith.constant 0 : index
    %c0_135 = arith.constant 0 : index
    %c0_136 = arith.constant 0 : index
    %378 = vector.load %arg14[%c0_134, %c0_135, %c0_136] : memref<1x16x128xf32, #tpu.memory_space<vmem>>, vector<1x16x128xf32>
    %379 = vector.shape_cast %378 : vector<1x16x128xf32> to vector<16x128xf32>
    %380 = vector.shape_cast %377 : vector<16x128xf32> to vector<1x16x128xf32>
    tpu.vector_store %arg14[%c0_134, %c0_135, %c0_136], %380 {strides = array<i32>} : memref<1x16x128xf32, #tpu.memory_space<vmem>>, vector<1x16x128xf32>,
    %381 = arith.truncf %377 : vector<16x128xf32> to vector<16x128xbf16>
    %c0_137 = arith.constant 0 : index
    %c0_138 = arith.constant 0 : index
    %382 = vector.load %arg13[%c0_137, %c0_138] : memref<128x256xbf16, #tpu.memory_space<vmem>>, vector<128x256xbf16>
    %cst_139 = arith.constant dense<0.000000e+00> : vector<16x256xf32>
    %383 = tpu.matmul %381, %382, %cst_139 {dimension_numbers = #tpu.dot_dimension_numbers<[1], [0], [0], [1], [0, 0, 1, 1], [], []>} : vector<16x128xbf16>, vector<128x256xbf16>, vector<16x256xf32> -> vector<16x256xf32>
    %c0_140 = arith.constant 0 : index
    %c0_141 = arith.constant 0 : index
    %c0_142 = arith.constant 0 : index
    %384 = vector.load %arg15[%c0_140, %c0_141, %c0_142] : memref<1x16x256xf32, #tpu.memory_space<vmem>>, vector<1x16x256xf32>
    %385 = vector.shape_cast %384 : vector<1x16x256xf32> to vector<16x256xf32>
    %386 = vector.shape_cast %383 : vector<16x256xf32> to vector<1x16x256xf32>
    tpu.vector_store %arg15[%c0_140, %c0_141, %c0_142], %386 {strides = array<i32>} : memref<1x16x256xf32, #tpu.memory_space<vmem>>, vector<1x16x256xf32>,
    return
  }
  func.func @transform_0(%arg0: i32) -> (i32, i32, i32) {
    %c0_i32 = arith.constant 0 : i32
    %c0_i32_0 = arith.constant 0 : i32
    %c0_i32_1 = arith.constant 0 : i32
    return %arg0, %c0_i32, %c0_i32_0 : i32, i32, i32
  }
  func.func @transform_1(%arg0: i32) -> (i32, i32, i32) {
    %c0_i32 = arith.constant 0 : i32
    %c0_i32_0 = arith.constant 0 : i32
    %c0_i32_1 = arith.constant 0 : i32
    return %arg0, %c0_i32, %c0_i32_0 : i32, i32, i32
  }
  func.func @transform_2(%arg0: i32) -> (i32, i32, i32) {
    %c0_i32 = arith.constant 0 : i32
    %c0_i32_0 = arith.constant 0 : i32
    %c0_i32_1 = arith.constant 0 : i32
    %c0_i32_2 = arith.constant 0 : i32
    return %c0_i32, %c0_i32_0, %c0_i32_1 : i32, i32, i32
  }
  func.func @transform_3(%arg0: i32) -> (i32, i32, i32) {
    %c0_i32 = arith.constant 0 : i32
    %c0_i32_0 = arith.constant 0 : i32
    %c0_i32_1 = arith.constant 0 : i32
    %c0_i32_2 = arith.constant 0 : i32
    return %c0_i32, %c0_i32_0, %c0_i32_1 : i32, i32, i32
  }
  func.func @transform_4(%arg0: i32) -> (i32, i32, i32) {
    %c0_i32 = arith.constant 0 : i32
    %c0_i32_0 = arith.constant 0 : i32
    %c0_i32_1 = arith.constant 0 : i32
    %c0_i32_2 = arith.constant 0 : i32
    return %c0_i32, %c0_i32_0, %c0_i32_1 : i32, i32, i32
  }
  func.func @transform_5(%arg0: i32) -> (i32, i32, i32) {
    %c0_i32 = arith.constant 0 : i32
    %c0_i32_0 = arith.constant 0 : i32
    %c0_i32_1 = arith.constant 0 : i32
    %c0_i32_2 = arith.constant 0 : i32
    return %c0_i32, %c0_i32_0, %c0_i32_1 : i32, i32, i32
  }
  func.func @transform_6(%arg0: i32) -> (i32, i32, i32) {
    %c0_i32 = arith.constant 0 : i32
    %c0_i32_0 = arith.constant 0 : i32
    %c0_i32_1 = arith.constant 0 : i32
    %c0_i32_2 = arith.constant 0 : i32
    return %c0_i32, %c0_i32_0, %c0_i32_1 : i32, i32, i32
  }
  func.func @transform_7(%arg0: i32) -> (i32, i32, i32) {
    %c0_i32 = arith.constant 0 : i32
    %c0_i32_0 = arith.constant 0 : i32
    %c0_i32_1 = arith.constant 0 : i32
    %c0_i32_2 = arith.constant 0 : i32
    return %c0_i32, %c0_i32_0, %c0_i32_1 : i32, i32, i32
  }
  func.func @transform_8(%arg0: i32) -> (i32, i32, i32) {
    %c0_i32 = arith.constant 0 : i32
    %c0_i32_0 = arith.constant 0 : i32
    %c0_i32_1 = arith.constant 0 : i32
    %c0_i32_2 = arith.constant 0 : i32
    return %c0_i32, %c0_i32_0, %c0_i32_1 : i32, i32, i32
  }
  func.func @transform_9(%arg0: i32) -> (i32, i32, i32) {
    %c0_i32 = arith.constant 0 : i32
    %c0_i32_0 = arith.constant 0 : i32
    %c0_i32_1 = arith.constant 0 : i32
    %c0_i32_2 = arith.constant 0 : i32
    return %c0_i32, %c0_i32_0, %c0_i32_1 : i32, i32, i32
  }
  func.func @transform_10(%arg0: i32) -> (i32, i32) {
    %c0_i32 = arith.constant 0 : i32
    %c0_i32_0 = arith.constant 0 : i32
    %c0_i32_1 = arith.constant 0 : i32
    return %c0_i32, %c0_i32_0 : i32, i32
  }
  func.func @transform_11(%arg0: i32) -> (i32, i32) {
    %c0_i32 = arith.constant 0 : i32
    %c0_i32_0 = arith.constant 0 : i32
    %c0_i32_1 = arith.constant 0 : i32
    return %c0_i32, %c0_i32_0 : i32, i32
  }
  func.func @transform_12(%arg0: i32) -> (i32, i32) {
    %c0_i32 = arith.constant 0 : i32
    %c0_i32_0 = arith.constant 0 : i32
    %c0_i32_1 = arith.constant 0 : i32
    return %c0_i32, %c0_i32_0 : i32, i32
  }
  func.func @transform_13(%arg0: i32) -> (i32, i32, i32) {
    %c0_i32 = arith.constant 0 : i32
    %c0_i32_0 = arith.constant 0 : i32
    %c0_i32_1 = arith.constant 0 : i32
    return %arg0, %c0_i32, %c0_i32_0 : i32, i32, i32
  }
  func.func @transform_14(%arg0: i32) -> (i32, i32, i32) {
    %c0_i32 = arith.constant 0 : i32
    %c0_i32_0 = arith.constant 0 : i32
    %c0_i32_1 = arith.constant 0 : i32
    return %arg0, %c0_i32, %c0_i32_0 : i32, i32, i32
  }
}

</mosaic_0001>

<llo_original>
// kernel: museformer_forward.1
$region0: #{museformer_forward.1}
  #allocation0 [shape = 'u32[]', space=smem, size = 0x4, offset = 0x4, fixed_abs, tag = 'smem constant byte address 0x4 - core index']
  #allocation1 [shape = 'u32[144,128]{1,0:T(1,128)}', space=vmem, size = 0x12000, scoped, tag = 'internal scratch']
  %s0 = inlined_call_operand.vmem [shape: f32[2,16,128], index: 0, kind: input, shape index: {}]
  %s1 = inlined_call_operand.vmem [shape: f32[2,1,16], index: 1, kind: input, shape index: {}]
  %s2 = inlined_call_operand.vmem [shape: bf16[2,128,384], index: 2, kind: input, shape index: {}]
  %s3 = inlined_call_operand.vmem [shape: f32[2,1,384], index: 3, kind: input, shape index: {}]
  %s4 = inlined_call_operand.hbm [shape: bf16[2,128,128], index: 4, kind: input, shape index: {}]
  %s5 = inlined_call_operand.vmem [shape: f32[2,1,128], index: 5, kind: input, shape index: {}]
  %s6 = inlined_call_operand.vmem [shape: bf16[2,128,256], index: 6, kind: input, shape index: {}]
  %s7 = inlined_call_operand.vmem [shape: f32[2,1,256], index: 7, kind: input, shape index: {}]
  %s8 = inlined_call_operand.vmem [shape: bf16[2,256,128], index: 8, kind: input, shape index: {}]
  %s9 = inlined_call_operand.vmem [shape: f32[2,1,128], index: 9, kind: input, shape index: {}]
  %s10 = inlined_call_operand.vmem [shape: f32[1,128], index: 10, kind: input, shape index: {}]
  %s11 = inlined_call_operand.vmem [shape: f32[1,128], index: 11, kind: input, shape index: {}]
  %s12 = inlined_call_operand.hbm [shape: bf16[128,256], index: 12, kind: input, shape index: {}]
  %s13 = inlined_call_operand.hbm [shape: f32[2,16,128], index: 13, kind: output, shape index: {0}]
  %s14 = inlined_call_operand.hbm [shape: f32[2,16,256], index: 14, kind: output, shape index: {1}]
  %15 = xla_tuple %s13, %s14
  %s16 = sld [smem:[#allocation0]]
  $region101: #{museformer_forward.1} parent=0
    _
  %s18 = ssub.s32 1, %s16
  %s19 = scalar_select 0, %s18, %s16
  $region1: #{museformer_forward.1} parent=0
    #allocation2 [shape = 'u8[65536]{0}', space=vmem, size = 0x10000, scoped, tag = 'input window, operand 4, single buffered']
    #allocation3 [shape = 's32[2]{0}', space=sflag, size = 0x8, scoped, tag = 'scoped memory for museformer_forward.1']
    #allocation4 [shape = 's32[2]{0}', space=sflag, size = 0x8, scoped, tag = 'scoped memory for museformer_forward.1']
    #allocation5 [shape = 'u8[65536]{0}', space=vmem, size = 0x10000, scoped, tag = 'input window, operand 12, single buffered']
    #allocation6 [shape = 's32[1]{0}', space=sflag, size = 0x4, scoped, tag = 'scoped memory for museformer_forward.1']
    #allocation7 [shape = 'u8[16384]{0}', space=vmem, size = 0x4000, scoped, tag = 'output window, operand 0']
    #allocation8 [shape = 'u8[32768]{0}', space=vmem, size = 0x8000, scoped, tag = 'output window, operand 1']
    #allocation9 [shape = 's32[2]{0}', space=sflag, size = 0x8, scoped, tag = 'scoped memory for museformer_forward.1']
    %20 = vsyncpa [#allocation3], 0
    %21 = vsyncpa [#allocation6], 0
    %22 = vsyncpa [#allocation4], 0
    %s23 = scalar_lea.sflag [#allocation4], 1
    %24 = vsyncpa %s23, 0
    %25 = vsyncpa [#allocation9], 0
    %s26 = scalar_lea.sflag [#allocation9], 1
    %27 = vsyncpa %s26, 0
    loop: start=0, step=1, limit=4
    $region2: #{museformer_forward.1} parent=1 // loop_pre_header
      _
    $region3: #{museformer_forward.1} parent=1 // loop_header
      %s29 = sphi 0, %s33
      %p30 = scmp.ge.s32.totalorder %s29, 4
      %s39 = sphi 0, %s41
      %s42 = sphi 0, %s39
      %s43 = sphi 0, %s42
      %s59 = sphi 0, %s43
      %s65 = sphi 0, %s67
      %s68 = sphi 0, %s65
      %s69 = sphi 0, %s68
      %s85 = sphi 0, %s69
      %s89 = sphi 0, %s89
      %s91 = sphi 0, %s89
      %s92 = sphi 0, %s91
      %s106 = sphi 0, %s92
      %s110 = sphi 0, %s110
      %s112 = sphi 0, %s110
      %s113 = sphi 0, %s112
      %s127 = sphi 0, %s113
      %s131 = sphi 0, %s131
      %s133 = sphi 0, %s131
      %s134 = sphi 0, %s133
      %s148 = sphi 0, %s134
      %s152 = sphi 0, %s152
      %s154 = sphi 0, %s152
      %s155 = sphi 0, %s154
      %s169 = sphi 0, %s155
      %s173 = sphi 0, %s173
      %s175 = sphi 0, %s173
      %s176 = sphi 0, %s175
      %s190 = sphi 0, %s176
      %s194 = sphi 0, %s194
      %s196 = sphi 0, %s194
      %s197 = sphi 0, %s196
      %s211 = sphi 0, %s197
      %s215 = sphi 0, %s215
      %s217 = sphi 0, %s215
      %s218 = sphi 0, %s217
      %s232 = sphi 0, %s218
      %s236 = sphi 0, %s236
      %s238 = sphi 0, %s236
      %s239 = sphi 0, %s238
      %s253 = sphi 0, %s239
      %s257 = sphi 0, %s257
      %s259 = sphi 0, %s257
      %s260 = sphi 0, %s259
      %s274 = sphi 0, %s260
      %s278 = sphi 0, %s278
      %s280 = sphi 0, %s278
      %s281 = sphi 0, %s280
      %s295 = sphi 0, %s281
      %s299 = sphi 0, %s299
      %s301 = sphi 0, %s299
      %s302 = sphi 0, %s301
      %s316 = sphi 0, %s302
      %s322 = sphi 0, %s324
      %s325 = sphi 0, %s322
      %s326 = sphi 0, %s325
      %s342 = sphi 0, %s326
      %s348 = sphi 0, %s350
      %s351 = sphi 0, %s348
      %s352 = sphi 0, %s351
      %s368 = sphi 0, %s352
    $region4: #{museformer_forward.1} parent=1 // loop_header_branch
      %32 = sbr.rel (%p30) target = $region8
    $region5: #{museformer_forward.1} parent=1 // loop_body
      %s34 = ssub.s32 %s29, 1
      %s35 = ssub.s32 %s29, 2
      %s36 = sadd.s32 %s29, 1
      %s37 = ssub.s32 %s29, %s36
      %p38 = scmp.eq.s32.totalorder %s37, 0
      %s40 = sadd.s32 %s39, 1
      %s41 = scalar_select %p38, %s39, %s40
      %p44 = pneg %p38
      %p45 = scmp.eq.s32.totalorder %s29, 1
      %p46 = por %p44, %p45
      %p47 = scmp.ne.s32.totalorder %s39, %s42
      %p48 = scmp.eq.s32.totalorder %s29, 0
      %p49 = por %p47, %p48
      %p50 = scmp.ne.s32.totalorder %s39, %s42
      %p51 = scmp.eq.s32.totalorder %s34, 1
      %p52 = por %p50, %p51
      %p53 = scmp.ne.s32.totalorder %s42, %s43
      %p54 = scmp.eq.s32.totalorder %s34, 0
      %p55 = por %p53, %p54
      %p56 = scmp.ne.s32.totalorder %s42, %s43
      %p57 = scmp.eq.s32.totalorder %s35, 1
      %p58 = por %p56, %p57
      %p60 = scmp.ne.s32.totalorder %s43, %s59
      %p61 = scmp.eq.s32.totalorder %s35, 0
      %p62 = por %p60, %p61
      %s63 = ssub.s32 %s29, %s36
      %p64 = scmp.eq.s32.totalorder %s63, 0
      %s66 = sadd.s32 %s65, 1
      %s67 = scalar_select %p64, %s65, %s66
      %p70 = pneg %p64
      %p71 = scmp.eq.s32.totalorder %s29, 1
      %p72 = por %p70, %p71
      %p73 = scmp.ne.s32.totalorder %s65, %s68
      %p74 = scmp.eq.s32.totalorder %s29, 0
      %p75 = por %p73, %p74
      %p76 = scmp.ne.s32.totalorder %s65, %s68
      %p77 = scmp.eq.s32.totalorder %s34, 1
      %p78 = por %p76, %p77
      %p79 = scmp.ne.s32.totalorder %s68, %s69
      %p80 = scmp.eq.s32.totalorder %s34, 0
      %p81 = por %p79, %p80
      %p82 = scmp.ne.s32.totalorder %s68, %s69
      %p83 = scmp.eq.s32.totalorder %s35, 1
      %p84 = por %p82, %p83
      %p86 = scmp.ne.s32.totalorder %s69, %s85
      %p87 = scmp.eq.s32.totalorder %s35, 0
      %p88 = por %p86, %p87
      %s90 = sadd.s32 %s89, 1
      %p93 = scmp.eq.s32.totalorder %s29, 1
      %p94 = scmp.ne.s32.totalorder %s89, %s91
      %p95 = scmp.eq.s32.totalorder %s29, 0
      %p96 = por %p94, %p95
      %p97 = scmp.ne.s32.totalorder %s89, %s91
      %p98 = scmp.eq.s32.totalorder %s34, 1
      %p99 = por %p97, %p98
      %p100 = scmp.ne.s32.totalorder %s91, %s92
      %p101 = scmp.eq.s32.totalorder %s34, 0
      %p102 = por %p100, %p101
      %p103 = scmp.ne.s32.totalorder %s91, %s92
      %p104 = scmp.eq.s32.totalorder %s35, 1
      %p105 = por %p103, %p104
      %p107 = scmp.ne.s32.totalorder %s92, %s106
      %p108 = scmp.eq.s32.totalorder %s35, 0
      %p109 = por %p107, %p108
      %s111 = sadd.s32 %s110, 1
      %p114 = scmp.eq.s32.totalorder %s29, 1
      %p115 = scmp.ne.s32.totalorder %s110, %s112
      %p116 = scmp.eq.s32.totalorder %s29, 0
      %p117 = por %p115, %p116
      %p118 = scmp.ne.s32.totalorder %s110, %s112
      %p119 = scmp.eq.s32.totalorder %s34, 1
      %p120 = por %p118, %p119
      %p121 = scmp.ne.s32.totalorder %s112, %s113
      %p122 = scmp.eq.s32.totalorder %s34, 0
      %p123 = por %p121, %p122
      %p124 = scmp.ne.s32.totalorder %s112, %s113
      %p125 = scmp.eq.s32.totalorder %s35, 1
      %p126 = por %p124, %p125
      %p128 = scmp.ne.s32.totalorder %s113, %s127
      %p129 = scmp.eq.s32.totalorder %s35, 0
      %p130 = por %p128, %p129
      %s132 = sadd.s32 %s131, 1
      %p135 = scmp.eq.s32.totalorder %s29, 1
      %p136 = scmp.ne.s32.totalorder %s131, %s133
      %p137 = scmp.eq.s32.totalorder %s29, 0
      %p138 = por %p136, %p137
      %p139 = scmp.ne.s32.totalorder %s131, %s133
      %p140 = scmp.eq.s32.totalorder %s34, 1
      %p141 = por %p139, %p140
      %p142 = scmp.ne.s32.totalorder %s133, %s134
      %p143 = scmp.eq.s32.totalorder %s34, 0
      %p144 = por %p142, %p143
      %p145 = scmp.ne.s32.totalorder %s133, %s134
      %p146 = scmp.eq.s32.totalorder %s35, 1
      %p147 = por %p145, %p146
      %p149 = scmp.ne.s32.totalorder %s134, %s148
      %p150 = scmp.eq.s32.totalorder %s35, 0
      %p151 = por %p149, %p150
      %s153 = sadd.s32 %s152, 1
      %p156 = scmp.eq.s32.totalorder %s29, 1
      %p157 = scmp.ne.s32.totalorder %s152, %s154
      %p158 = scmp.eq.s32.totalorder %s29, 0
      %p159 = por %p157, %p158
      %p160 = scmp.ne.s32.totalorder %s152, %s154
      %p161 = scmp.eq.s32.totalorder %s34, 1
      %p162 = por %p160, %p161
      %p163 = scmp.ne.s32.totalorder %s154, %s155
      %p164 = scmp.eq.s32.totalorder %s34, 0
      %p165 = por %p163, %p164
      %p166 = scmp.ne.s32.totalorder %s154, %s155
      %p167 = scmp.eq.s32.totalorder %s35, 1
      %p168 = por %p166, %p167
      %p170 = scmp.ne.s32.totalorder %s155, %s169
      %p171 = scmp.eq.s32.totalorder %s35, 0
      %p172 = por %p170, %p171
      %s174 = sadd.s32 %s173, 1
      %p177 = scmp.eq.s32.totalorder %s29, 1
      %p178 = scmp.ne.s32.totalorder %s173, %s175
      %p179 = scmp.eq.s32.totalorder %s29, 0
      %p180 = por %p178, %p179
      %p181 = scmp.ne.s32.totalorder %s173, %s175
      %p182 = scmp.eq.s32.totalorder %s34, 1
      %p183 = por %p181, %p182
      %p184 = scmp.ne.s32.totalorder %s175, %s176
      %p185 = scmp.eq.s32.totalorder %s34, 0
      %p186 = por %p184, %p185
      %p187 = scmp.ne.s32.totalorder %s175, %s176
      %p188 = scmp.eq.s32.totalorder %s35, 1
      %p189 = por %p187, %p188
      %p191 = scmp.ne.s32.totalorder %s176, %s190
      %p192 = scmp.eq.s32.totalorder %s35, 0
      %p193 = por %p191, %p192
      %s195 = sadd.s32 %s194, 1
      %p198 = scmp.eq.s32.totalorder %s29, 1
      %p199 = scmp.ne.s32.totalorder %s194, %s196
      %p200 = scmp.eq.s32.totalorder %s29, 0
      %p201 = por %p199, %p200
      %p202 = scmp.ne.s32.totalorder %s194, %s196
      %p203 = scmp.eq.s32.totalorder %s34, 1
      %p204 = por %p202, %p203
      %p205 = scmp.ne.s32.totalorder %s196, %s197
      %p206 = scmp.eq.s32.totalorder %s34, 0
      %p207 = por %p205, %p206
      %p208 = scmp.ne.s32.totalorder %s196, %s197
      %p209 = scmp.eq.s32.totalorder %s35, 1
      %p210 = por %p208, %p209
      %p212 = scmp.ne.s32.totalorder %s197, %s211
      %p213 = scmp.eq.s32.totalorder %s35, 0
      %p214 = por %p212, %p213
      %s216 = sadd.s32 %s215, 1
      %p219 = scmp.eq.s32.totalorder %s29, 1
      %p220 = scmp.ne.s32.totalorder %s215, %s217
      %p221 = scmp.eq.s32.totalorder %s29, 0
      %p222 = por %p220, %p221
      %p223 = scmp.ne.s32.totalorder %s215, %s217
      %p224 = scmp.eq.s32.totalorder %s34, 1
      %p225 = por %p223, %p224
      %p226 = scmp.ne.s32.totalorder %s217, %s218
      %p227 = scmp.eq.s32.totalorder %s34, 0
      %p228 = por %p226, %p227
      %p229 = scmp.ne.s32.totalorder %s217, %s218
      %p230 = scmp.eq.s32.totalorder %s35, 1
      %p231 = por %p229, %p230
      %p233 = scmp.ne.s32.totalorder %s218, %s232
      %p234 = scmp.eq.s32.totalorder %s35, 0
      %p235 = por %p233, %p234
      %s237 = sadd.s32 %s236, 1
      %p240 = scmp.eq.s32.totalorder %s29, 1
      %p241 = scmp.ne.s32.totalorder %s236, %s238
      %p242 = scmp.eq.s32.totalorder %s29, 0
      %p243 = por %p241, %p242
      %p244 = scmp.ne.s32.totalorder %s236, %s238
      %p245 = scmp.eq.s32.totalorder %s34, 1
      %p246 = por %p244, %p245
      %p247 = scmp.ne.s32.totalorder %s238, %s239
      %p248 = scmp.eq.s32.totalorder %s34, 0
      %p249 = por %p247, %p248
      %p250 = scmp.ne.s32.totalorder %s238, %s239
      %p251 = scmp.eq.s32.totalorder %s35, 1
      %p252 = por %p250, %p251
      %p254 = scmp.ne.s32.totalorder %s239, %s253
      %p255 = scmp.eq.s32.totalorder %s35, 0
      %p256 = por %p254, %p255
      %s258 = sadd.s32 %s257, 1
      %p261 = scmp.eq.s32.totalorder %s29, 1
      %p262 = scmp.ne.s32.totalorder %s257, %s259
      %p263 = scmp.eq.s32.totalorder %s29, 0
      %p264 = por %p262, %p263
      %p265 = scmp.ne.s32.totalorder %s257, %s259
      %p266 = scmp.eq.s32.totalorder %s34, 1
      %p267 = por %p265, %p266
      %p268 = scmp.ne.s32.totalorder %s259, %s260
      %p269 = scmp.eq.s32.totalorder %s34, 0
      %p270 = por %p268, %p269
      %p271 = scmp.ne.s32.totalorder %s259, %s260
      %p272 = scmp.eq.s32.totalorder %s35, 1
      %p273 = por %p271, %p272
      %p275 = scmp.ne.s32.totalorder %s260, %s274
      %p276 = scmp.eq.s32.totalorder %s35, 0
      %p277 = por %p275, %p276
      %s279 = sadd.s32 %s278, 1
      %p282 = scmp.eq.s32.totalorder %s29, 1
      %p283 = scmp.ne.s32.totalorder %s278, %s280
      %p284 = scmp.eq.s32.totalorder %s29, 0
      %p285 = por %p283, %p284
      %p286 = scmp.ne.s32.totalorder %s278, %s280
      %p287 = scmp.eq.s32.totalorder %s34, 1
      %p288 = por %p286, %p287
      %p289 = scmp.ne.s32.totalorder %s280, %s281
      %p290 = scmp.eq.s32.totalorder %s34, 0
      %p291 = por %p289, %p290
      %p292 = scmp.ne.s32.totalorder %s280, %s281
      %p293 = scmp.eq.s32.totalorder %s35, 1
      %p294 = por %p292, %p293
      %p296 = scmp.ne.s32.totalorder %s281, %s295
      %p297 = scmp.eq.s32.totalorder %s35, 0
      %p298 = por %p296, %p297
      %s300 = sadd.s32 %s299, 1
      %p303 = scmp.eq.s32.totalorder %s29, 1
      %p304 = scmp.ne.s32.totalorder %s299, %s301
      %p305 = scmp.eq.s32.totalorder %s29, 0
      %p306 = por %p304, %p305
      %p307 = scmp.ne.s32.totalorder %s299, %s301
      %p308 = scmp.eq.s32.totalorder %s34, 1
      %p309 = por %p307, %p308
      %p310 = scmp.ne.s32.totalorder %s301, %s302
      %p311 = scmp.eq.s32.totalorder %s34, 0
      %p312 = por %p310, %p311
      %p313 = scmp.ne.s32.totalorder %s301, %s302
      %p314 = scmp.eq.s32.totalorder %s35, 1
      %p315 = por %p313, %p314
      %p317 = scmp.ne.s32.totalorder %s302, %s316
      %p318 = scmp.eq.s32.totalorder %s35, 0
      %p319 = por %p317, %p318
      %s320 = ssub.s32 %s29, %s36
      %p321 = scmp.eq.s32.totalorder %s320, 0
      %s323 = sadd.s32 %s322, 1
      %s324 = scalar_select %p321, %s322, %s323
      %p327 = pneg %p321
      %p328 = scmp.eq.s32.totalorder %s29, 1
      %p329 = por %p327, %p328
      %p330 = scmp.ne.s32.totalorder %s322, %s325
      %p331 = scmp.eq.s32.totalorder %s29, 0
      %p332 = por %p330, %p331
      %p333 = scmp.ne.s32.totalorder %s322, %s325
      %p334 = scmp.eq.s32.totalorder %s34, 1
      %p335 = por %p333, %p334
      %p336 = scmp.ne.s32.totalorder %s325, %s326
      %p337 = scmp.eq.s32.totalorder %s34, 0
      %p338 = por %p336, %p337
      %p339 = scmp.ne.s32.totalorder %s325, %s326
      %p340 = scmp.eq.s32.totalorder %s35, 1
      %p341 = por %p339, %p340
      %p343 = scmp.ne.s32.totalorder %s326, %s342
      %p344 = scmp.eq.s32.totalorder %s35, 0
      %p345 = por %p343, %p344
      %s346 = ssub.s32 %s29, %s36
      %p347 = scmp.eq.s32.totalorder %s346, 0
      %s349 = sadd.s32 %s348, 1
      %s350 = scalar_select %p347, %s348, %s349
      %p353 = pneg %p347
      %p354 = scmp.eq.s32.totalorder %s29, 1
      %p355 = por %p353, %p354
      %p356 = scmp.ne.s32.totalorder %s348, %s351
      %p357 = scmp.eq.s32.totalorder %s29, 0
      %p358 = por %p356, %p357
      %p359 = scmp.ne.s32.totalorder %s348, %s351
      %p360 = scmp.eq.s32.totalorder %s34, 1
      %p361 = por %p359, %p360
      %p362 = scmp.ne.s32.totalorder %s351, %s352
      %p363 = scmp.eq.s32.totalorder %s34, 0
      %p364 = por %p362, %p363
      %p365 = scmp.ne.s32.totalorder %s351, %s352
      %p366 = scmp.eq.s32.totalorder %s35, 1
      %p367 = por %p365, %p366
      %p369 = scmp.ne.s32.totalorder %s352, %s368
      %p370 = scmp.eq.s32.totalorder %s35, 0
      %p371 = por %p369, %p370
      %p372 = scmp.le.s32.totalorder 1, %s29
      %p373 = scmp.lt.s32.totalorder %s29, 3
      %p374 = pnand %p372, %p373
      %p375 = pneg %p374
      // Predicated region
      $region9: #{museformer_forward.1} parent=5 // pred_check
        _
      $region10: #{museformer_forward.1} parent=5 // pred_check_branch
        %377 = sbr.rel (%p374) target = $region12
      $region11: #{museformer_forward.1} parent=5 // pred_region
        %s378 = ssub.s32 %s29, 1
        // Predicated region
        $region13: #{museformer_forward.1} parent=11 // pred_check
          %p379 = pneg %p102
        $region14: #{museformer_forward.1} parent=11 // pred_check_branch
          %381 = sbr.rel (%p379) target = $region16
        $region15: #{museformer_forward.1} parent=11 // pred_region
          _
        $region16: #{museformer_forward.1} parent=11 // pred_fallthru
          _
        // Predicated region
        $region17: #{museformer_forward.1} parent=11 // pred_check
          %p382 = pneg %p123
        $region18: #{museformer_forward.1} parent=11 // pred_check_branch
          %384 = sbr.rel (%p382) target = $region20
        $region19: #{museformer_forward.1} parent=11 // pred_region
          _
        $region20: #{museformer_forward.1} parent=11 // pred_fallthru
          _
        // Predicated region
        $region21: #{museformer_forward.1} parent=11 // pred_check
          %p385 = pneg %p144
        $region22: #{museformer_forward.1} parent=11 // pred_check_branch
          %387 = sbr.rel (%p385) target = $region24
        $region23: #{museformer_forward.1} parent=11 // pred_region
          %s389 = ssub.s32 2048, 2048
          %390 = vsyncadd [#allocation3], %s389
          %s391 = sshll.u32 [#allocation2], 4
          %s392 = int_to_ptr.vmem [resolvable:$true] %s391
          %397 = dma.hbm_to_vmem [thread:$0]  %s4, 2048, %s392, [#allocation3], 64, 64, 4
        $region24: #{museformer_forward.1} parent=11 // pred_fallthru
          _
        // Predicated region
        $region25: #{museformer_forward.1} parent=11 // pred_check
          %p398 = pneg %p165
        $region26: #{museformer_forward.1} parent=11 // pred_check_branch
          %400 = sbr.rel (%p398) target = $region28
        $region27: #{museformer_forward.1} parent=11 // pred_region
          _
        $region28: #{museformer_forward.1} parent=11 // pred_fallthru
          _
        // Predicated region
        $region29: #{museformer_forward.1} parent=11 // pred_check
          %p401 = pneg %p186
        $region30: #{museformer_forward.1} parent=11 // pred_check_branch
          %403 = sbr.rel (%p401) target = $region32
        $region31: #{museformer_forward.1} parent=11 // pred_region
          _
        $region32: #{museformer_forward.1} parent=11 // pred_fallthru
          _
        // Predicated region
        $region33: #{museformer_forward.1} parent=11 // pred_check
          %p404 = pneg %p207
        $region34: #{museformer_forward.1} parent=11 // pred_check_branch
          %406 = sbr.rel (%p404) target = $region36
        $region35: #{museformer_forward.1} parent=11 // pred_region
          _
        $region36: #{museformer_forward.1} parent=11 // pred_fallthru
          _
        // Predicated region
        $region37: #{museformer_forward.1} parent=11 // pred_check
          %p407 = pneg %p228
        $region38: #{museformer_forward.1} parent=11 // pred_check_branch
          %409 = sbr.rel (%p407) target = $region40
        $region39: #{museformer_forward.1} parent=11 // pred_region
          _
        $region40: #{museformer_forward.1} parent=11 // pred_fallthru
          _
        // Predicated region
        $region41: #{museformer_forward.1} parent=11 // pred_check
          %p410 = pneg %p249
        $region42: #{museformer_forward.1} parent=11 // pred_check_branch
          %412 = sbr.rel (%p410) target = $region44
        $region43: #{museformer_forward.1} parent=11 // pred_region
          _
        $region44: #{museformer_forward.1} parent=11 // pred_fallthru
          _
        // Predicated region
        $region45: #{museformer_forward.1} parent=11 // pred_check
          %p413 = pneg %p270
        $region46: #{museformer_forward.1} parent=11 // pred_check_branch
          %415 = sbr.rel (%p413) target = $region48
        $region47: #{museformer_forward.1} parent=11 // pred_region
          _
        $region48: #{museformer_forward.1} parent=11 // pred_fallthru
          _
        // Predicated region
        $region49: #{museformer_forward.1} parent=11 // pred_check
          %p416 = pneg %p291
        $region50: #{museformer_forward.1} parent=11 // pred_check_branch
          %418 = sbr.rel (%p416) target = $region52
        $region51: #{museformer_forward.1} parent=11 // pred_region
          _
        $region52: #{museformer_forward.1} parent=11 // pred_fallthru
          _
        // Predicated region
        $region53: #{museformer_forward.1} parent=11 // pred_check
          %p419 = pneg %p312
        $region54: #{museformer_forward.1} parent=11 // pred_check_branch
          %421 = sbr.rel (%p419) target = $region56
        $region55: #{museformer_forward.1} parent=11 // pred_region
          %s423 = ssub.s32 2048, 2048
          %424 = vsyncadd [#allocation6], %s423
          %s425 = sshll.u32 [#allocation5], 4
          %s426 = int_to_ptr.vmem [resolvable:$true] %s425
          %431 = dma.hbm_to_vmem [thread:$0]  %s12, 2048, %s426, [#allocation6], 128, 128, 8
        $region56: #{museformer_forward.1} parent=11 // pred_fallthru
          _
      $region12: #{museformer_forward.1} parent=5 // pred_fallthru
        _
      %p432 = scmp.lt.s32.totalorder %s29, 2
      // Predicated region
      $region57: #{museformer_forward.1} parent=5 // pred_check
        %p433 = pneg %p432
      $region58: #{museformer_forward.1} parent=5 // pred_check_branch
        %435 = sbr.rel (%p433) target = $region60
      $region59: #{museformer_forward.1} parent=5 // pred_region
        // Predicated region
        $region61: #{museformer_forward.1} parent=59 // pred_check
          %p436 = pneg %p49
        $region62: #{museformer_forward.1} parent=59 // pred_check_branch
          %438 = sbr.rel (%p436) target = $region64
        $region63: #{museformer_forward.1} parent=59 // pred_region
          %p439 = scmp.lt.s32.totalorder %s29, 1
          %s440 = scalar_select %p439, %s29, 1
          %s441 = smul.addr %s440, 2
          %s442 = smul.addr %s441, 8
          %s443 = scalar_lea.vmem %s0, %s442
        $region64: #{museformer_forward.1} parent=59 // pred_fallthru
          _
        // Predicated region
        $region65: #{museformer_forward.1} parent=59 // pred_check
          %p444 = pneg %p75
        $region66: #{museformer_forward.1} parent=59 // pred_check_branch
          %446 = sbr.rel (%p444) target = $region68
        $region67: #{museformer_forward.1} parent=59 // pred_region
          %p447 = scmp.lt.s32.totalorder %s29, 1
          %s448 = scalar_select %p447, %s29, 1
          %s449 = scalar_lea.vmem %s1, %s448
        $region68: #{museformer_forward.1} parent=59 // pred_fallthru
          _
      $region60: #{museformer_forward.1} parent=5 // pred_fallthru
        _
      %p450 = scmp.le.s32.totalorder 1, %s29
      %p451 = scmp.lt.s32.totalorder %s29, 3
      %p452 = pnand %p450, %p451
      %p453 = pneg %p452
      // Predicated region
      $region69: #{museformer_forward.1} parent=5 // pred_check
        _
      $region70: #{museformer_forward.1} parent=5 // pred_check_branch
        %455 = sbr.rel (%p452) target = $region72
      $region71: #{museformer_forward.1} parent=5 // pred_region
        %s456 = ssub.s32 %s29, 1
        // Predicated region
        $region73: #{museformer_forward.1} parent=71 // pred_check
          %p457 = pneg %p144
        $region74: #{museformer_forward.1} parent=71 // pred_check_branch
          %459 = sbr.rel (%p457) target = $region76
        $region75: #{museformer_forward.1} parent=71 // pred_region
          %460 = dma.done [#allocation3], 2048
        $region76: #{museformer_forward.1} parent=71 // pred_fallthru
          _
        // Predicated region
        $region77: #{museformer_forward.1} parent=71 // pred_check
          %p461 = pneg %p312
        $region78: #{museformer_forward.1} parent=71 // pred_check_branch
          %463 = sbr.rel (%p461) target = $region80
        $region79: #{museformer_forward.1} parent=71 // pred_region
          %464 = dma.done [#allocation6], 2048
        $region80: #{museformer_forward.1} parent=71 // pred_fallthru
          _
        %p465 = scmp.lt.s32.totalorder %s34, 1
        %s466 = scalar_select %p465, %s34, 1
        %s467 = smul.addr %s466, 2
        %s468 = smul.addr %s467, 8
        %s469 = scalar_lea.vmem %s0, %s468
        %p470 = pneg %p55
        %p471 = pneg %p52
        %p472 = scmp.lt.s32.totalorder %s34, 1
        %s473 = scalar_select %p472, %s34, 1
        %s474 = scalar_lea.vmem %s1, %s473
        %p475 = pneg %p81
        %p476 = pneg %p78
        %p477 = pneg %p102
        %p478 = pneg %p99
        %p479 = pneg %p123
        %p480 = pneg %p120
        %p481 = pneg %p144
        %p482 = pneg %p141
        %p483 = pneg %p165
        %p484 = pneg %p162
        %p485 = pneg %p186
        %p486 = pneg %p183
        %p487 = pneg %p207
        %p488 = pneg %p204
        %p489 = pneg %p228
        %p490 = pneg %p225
        %p491 = pneg %p249
        %p492 = pneg %p246
        %p493 = pneg %p270
        %p494 = pneg %p267
        %p495 = pneg %p291
        %p496 = pneg %p288
        %p497 = pneg %p312
        %p498 = pneg %p309
        %p499 = pneg %p338
        %p500 = pneg %p335
        %s501 = sand.u32 %s325, 1
        %s502 = scalar_lea.sflag [#allocation4], %s501
        %s503 = sand.u32 %s325, 1
        %s504 = smul.addr %s503, 16
        %s505 = scalar_lea.vmem [#allocation7], %s504
        %p506 = pneg %p364
        %p507 = pneg %p361
        %s508 = sand.u32 %s351, 1
        %s509 = scalar_lea.sflag [#allocation9], %s508
        %s510 = sand.u32 %s351, 1
        %s511 = smul.addr %s510, 32
        %s512 = scalar_lea.vmem [#allocation8], %s511
        %p513 = scmp.lt.s32.totalorder %s34, 1
        %s514 = scalar_select %p513, %s34, 1
        %s515 = smul.addr %s514, 2
        %s516 = smul.addr %s515, 8
        %s517 = scalar_lea.vmem %s0, %s516
        %p518 = scmp.lt.s32.totalorder %s34, 1
        %s519 = scalar_select %p518, %s34, 1
        %s520 = scalar_lea.vmem %s1, %s519
        %v522 = vld [vmem:[%s517] sm:$0xff]
        %v523 = vld [vmem:[%s517 + $0x8] sm:$0xff]
        %v524 = vld [vmem:[%s520] sm:$0x1]
        %525 = vadd.xlane.f32.xlu0 %v522
        %v526 = vpop.xlane.xlu0 %525
        %527 = vadd.xlane.f32.xlu0 %v523
        %v528 = vpop.xlane.xlu0 %527
        %v529 = vrcp.pop 128.0
        %v530 = vmul.f32 %v526, %v529
        %v531 = vmul.f32 %v528, %v529
        %v532 = vsub.f32 %v522, %v530
        %v533 = vsub.f32 %v523, %v531
        %v534 = vmul.f32 %v532, %v532
        %v535 = vmul.f32 %v533, %v533
        %536 = vadd.xlane.f32.xlu0 %v534
        %v537 = vpop.xlane.xlu0 %536
        %538 = vadd.xlane.f32.xlu0 %v535
        %v539 = vpop.xlane.xlu0 %538
        %v540 = vmul.f32 %v537, %v529
        %v541 = vmul.f32 %v539, %v529
        %v542 = vadd.f32 %v540, 1e-05
        %v543 = vadd.f32 %v541, 1e-05
        %v544 = vrsqrt.pop %v542
        %v545 = vrsqrt.pop %v543
        %v546 = vmul.f32 %v532, %v544
        %v547 = vmul.f32 %v533, %v545
        %v548 = vpack.c.bf16 %v547, %v546
        %v549 = vld [vmem:[%s2] sm:$0xff]
        %v550 = vld [vmem:[%s2 + $0x8] sm:$0xf]
        %v551 = vld [vmem:[%s2 + $0xc] sm:$0xff]
        %v552 = vld [vmem:[%s2 + $0x14] sm:$0xf]
        %v553 = vld [vmem:[%s2 + $0x18] sm:$0xff]
        %v554 = vld [vmem:[%s2 + $0x20] sm:$0xf]
        %v555 = vld [vmem:[%s2 + $0x24] sm:$0xff]
        %v556 = vld [vmem:[%s2 + $0x2c] sm:$0xf]
        %v557 = vld [vmem:[%s2 + $0x30] sm:$0xff]
        %v558 = vld [vmem:[%s2 + $0x38] sm:$0xf]
        %v559 = vld [vmem:[%s2 + $0x3c] sm:$0xff]
        %v560 = vld [vmem:[%s2 + $0x44] sm:$0xf]
        %v561 = vld [vmem:[%s2 + $0x48] sm:$0xff]
        %v562 = vld [vmem:[%s2 + $0x50] sm:$0xf]
        %v563 = vld [vmem:[%s2 + $0x54] sm:$0xff]
        %v564 = vld [vmem:[%s2 + $0x5c] sm:$0xf]
        %v565 = vld [vmem:[%s2 + $0x60] sm:$0xff]
        %v566 = vld [vmem:[%s2 + $0x68] sm:$0xf]
        %v567 = vld [vmem:[%s2 + $0x6c] sm:$0xff]
        %v568 = vld [vmem:[%s2 + $0x74] sm:$0xf]
        %v569 = vld [vmem:[%s2 + $0x78] sm:$0xff]
        %v570 = vld [vmem:[%s2 + $0x80] sm:$0xf]
        %v571 = vld [vmem:[%s2 + $0x84] sm:$0xff]
        %v572 = vld [vmem:[%s2 + $0x8c] sm:$0xf]
        %v573 = vld [vmem:[%s2 + $0x90] sm:$0xff]
        %v574 = vld [vmem:[%s2 + $0x98] sm:$0xf]
        %v575 = vld [vmem:[%s2 + $0x9c] sm:$0xff]
        %v576 = vld [vmem:[%s2 + $0xa4] sm:$0xf]
        %v577 = vld [vmem:[%s2 + $0xa8] sm:$0xff]
        %v578 = vld [vmem:[%s2 + $0xb0] sm:$0xf]
        %v579 = vld [vmem:[%s2 + $0xb4] sm:$0xff]
        %v580 = vld [vmem:[%s2 + $0xbc] sm:$0xf]
        %v581 = vld [vmem:[%s3] sm:$0x7]
        %v583 = vlaneseq
        %v584 = vshrl.u32 %v583, 7
        %v585 = vsub.s32 0, %v584
        %v586 = vrot.slane %v581, %v585
        %v587 = vlaneseq
        %v588 = vshrl.u32 %v587, 7
        %v589 = vsub.s32 1, %v588
        %v590 = vrot.slane %v581, %v589
        %v591 = vlaneseq
        %v592 = vshrl.u32 %v591, 7
        %v593 = vsub.s32 2, %v592
        %v594 = vrot.slane %v581, %v593
        %v630 = vunpack.c.l.b16 %v549
        %v631 = vunpack.c.h.b16 %v549
        %v632 = vunpack.c.l.b16 %v550
        %v633 = vunpack.c.l.b16 %v551
        %v634 = vunpack.c.h.b16 %v551
        %v635 = vunpack.c.l.b16 %v552
        %v636 = vunpack.c.l.b16 %v553
        %v637 = vunpack.c.h.b16 %v553
        %v638 = vunpack.c.l.b16 %v554
        %v639 = vunpack.c.l.b16 %v555
        %v640 = vunpack.c.h.b16 %v555
        %v641 = vunpack.c.l.b16 %v556
        %v642 = vunpack.c.l.b16 %v557
        %v643 = vunpack.c.h.b16 %v557
        %v644 = vunpack.c.l.b16 %v558
        %v645 = vunpack.c.l.b16 %v559
        %v646 = vunpack.c.h.b16 %v559
        %v647 = vunpack.c.l.b16 %v560
        %v648 = vunpack.c.l.b16 %v561
        %v649 = vunpack.c.h.b16 %v561
        %v650 = vunpack.c.l.b16 %v562
        %v651 = vunpack.c.l.b16 %v563
        %v652 = vunpack.c.h.b16 %v563
        %v653 = vunpack.c.l.b16 %v564
        %v654 = vunpack.c.l.b16 %v565
        %v655 = vunpack.c.h.b16 %v565
        %v656 = vunpack.c.l.b16 %v566
        %v657 = vunpack.c.l.b16 %v567
        %v658 = vunpack.c.h.b16 %v567
        %v659 = vunpack.c.l.b16 %v568
        %v660 = vunpack.c.l.b16 %v569
        %v661 = vunpack.c.h.b16 %v569
        %v662 = vunpack.c.l.b16 %v570
        %v663 = vunpack.c.l.b16 %v571
        %v664 = vunpack.c.h.b16 %v571
        %v665 = vunpack.c.l.b16 %v572
        %v666 = vunpack.c.l.b16 %v573
        %v667 = vunpack.c.h.b16 %v573
        %v668 = vunpack.c.l.b16 %v574
        %v669 = vunpack.c.l.b16 %v575
        %v670 = vunpack.c.h.b16 %v575
        %v671 = vunpack.c.l.b16 %v576
        %v672 = vunpack.c.l.b16 %v577
        %v673 = vunpack.c.h.b16 %v577
        %v674 = vunpack.c.l.b16 %v578
        %v675 = vunpack.c.l.b16 %v579
        %v676 = vunpack.c.h.b16 %v579
        %v677 = vunpack.c.l.b16 %v580
        %v678 = vpack.c.b16 %v633, %v630
        %v679 = vpack.c.b16 %v634, %v631
        %v680 = vpack.c.b16 %v635, %v632
        %v681 = vpack.c.b16 %v639, %v636
        %v682 = vpack.c.b16 %v640, %v637
        %v683 = vpack.c.b16 %v641, %v638
        %v684 = vpack.c.b16 %v645, %v642
        %v685 = vpack.c.b16 %v646, %v643
        %v686 = vpack.c.b16 %v647, %v644
        %v687 = vpack.c.b16 %v651, %v648
        %v688 = vpack.c.b16 %v652, %v649
        %v689 = vpack.c.b16 %v653, %v650
        %v690 = vpack.c.b16 %v657, %v654
        %v691 = vpack.c.b16 %v658, %v655
        %v692 = vpack.c.b16 %v659, %v656
        %v693 = vpack.c.b16 %v663, %v660
        %v694 = vpack.c.b16 %v664, %v661
        %v695 = vpack.c.b16 %v665, %v662
        %v696 = vpack.c.b16 %v669, %v666
        %v697 = vpack.c.b16 %v670, %v667
        %v698 = vpack.c.b16 %v671, %v668
        %v699 = vpack.c.b16 %v675, %v672
        %v700 = vpack.c.b16 %v676, %v673
        %v701 = vpack.c.b16 %v677, %v674
        %726 = vmatprep.subr.bf16.mxu0 %v679
        %727 = vmatpush1.bf16.msra.mxu0 %v678
        %728 = vmatprep.subr.bf16.mxu0 %v682
        %729 = vmatpush1.bf16.msra.mxu0 %v681
        %730 = vmatprep.subr.bf16.mxu0 %v685
        %731 = vmatpush1.bf16.msra.mxu0 %v684
        %732 = vmatprep.subr.bf16.mxu0 %v688
        %733 = vmatpush1.bf16.msra.mxu0 %v687
        %734 = vmatprep.subr.bf16.mxu0 %v691
        %735 = vmatpush1.bf16.msra.mxu0 %v690
        %736 = vmatprep.subr.bf16.mxu0 %v694
        %737 = vmatpush1.bf16.msra.mxu0 %v693
        %738 = vmatprep.subr.bf16.mxu0 %v697
        %739 = vmatpush1.bf16.msra.mxu0 %v696
        %740 = vmatprep.subr.bf16.mxu0 %v700
        %741 = vmatpush1.bf16.msra.mxu0 %v699
        %742 = vmatprep.subr.bf16.mxu0 0
        %743 = vmatpush1.bf16.msra.mxu0 0
        %744 = vmatprep.subr.bf16.mxu0 0
        %745 = vmatpush1.bf16.msra.mxu0 0
        %746 = vmatprep.subr.bf16.mxu0 0
        %747 = vmatpush1.bf16.msra.mxu0 0
        %748 = vmatprep.subr.bf16.mxu0 0
        %749 = vmatpush1.bf16.msra.mxu0 0
        %750 = vmatprep.subr.bf16.mxu0 0
        %751 = vmatpush1.bf16.msra.mxu0 0
        %752 = vmatprep.subr.bf16.mxu0 0
        %753 = vmatpush1.bf16.msra.mxu0 0
        %754 = vmatprep.subr.bf16.mxu0 0
        %755 = vmatpush1.bf16.msra.mxu0 0
        %756 = vmatprep.subr.bf16.mxu0 0
        %757 = vmatpush1.bf16.msra.mxu0 0
        %758 = vmatprep.mubr.bf16.mxu0 0
        %759 = vmatmul.mubr.bf16.gmra.mrb[0].mxu0 %v548
        %v760 = vpop.f32.mrb[0].mxu0
        %v761 = vadd.f32 %v586, %v760
        %v762 = vpop.f32.mrb[0].mxu0
        %v763 = vadd.f32 %v590, %v762
        %v764 = vpop.f32.mrb[0].mxu0
        %v765 = vadd.f32 %v586, %v764
        %v766 = vpop.f32.mrb[0].mxu0
        %v767 = vadd.f32 %v590, %v766
        %768 = vdwg.mxu0
        %769 = vmatprep.subr.bf16.mxu0 0
        %770 = vmatpush1.bf16.msra.mxu0 %v680
        %771 = vmatprep.subr.bf16.mxu0 0
        %772 = vmatpush1.bf16.msra.mxu0 %v683
        %773 = vmatprep.subr.bf16.mxu0 0
        %774 = vmatpush1.bf16.msra.mxu0 %v686
        %775 = vmatprep.subr.bf16.mxu0 0
        %776 = vmatpush1.bf16.msra.mxu0 %v689
        %777 = vmatprep.subr.bf16.mxu0 0
        %778 = vmatpush1.bf16.msra.mxu0 %v692
        %779 = vmatprep.subr.bf16.mxu0 0
        %780 = vmatpush1.bf16.msra.mxu0 %v695
        %781 = vmatprep.subr.bf16.mxu0 0
        %782 = vmatpush1.bf16.msra.mxu0 %v698
        %783 = vmatprep.subr.bf16.mxu0 0
        %784 = vmatpush1.bf16.msra.mxu0 %v701
        %785 = vmatprep.subr.bf16.mxu0 0
        %786 = vmatpush1.bf16.msra.mxu0 0
        %787 = vmatprep.subr.bf16.mxu0 0
        %788 = vmatpush1.bf16.msra.mxu0 0
        %789 = vmatprep.subr.bf16.mxu0 0
        %790 = vmatpush1.bf16.msra.mxu0 0
        %791 = vmatprep.subr.bf16.mxu0 0
        %792 = vmatpush1.bf16.msra.mxu0 0
        %793 = vmatprep.subr.bf16.mxu0 0
        %794 = vmatpush1.bf16.msra.mxu0 0
        %795 = vmatprep.subr.bf16.mxu0 0
        %796 = vmatpush1.bf16.msra.mxu0 0
        %797 = vmatprep.subr.bf16.mxu0 0
        %798 = vmatpush1.bf16.msra.mxu0 0
        %799 = vmatprep.subr.bf16.mxu0 0
        %800 = vmatpush1.bf16.msra.mxu0 0
        %801 = vmatprep.mubr.bf16.mxu0 0
        %802 = vmatmul.mubr.bf16.gmra.mrb[0].mxu0 %v548
        %v803 = vpop.f32.mrb[0].mxu0
        %v804 = vadd.f32 %v594, %v803
        %v805 = vpop.f32.mrb[0].mxu0
        %v806 = vpop.f32.mrb[0].mxu0
        %v807 = vadd.f32 %v594, %v806
        %v808 = vpop.f32.mrb[0].mxu0
        %809 = vdwg.mxu0
        %v810 = vld [vmem:[#allocation2] sm:$0xf]
        %v811 = vld [vmem:[#allocation2 + $0x4] sm:$0xf]
        %v812 = vld [vmem:[#allocation2 + $0x8] sm:$0xf]
        %v813 = vld [vmem:[#allocation2 + $0xc] sm:$0xf]
        %v814 = vld [vmem:[#allocation2 + $0x10] sm:$0xf]
        %v815 = vld [vmem:[#allocation2 + $0x14] sm:$0xf]
        %v816 = vld [vmem:[#allocation2 + $0x18] sm:$0xf]
        %v817 = vld [vmem:[#allocation2 + $0x1c] sm:$0xf]
        %v818 = vld [vmem:[#allocation2 + $0x20] sm:$0xf]
        %v819 = vld [vmem:[#allocation2 + $0x24] sm:$0xf]
        %v820 = vld [vmem:[#allocation2 + $0x28] sm:$0xf]
        %v821 = vld [vmem:[#allocation2 + $0x2c] sm:$0xf]
        %v822 = vld [vmem:[#allocation2 + $0x30] sm:$0xf]
        %v823 = vld [vmem:[#allocation2 + $0x34] sm:$0xf]
        %v824 = vld [vmem:[#allocation2 + $0x38] sm:$0xf]
        %v825 = vld [vmem:[#allocation2 + $0x3c] sm:$0xf]
        %v826 = vpack.c.bf16 %v765, %v761
        %v827 = vpack.c.bf16 %v767, %v763
        %v828 = vpack.c.bf16 %v807, %v804
        %v830 = vlaneseq
        %v831 = vshrl.u32 %v830, 7
        %v832 = vsub.s32 0, %v831
        %v833 = vrot.slane %v524, %v832
        %vm835 = vcmask 261120
        %v837 = vsel %vm835, %v826, 0
        %v840 = vsel %vm835, %v827, 0
        %842 = vmatprep.subr.bf16.mxu0 0
        %843 = vmatpush1.bf16.xpose.msra.mxu0 %v840
        %844 = vmatprep.subr.bf16.mxu0 0
        %845 = vmatpush1.bf16.xpose.msra.mxu0 0
        %846 = vmatprep.subr.bf16.mxu0 0
        %847 = vmatpush1.bf16.xpose.msra.mxu0 0
        %848 = vmatprep.subr.bf16.mxu0 0
        %849 = vmatpush1.bf16.xpose.msra.mxu0 0
        %850 = vmatprep.subr.bf16.mxu0 0
        %851 = vmatpush1.bf16.xpose.msra.mxu0 0
        %852 = vmatprep.subr.bf16.mxu0 0
        %853 = vmatpush1.bf16.xpose.msra.mxu0 0
        %854 = vmatprep.subr.bf16.mxu0 0
        %855 = vmatpush1.bf16.xpose.msra.mxu0 0
        %856 = vmatprep.subr.bf16.mxu0 0
        %857 = vmatpush1.bf16.xpose.msra.mxu0 0
        %858 = vmatprep.subr.bf16.mxu0 0
        %859 = vmatpush1.bf16.xpose.msra.mxu0 0
        %860 = vmatprep.subr.bf16.mxu0 0
        %861 = vmatpush1.bf16.xpose.msra.mxu0 0
        %862 = vmatprep.subr.bf16.mxu0 0
        %863 = vmatpush1.bf16.xpose.msra.mxu0 0
        %864 = vmatprep.subr.bf16.mxu0 0
        %865 = vmatpush1.bf16.xpose.msra.mxu0 0
        %866 = vmatprep.subr.bf16.mxu0 0
        %867 = vmatpush1.bf16.xpose.msra.mxu0 0
        %868 = vmatprep.subr.bf16.mxu0 0
        %869 = vmatpush1.bf16.xpose.msra.mxu0 0
        %870 = vmatprep.subr.bf16.mxu0 0
        %871 = vmatpush1.bf16.xpose.msra.mxu0 0
        %872 = vmatprep.subr.bf16.mxu0 0
        %873 = vmatpush1.bf16.xpose.msra.mxu0 0
        %874 = vmatprep.mubr.bf16.mxu0 0
        %875 = vmatmul.mubr.bf16.gmra.mrb[0].mxu0 %v837
        %v876 = vpop.f32.mrb[0].mxu0
        %v877 = vadd.f32 %v833, %v876
        %v878 = vpop.f32.mrb[0].mxu0
        %v879 = vpop.f32.mrb[0].mxu0
        %v880 = vadd.f32 %v833, %v879
        %v881 = vpop.f32.mrb[0].mxu0
        %882 = vdwg.mxu0
        %vm883 = vcmask 130048
        %v884 = vsel %vm883, %v877, -inf
        %885 = vmax.xlane.f32.xlu0 %v884
        %v886 = vpop.xlane.xlu0 %885
        %v887 = vsel %vm883, %v880, -inf
        %888 = vmax.xlane.f32.xlu0 %v887
        %v889 = vpop.xlane.xlu0 %888
        %v890 = vsub.f32 %v877, %v886
        %v891 = vsub.f32 %v880, %v889
        %v892 = vmul.f32 %v890, 1.442695
        %v893 = vpow.pop %v892
        %v894 = vmul.f32 %v891, 1.442695
        %v895 = vpow.pop %v894
        %v896 = vsel %vm883, %v893, 0.0
        %897 = vadd.xlane.f32.xlu0 %v896
        %v898 = vpop.xlane.xlu0 %897
        %v899 = vsel %vm883, %v895, 0.0
        %900 = vadd.xlane.f32.xlu0 %v899
        %v901 = vpop.xlane.xlu0 %900
        %v902 = vrcp.pop %v898
        %v903 = vrcp.pop %v901
        %v904 = vmul.f32 %v893, %v902
        %v905 = vmul.f32 %v895, %v903
        %v906 = vpack.c.bf16 %v905, %v904
        %v908 = vsel %vm883, %v906, 0
        %910 = vmatprep.subr.bf16.mxu0 0
        %911 = vmatpush1.bf16.msra.mxu0 %v828
        %912 = vmatprep.subr.bf16.mxu0 0
        %913 = vmatpush1.bf16.msra.mxu0 0
        %914 = vmatprep.subr.bf16.mxu0 0
        %915 = vmatpush1.bf16.msra.mxu0 0
        %916 = vmatprep.subr.bf16.mxu0 0
        %917 = vmatpush1.bf16.msra.mxu0 0
        %918 = vmatprep.subr.bf16.mxu0 0
        %919 = vmatpush1.bf16.msra.mxu0 0
        %920 = vmatprep.subr.bf16.mxu0 0
        %921 = vmatpush1.bf16.msra.mxu0 0
        %922 = vmatprep.subr.bf16.mxu0 0
        %923 = vmatpush1.bf16.msra.mxu0 0
        %924 = vmatprep.subr.bf16.mxu0 0
        %925 = vmatpush1.bf16.msra.mxu0 0
        %926 = vmatprep.subr.bf16.mxu0 0
        %927 = vmatpush1.bf16.msra.mxu0 0
        %928 = vmatprep.subr.bf16.mxu0 0
        %929 = vmatpush1.bf16.msra.mxu0 0
        %930 = vmatprep.subr.bf16.mxu0 0
        %931 = vmatpush1.bf16.msra.mxu0 0
        %932 = vmatprep.subr.bf16.mxu0 0
        %933 = vmatpush1.bf16.msra.mxu0 0
        %934 = vmatprep.subr.bf16.mxu0 0
        %935 = vmatpush1.bf16.msra.mxu0 0
        %936 = vmatprep.subr.bf16.mxu0 0
        %937 = vmatpush1.bf16.msra.mxu0 0
        %938 = vmatprep.subr.bf16.mxu0 0
        %939 = vmatpush1.bf16.msra.mxu0 0
        %940 = vmatprep.subr.bf16.mxu0 0
        %941 = vmatpush1.bf16.msra.mxu0 0
        %942 = vmatprep.mubr.bf16.mxu0 0
        %943 = vmatmul.mubr.bf16.gmra.mrb[0].mxu0 %v908
        %v944 = vpop.f32.mrb[0].mxu0
        %v945 = vadd.f32 0.0, %v944
        %v946 = vpop.f32.mrb[0].mxu0
        %v947 = vpop.f32.mrb[0].mxu0
        %v948 = vadd.f32 0.0, %v947
        %v949 = vpop.f32.mrb[0].mxu0
        %950 = vdwg.mxu0
        %v951 = vpack.c.bf16 %v948, %v945
        %953 = vrot.lane.b32.xlu0 %v826, 96
        %v954 = vpop.permute.xlu0 %953
        %956 = vrot.lane.b32.xlu0 %v827, 96
        %v957 = vpop.permute.xlu0 %956
        %v959 = vsel %vm835, %v954, 0
        %v962 = vsel %vm835, %v957, 0
        %964 = vmatprep.subr.bf16.mxu0 0
        %965 = vmatpush1.bf16.xpose.msra.mxu0 %v962
        %966 = vmatprep.subr.bf16.mxu0 0
        %967 = vmatpush1.bf16.xpose.msra.mxu0 0
        %968 = vmatprep.subr.bf16.mxu0 0
        %969 = vmatpush1.bf16.xpose.msra.mxu0 0
        %970 = vmatprep.subr.bf16.mxu0 0
        %971 = vmatpush1.bf16.xpose.msra.mxu0 0
        %972 = vmatprep.subr.bf16.mxu0 0
        %973 = vmatpush1.bf16.xpose.msra.mxu0 0
        %974 = vmatprep.subr.bf16.mxu0 0
        %975 = vmatpush1.bf16.xpose.msra.mxu0 0
        %976 = vmatprep.subr.bf16.mxu0 0
        %977 = vmatpush1.bf16.xpose.msra.mxu0 0
        %978 = vmatprep.subr.bf16.mxu0 0
        %979 = vmatpush1.bf16.xpose.msra.mxu0 0
        %980 = vmatprep.subr.bf16.mxu0 0
        %981 = vmatpush1.bf16.xpose.msra.mxu0 0
        %982 = vmatprep.subr.bf16.mxu0 0
        %983 = vmatpush1.bf16.xpose.msra.mxu0 0
        %984 = vmatprep.subr.bf16.mxu0 0
        %985 = vmatpush1.bf16.xpose.msra.mxu0 0
        %986 = vmatprep.subr.bf16.mxu0 0
        %987 = vmatpush1.bf16.xpose.msra.mxu0 0
        %988 = vmatprep.subr.bf16.mxu0 0
        %989 = vmatpush1.bf16.xpose.msra.mxu0 0
        %990 = vmatprep.subr.bf16.mxu0 0
        %991 = vmatpush1.bf16.xpose.msra.mxu0 0
        %992 = vmatprep.subr.bf16.mxu0 0
        %993 = vmatpush1.bf16.xpose.msra.mxu0 0
        %994 = vmatprep.subr.bf16.mxu0 0
        %995 = vmatpush1.bf16.xpose.msra.mxu0 0
        %996 = vmatprep.mubr.bf16.mxu0 0
        %997 = vmatmul.mubr.bf16.gmra.mrb[0].mxu0 %v959
        %v998 = vpop.f32.mrb[0].mxu0
        %v999 = vadd.f32 %v833, %v998
        %v1000 = vpop.f32.mrb[0].mxu0
        %v1001 = vpop.f32.mrb[0].mxu0
        %v1002 = vadd.f32 %v833, %v1001
        %v1003 = vpop.f32.mrb[0].mxu0
        %1004 = vdwg.mxu0
        %v1005 = vsel %vm883, %v999, -inf
        %1006 = vmax.xlane.f32.xlu0 %v1005
        %v1007 = vpop.xlane.xlu0 %1006
        %v1008 = vsel %vm883, %v1002, -inf
        %1009 = vmax.xlane.f32.xlu0 %v1008
        %v1010 = vpop.xlane.xlu0 %1009
        %v1011 = vsub.f32 %v999, %v1007
        %v1012 = vsub.f32 %v1002, %v1010
        %v1013 = vmul.f32 %v1011, 1.442695
        %v1014 = vpow.pop %v1013
        %v1015 = vmul.f32 %v1012, 1.442695
        %v1016 = vpow.pop %v1015
        %v1017 = vsel %vm883, %v1014, 0.0
        %1018 = vadd.xlane.f32.xlu0 %v1017
        %v1019 = vpop.xlane.xlu0 %1018
        %v1020 = vsel %vm883, %v1016, 0.0
        %1021 = vadd.xlane.f32.xlu0 %v1020
        %v1022 = vpop.xlane.xlu0 %1021
        %v1023 = vrcp.pop %v1019
        %v1024 = vrcp.pop %v1022
        %v1025 = vmul.f32 %v1014, %v1023
        %v1026 = vmul.f32 %v1016, %v1024
        %v1027 = vpack.c.bf16 %v1026, %v1025
        %1029 = vrot.lane.b32.xlu0 %v828, 96
        %v1030 = vpop.permute.xlu0 %1029
        %v1033 = vsel %vm883, %v1027, 0
        %1035 = vmatprep.subr.bf16.mxu0 0
        %1036 = vmatpush1.bf16.msra.mxu0 %v1030
        %1037 = vmatprep.subr.bf16.mxu0 0
        %1038 = vmatpush1.bf16.msra.mxu0 0
        %1039 = vmatprep.subr.bf16.mxu0 0
        %1040 = vmatpush1.bf16.msra.mxu0 0
        %1041 = vmatprep.subr.bf16.mxu0 0
        %1042 = vmatpush1.bf16.msra.mxu0 0
        %1043 = vmatprep.subr.bf16.mxu0 0
        %1044 = vmatpush1.bf16.msra.mxu0 0
        %1045 = vmatprep.subr.bf16.mxu0 0
        %1046 = vmatpush1.bf16.msra.mxu0 0
        %1047 = vmatprep.subr.bf16.mxu0 0
        %1048 = vmatpush1.bf16.msra.mxu0 0
        %1049 = vmatprep.subr.bf16.mxu0 0
        %1050 = vmatpush1.bf16.msra.mxu0 0
        %1051 = vmatprep.subr.bf16.mxu0 0
        %1052 = vmatpush1.bf16.msra.mxu0 0
        %1053 = vmatprep.subr.bf16.mxu0 0
        %1054 = vmatpush1.bf16.msra.mxu0 0
        %1055 = vmatprep.subr.bf16.mxu0 0
        %1056 = vmatpush1.bf16.msra.mxu0 0
        %1057 = vmatprep.subr.bf16.mxu0 0
        %1058 = vmatpush1.bf16.msra.mxu0 0
        %1059 = vmatprep.subr.bf16.mxu0 0
        %1060 = vmatpush1.bf16.msra.mxu0 0
        %1061 = vmatprep.subr.bf16.mxu0 0
        %1062 = vmatpush1.bf16.msra.mxu0 0
        %1063 = vmatprep.subr.bf16.mxu0 0
        %1064 = vmatpush1.bf16.msra.mxu0 0
        %1065 = vmatprep.subr.bf16.mxu0 0
        %1066 = vmatpush1.bf16.msra.mxu0 0
        %1067 = vmatprep.mubr.bf16.mxu0 0
        %1068 = vmatmul.mubr.bf16.gmra.mrb[0].mxu0 %v1033
        %v1069 = vpop.f32.mrb[0].mxu0
        %v1070 = vadd.f32 0.0, %v1069
        %v1071 = vpop.f32.mrb[0].mxu0
        %v1072 = vpop.f32.mrb[0].mxu0
        %v1073 = vadd.f32 0.0, %v1072
        %v1074 = vpop.f32.mrb[0].mxu0
        %1075 = vdwg.mxu0
        %v1076 = vpack.c.bf16 %v1073, %v1070
        %v1081 = vunpack.c.l.b16 %v814
        %v1082 = vunpack.c.l.b16 %v815
        %v1083 = vunpack.c.l.b16 %v816
        %v1084 = vunpack.c.l.b16 %v817
        %v1085 = vpack.c.b16 %v1082, %v1081
        %v1086 = vpack.c.b16 %v1084, %v1083
        %v1090 = vsel %vm835, %v1076, 0
        %1092 = vmatprep.subr.bf16.mxu0 0
        %1093 = vmatpush1.bf16.msra.mxu0 %v1085
        %1094 = vmatprep.subr.bf16.mxu0 0
        %1095 = vmatpush1.bf16.msra.mxu0 %v1086
        %1096 = vmatprep.subr.bf16.mxu0 0
        %1097 = vmatpush1.bf16.msra.mxu0 0
        %1098 = vmatprep.subr.bf16.mxu0 0
        %1099 = vmatpush1.bf16.msra.mxu0 0
        %1100 = vmatprep.subr.bf16.mxu0 0
        %1101 = vmatpush1.bf16.msra.mxu0 0
        %1102 = vmatprep.subr.bf16.mxu0 0
        %1103 = vmatpush1.bf16.msra.mxu0 0
        %1104 = vmatprep.subr.bf16.mxu0 0
        %1105 = vmatpush1.bf16.msra.mxu0 0
        %1106 = vmatprep.subr.bf16.mxu0 0
        %1107 = vmatpush1.bf16.msra.mxu0 0
        %1108 = vmatprep.subr.bf16.mxu0 0
        %1109 = vmatpush1.bf16.msra.mxu0 0
        %1110 = vmatprep.subr.bf16.mxu0 0
        %1111 = vmatpush1.bf16.msra.mxu0 0
        %1112 = vmatprep.subr.bf16.mxu0 0
        %1113 = vmatpush1.bf16.msra.mxu0 0
        %1114 = vmatprep.subr.bf16.mxu0 0
        %1115 = vmatpush1.bf16.msra.mxu0 0
        %1116 = vmatprep.subr.bf16.mxu0 0
        %1117 = vmatpush1.bf16.msra.mxu0 0
        %1118 = vmatprep.subr.bf16.mxu0 0
        %1119 = vmatpush1.bf16.msra.mxu0 0
        %1120 = vmatprep.subr.bf16.mxu0 0
        %1121 = vmatpush1.bf16.msra.mxu0 0
        %1122 = vmatprep.subr.bf16.mxu0 0
        %1123 = vmatpush1.bf16.msra.mxu0 0
        %1124 = vmatprep.mubr.bf16.mxu0 0
        %1125 = vmatmul.mubr.bf16.gmra.mrb[0].mxu0 %v1090
        %v1126 = vpop.f32.mrb[0].mxu0
        %v1127 = vadd.f32 0.0, %v1126
        %v1128 = vpop.f32.mrb[0].mxu0
        %v1129 = vpop.f32.mrb[0].mxu0
        %v1130 = vadd.f32 0.0, %v1129
        %v1131 = vpop.f32.mrb[0].mxu0
        %1132 = vdwg.mxu0
        %v1137 = vunpack.c.l.b16 %v810
        %v1138 = vunpack.c.l.b16 %v811
        %v1139 = vunpack.c.l.b16 %v812
        %v1140 = vunpack.c.l.b16 %v813
        %v1141 = vpack.c.b16 %v1138, %v1137
        %v1142 = vpack.c.b16 %v1140, %v1139
        %v1146 = vsel %vm835, %v951, 0
        %1148 = vmatprep.subr.bf16.mxu0 0
        %1149 = vmatpush1.bf16.msra.mxu0 %v1141
        %1150 = vmatprep.subr.bf16.mxu0 0
        %1151 = vmatpush1.bf16.msra.mxu0 %v1142
        %1152 = vmatprep.subr.bf16.mxu0 0
        %1153 = vmatpush1.bf16.msra.mxu0 0
        %1154 = vmatprep.subr.bf16.mxu0 0
        %1155 = vmatpush1.bf16.msra.mxu0 0
        %1156 = vmatprep.subr.bf16.mxu0 0
        %1157 = vmatpush1.bf16.msra.mxu0 0
        %1158 = vmatprep.subr.bf16.mxu0 0
        %1159 = vmatpush1.bf16.msra.mxu0 0
        %1160 = vmatprep.subr.bf16.mxu0 0
        %1161 = vmatpush1.bf16.msra.mxu0 0
        %1162 = vmatprep.subr.bf16.mxu0 0
        %1163 = vmatpush1.bf16.msra.mxu0 0
        %1164 = vmatprep.subr.bf16.mxu0 0
        %1165 = vmatpush1.bf16.msra.mxu0 0
        %1166 = vmatprep.subr.bf16.mxu0 0
        %1167 = vmatpush1.bf16.msra.mxu0 0
        %1168 = vmatprep.subr.bf16.mxu0 0
        %1169 = vmatpush1.bf16.msra.mxu0 0
        %1170 = vmatprep.subr.bf16.mxu0 0
        %1171 = vmatpush1.bf16.msra.mxu0 0
        %1172 = vmatprep.subr.bf16.mxu0 0
        %1173 = vmatpush1.bf16.msra.mxu0 0
        %1174 = vmatprep.subr.bf16.mxu0 0
        %1175 = vmatpush1.bf16.msra.mxu0 0
        %1176 = vmatprep.subr.bf16.mxu0 0
        %1177 = vmatpush1.bf16.msra.mxu0 0
        %1178 = vmatprep.subr.bf16.mxu0 0
        %1179 = vmatpush1.bf16.msra.mxu0 0
        %1180 = vmatprep.mubr.bf16.mxu0 0
        %1181 = vmatmul.mubr.bf16.gmra.mrb[0].mxu0 %v1146
        %v1182 = vpop.f32.mrb[0].mxu0
        %v1183 = vadd.f32 %v1127, %v1182
        %v1184 = vpop.f32.mrb[0].mxu0
        %v1185 = vpop.f32.mrb[0].mxu0
        %v1186 = vadd.f32 %v1130, %v1185
        %v1187 = vpop.f32.mrb[0].mxu0
        %1188 = vdwg.mxu0
        %1189 = vrot.lane.b32.xlu0 %v826, 64
        %v1190 = vpop.permute.xlu0 %1189
        %1191 = vrot.lane.b32.xlu0 %v827, 64
        %v1192 = vpop.permute.xlu0 %1191
        %v1194 = vsel %vm835, %v1190, 0
        %v1197 = vsel %vm835, %v1192, 0
        %1199 = vmatprep.subr.bf16.mxu0 0
        %1200 = vmatpush1.bf16.xpose.msra.mxu0 %v1197
        %1201 = vmatprep.subr.bf16.mxu0 0
        %1202 = vmatpush1.bf16.xpose.msra.mxu0 0
        %1203 = vmatprep.subr.bf16.mxu0 0
        %1204 = vmatpush1.bf16.xpose.msra.mxu0 0
        %1205 = vmatprep.subr.bf16.mxu0 0
        %1206 = vmatpush1.bf16.xpose.msra.mxu0 0
        %1207 = vmatprep.subr.bf16.mxu0 0
        %1208 = vmatpush1.bf16.xpose.msra.mxu0 0
        %1209 = vmatprep.subr.bf16.mxu0 0
        %1210 = vmatpush1.bf16.xpose.msra.mxu0 0
        %1211 = vmatprep.subr.bf16.mxu0 0
        %1212 = vmatpush1.bf16.xpose.msra.mxu0 0
        %1213 = vmatprep.subr.bf16.mxu0 0
        %1214 = vmatpush1.bf16.xpose.msra.mxu0 0
        %1215 = vmatprep.subr.bf16.mxu0 0
        %1216 = vmatpush1.bf16.xpose.msra.mxu0 0
        %1217 = vmatprep.subr.bf16.mxu0 0
        %1218 = vmatpush1.bf16.xpose.msra.mxu0 0
        %1219 = vmatprep.subr.bf16.mxu0 0
        %1220 = vmatpush1.bf16.xpose.msra.mxu0 0
        %1221 = vmatprep.subr.bf16.mxu0 0
        %1222 = vmatpush1.bf16.xpose.msra.mxu0 0
        %1223 = vmatprep.subr.bf16.mxu0 0
        %1224 = vmatpush1.bf16.xpose.msra.mxu0 0
        %1225 = vmatprep.subr.bf16.mxu0 0
        %1226 = vmatpush1.bf16.xpose.msra.mxu0 0
        %1227 = vmatprep.subr.bf16.mxu0 0
        %1228 = vmatpush1.bf16.xpose.msra.mxu0 0
        %1229 = vmatprep.subr.bf16.mxu0 0
        %1230 = vmatpush1.bf16.xpose.msra.mxu0 0
        %1231 = vmatprep.mubr.bf16.mxu0 0
        %1232 = vmatmul.mubr.bf16.gmra.mrb[0].mxu0 %v1194
        %v1233 = vpop.f32.mrb[0].mxu0
        %v1234 = vadd.f32 %v833, %v1233
        %v1235 = vpop.f32.mrb[0].mxu0
        %v1236 = vpop.f32.mrb[0].mxu0
        %v1237 = vadd.f32 %v833, %v1236
        %v1238 = vpop.f32.mrb[0].mxu0
        %1239 = vdwg.mxu0
        %v1240 = vsel %vm883, %v1234, -inf
        %1241 = vmax.xlane.f32.xlu0 %v1240
        %v1242 = vpop.xlane.xlu0 %1241
        %v1243 = vsel %vm883, %v1237, -inf
        %1244 = vmax.xlane.f32.xlu0 %v1243
        %v1245 = vpop.xlane.xlu0 %1244
        %v1246 = vsub.f32 %v1234, %v1242
        %v1247 = vsub.f32 %v1237, %v1245
        %v1248 = vmul.f32 %v1246, 1.442695
        %v1249 = vpow.pop %v1248
        %v1250 = vmul.f32 %v1247, 1.442695
        %v1251 = vpow.pop %v1250
        %v1252 = vsel %vm883, %v1249, 0.0
        %1253 = vadd.xlane.f32.xlu0 %v1252
        %v1254 = vpop.xlane.xlu0 %1253
        %v1255 = vsel %vm883, %v1251, 0.0
        %1256 = vadd.xlane.f32.xlu0 %v1255
        %v1257 = vpop.xlane.xlu0 %1256
        %v1258 = vrcp.pop %v1254
        %v1259 = vrcp.pop %v1257
        %v1260 = vmul.f32 %v1249, %v1258
        %v1261 = vmul.f32 %v1251, %v1259
        %v1262 = vpack.c.bf16 %v1261, %v1260
        %1263 = vrot.lane.b32.xlu0 %v828, 64
        %v1264 = vpop.permute.xlu0 %1263
        %v1267 = vsel %vm883, %v1262, 0
        %1269 = vmatprep.subr.bf16.mxu0 0
        %1270 = vmatpush1.bf16.msra.mxu0 %v1264
        %1271 = vmatprep.subr.bf16.mxu0 0
        %1272 = vmatpush1.bf16.msra.mxu0 0
        %1273 = vmatprep.subr.bf16.mxu0 0
        %1274 = vmatpush1.bf16.msra.mxu0 0
        %1275 = vmatprep.subr.bf16.mxu0 0
        %1276 = vmatpush1.bf16.msra.mxu0 0
        %1277 = vmatprep.subr.bf16.mxu0 0
        %1278 = vmatpush1.bf16.msra.mxu0 0
        %1279 = vmatprep.subr.bf16.mxu0 0
        %1280 = vmatpush1.bf16.msra.mxu0 0
        %1281 = vmatprep.subr.bf16.mxu0 0
        %1282 = vmatpush1.bf16.msra.mxu0 0
        %1283 = vmatprep.subr.bf16.mxu0 0
        %1284 = vmatpush1.bf16.msra.mxu0 0
        %1285 = vmatprep.subr.bf16.mxu0 0
        %1286 = vmatpush1.bf16.msra.mxu0 0
        %1287 = vmatprep.subr.bf16.mxu0 0
        %1288 = vmatpush1.bf16.msra.mxu0 0
        %1289 = vmatprep.subr.bf16.mxu0 0
        %1290 = vmatpush1.bf16.msra.mxu0 0
        %1291 = vmatprep.subr.bf16.mxu0 0
        %1292 = vmatpush1.bf16.msra.mxu0 0
        %1293 = vmatprep.subr.bf16.mxu0 0
        %1294 = vmatpush1.bf16.msra.mxu0 0
        %1295 = vmatprep.subr.bf16.mxu0 0
        %1296 = vmatpush1.bf16.msra.mxu0 0
        %1297 = vmatprep.subr.bf16.mxu0 0
        %1298 = vmatpush1.bf16.msra.mxu0 0
        %1299 = vmatprep.subr.bf16.mxu0 0
        %1300 = vmatpush1.bf16.msra.mxu0 0
        %1301 = vmatprep.mubr.bf16.mxu0 0
        %1302 = vmatmul.mubr.bf16.gmra.mrb[0].mxu0 %v1267
        %v1303 = vpop.f32.mrb[0].mxu0
        %v1304 = vadd.f32 0.0, %v1303
        %v1305 = vpop.f32.mrb[0].mxu0
        %v1306 = vpop.f32.mrb[0].mxu0
        %v1307 = vadd.f32 0.0, %v1306
        %v1308 = vpop.f32.mrb[0].mxu0
        %1309 = vdwg.mxu0
        %v1310 = vpack.c.bf16 %v1307, %v1304
        %v1315 = vunpack.c.l.b16 %v818
        %v1316 = vunpack.c.l.b16 %v819
        %v1317 = vunpack.c.l.b16 %v820
        %v1318 = vunpack.c.l.b16 %v821
        %v1319 = vpack.c.b16 %v1316, %v1315
        %v1320 = vpack.c.b16 %v1318, %v1317
        %v1324 = vsel %vm835, %v1310, 0
        %1326 = vmatprep.subr.bf16.mxu0 0
        %1327 = vmatpush1.bf16.msra.mxu0 %v1319
        %1328 = vmatprep.subr.bf16.mxu0 0
        %1329 = vmatpush1.bf16.msra.mxu0 %v1320
        %1330 = vmatprep.subr.bf16.mxu0 0
        %1331 = vmatpush1.bf16.msra.mxu0 0
        %1332 = vmatprep.subr.bf16.mxu0 0
        %1333 = vmatpush1.bf16.msra.mxu0 0
        %1334 = vmatprep.subr.bf16.mxu0 0
        %1335 = vmatpush1.bf16.msra.mxu0 0
        %1336 = vmatprep.subr.bf16.mxu0 0
        %1337 = vmatpush1.bf16.msra.mxu0 0
        %1338 = vmatprep.subr.bf16.mxu0 0
        %1339 = vmatpush1.bf16.msra.mxu0 0
        %1340 = vmatprep.subr.bf16.mxu0 0
        %1341 = vmatpush1.bf16.msra.mxu0 0
        %1342 = vmatprep.subr.bf16.mxu0 0
        %1343 = vmatpush1.bf16.msra.mxu0 0
        %1344 = vmatprep.subr.bf16.mxu0 0
        %1345 = vmatpush1.bf16.msra.mxu0 0
        %1346 = vmatprep.subr.bf16.mxu0 0
        %1347 = vmatpush1.bf16.msra.mxu0 0
        %1348 = vmatprep.subr.bf16.mxu0 0
        %1349 = vmatpush1.bf16.msra.mxu0 0
        %1350 = vmatprep.subr.bf16.mxu0 0
        %1351 = vmatpush1.bf16.msra.mxu0 0
        %1352 = vmatprep.subr.bf16.mxu0 0
        %1353 = vmatpush1.bf16.msra.mxu0 0
        %1354 = vmatprep.subr.bf16.mxu0 0
        %1355 = vmatpush1.bf16.msra.mxu0 0
        %1356 = vmatprep.subr.bf16.mxu0 0
        %1357 = vmatpush1.bf16.msra.mxu0 0
        %1358 = vmatprep.mubr.bf16.mxu0 0
        %1359 = vmatmul.mubr.bf16.gmra.mrb[0].mxu0 %v1324
        %v1360 = vpop.f32.mrb[0].mxu0
        %v1361 = vadd.f32 0.0, %v1360
        %v1362 = vpop.f32.mrb[0].mxu0
        %v1363 = vpop.f32.mrb[0].mxu0
        %v1364 = vadd.f32 0.0, %v1363
        %v1365 = vpop.f32.mrb[0].mxu0
        %1366 = vdwg.mxu0
        %v1367 = vadd.f32 %v1183, %v1361
        %v1368 = vadd.f32 %v1186, %v1364
        %1369 = vrot.lane.b32.xlu0 %v826, 32
        %v1370 = vpop.permute.xlu0 %1369
        %1371 = vrot.lane.b32.xlu0 %v827, 32
        %v1372 = vpop.permute.xlu0 %1371
        %v1374 = vsel %vm835, %v1370, 0
        %v1377 = vsel %vm835, %v1372, 0
        %1379 = vmatprep.subr.bf16.mxu0 0
        %1380 = vmatpush1.bf16.xpose.msra.mxu0 %v1377
        %1381 = vmatprep.subr.bf16.mxu0 0
        %1382 = vmatpush1.bf16.xpose.msra.mxu0 0
        %1383 = vmatprep.subr.bf16.mxu0 0
        %1384 = vmatpush1.bf16.xpose.msra.mxu0 0
        %1385 = vmatprep.subr.bf16.mxu0 0
        %1386 = vmatpush1.bf16.xpose.msra.mxu0 0
        %1387 = vmatprep.subr.bf16.mxu0 0
        %1388 = vmatpush1.bf16.xpose.msra.mxu0 0
        %1389 = vmatprep.subr.bf16.mxu0 0
        %1390 = vmatpush1.bf16.xpose.msra.mxu0 0
        %1391 = vmatprep.subr.bf16.mxu0 0
        %1392 = vmatpush1.bf16.xpose.msra.mxu0 0
        %1393 = vmatprep.subr.bf16.mxu0 0
        %1394 = vmatpush1.bf16.xpose.msra.mxu0 0
        %1395 = vmatprep.subr.bf16.mxu0 0
        %1396 = vmatpush1.bf16.xpose.msra.mxu0 0
        %1397 = vmatprep.subr.bf16.mxu0 0
        %1398 = vmatpush1.bf16.xpose.msra.mxu0 0
        %1399 = vmatprep.subr.bf16.mxu0 0
        %1400 = vmatpush1.bf16.xpose.msra.mxu0 0
        %1401 = vmatprep.subr.bf16.mxu0 0
        %1402 = vmatpush1.bf16.xpose.msra.mxu0 0
        %1403 = vmatprep.subr.bf16.mxu0 0
        %1404 = vmatpush1.bf16.xpose.msra.mxu0 0
        %1405 = vmatprep.subr.bf16.mxu0 0
        %1406 = vmatpush1.bf16.xpose.msra.mxu0 0
        %1407 = vmatprep.subr.bf16.mxu0 0
        %1408 = vmatpush1.bf16.xpose.msra.mxu0 0
        %1409 = vmatprep.subr.bf16.mxu0 0
        %1410 = vmatpush1.bf16.xpose.msra.mxu0 0
        %1411 = vmatprep.mubr.bf16.mxu0 0
        %1412 = vmatmul.mubr.bf16.gmra.mrb[0].mxu0 %v1374
        %v1413 = vpop.f32.mrb[0].mxu0
        %v1414 = vadd.f32 %v833, %v1413
        %v1415 = vpop.f32.mrb[0].mxu0
        %v1416 = vpop.f32.mrb[0].mxu0
        %v1417 = vadd.f32 %v833, %v1416
        %v1418 = vpop.f32.mrb[0].mxu0
        %1419 = vdwg.mxu0
        %v1420 = vsel %vm883, %v1414, -inf
        %1421 = vmax.xlane.f32.xlu0 %v1420
        %v1422 = vpop.xlane.xlu0 %1421
        %v1423 = vsel %vm883, %v1417, -inf
        %1424 = vmax.xlane.f32.xlu0 %v1423
        %v1425 = vpop.xlane.xlu0 %1424
        %v1426 = vsub.f32 %v1414, %v1422
        %v1427 = vsub.f32 %v1417, %v1425
        %v1428 = vmul.f32 %v1426, 1.442695
        %v1429 = vpow.pop %v1428
        %v1430 = vmul.f32 %v1427, 1.442695
        %v1431 = vpow.pop %v1430
        %v1432 = vsel %vm883, %v1429, 0.0
        %1433 = vadd.xlane.f32.xlu0 %v1432
        %v1434 = vpop.xlane.xlu0 %1433
        %v1435 = vsel %vm883, %v1431, 0.0
        %1436 = vadd.xlane.f32.xlu0 %v1435
        %v1437 = vpop.xlane.xlu0 %1436
        %v1438 = vrcp.pop %v1434
        %v1439 = vrcp.pop %v1437
        %v1440 = vmul.f32 %v1429, %v1438
        %v1441 = vmul.f32 %v1431, %v1439
        %v1442 = vpack.c.bf16 %v1441, %v1440
        %1443 = vrot.lane.b32.xlu0 %v828, 32
        %v1444 = vpop.permute.xlu0 %1443
        %v1447 = vsel %vm883, %v1442, 0
        %1449 = vmatprep.subr.bf16.mxu0 0
        %1450 = vmatpush1.bf16.msra.mxu0 %v1444
        %1451 = vmatprep.subr.bf16.mxu0 0
        %1452 = vmatpush1.bf16.msra.mxu0 0
        %1453 = vmatprep.subr.bf16.mxu0 0
        %1454 = vmatpush1.bf16.msra.mxu0 0
        %1455 = vmatprep.subr.bf16.mxu0 0
        %1456 = vmatpush1.bf16.msra.mxu0 0
        %1457 = vmatprep.subr.bf16.mxu0 0
        %1458 = vmatpush1.bf16.msra.mxu0 0
        %1459 = vmatprep.subr.bf16.mxu0 0
        %1460 = vmatpush1.bf16.msra.mxu0 0
        %1461 = vmatprep.subr.bf16.mxu0 0
        %1462 = vmatpush1.bf16.msra.mxu0 0
        %1463 = vmatprep.subr.bf16.mxu0 0
        %1464 = vmatpush1.bf16.msra.mxu0 0
        %1465 = vmatprep.subr.bf16.mxu0 0
        %1466 = vmatpush1.bf16.msra.mxu0 0
        %1467 = vmatprep.subr.bf16.mxu0 0
        %1468 = vmatpush1.bf16.msra.mxu0 0
        %1469 = vmatprep.subr.bf16.mxu0 0
        %1470 = vmatpush1.bf16.msra.mxu0 0
        %1471 = vmatprep.subr.bf16.mxu0 0
        %1472 = vmatpush1.bf16.msra.mxu0 0
        %1473 = vmatprep.subr.bf16.mxu0 0
        %1474 = vmatpush1.bf16.msra.mxu0 0
        %1475 = vmatprep.subr.bf16.mxu0 0
        %1476 = vmatpush1.bf16.msra.mxu0 0
        %1477 = vmatprep.subr.bf16.mxu0 0
        %1478 = vmatpush1.bf16.msra.mxu0 0
        %1479 = vmatprep.subr.bf16.mxu0 0
        %1480 = vmatpush1.bf16.msra.mxu0 0
        %1481 = vmatprep.mubr.bf16.mxu0 0
        %1482 = vmatmul.mubr.bf16.gmra.mrb[0].mxu0 %v1447
        %v1483 = vpop.f32.mrb[0].mxu0
        %v1484 = vadd.f32 0.0, %v1483
        %v1485 = vpop.f32.mrb[0].mxu0
        %v1486 = vpop.f32.mrb[0].mxu0
        %v1487 = vadd.f32 0.0, %v1486
        %v1488 = vpop.f32.mrb[0].mxu0
        %1489 = vdwg.mxu0
        %v1490 = vpack.c.bf16 %v1487, %v1484
        %v1495 = vunpack.c.l.b16 %v822
        %v1496 = vunpack.c.l.b16 %v823
        %v1497 = vunpack.c.l.b16 %v824
        %v1498 = vunpack.c.l.b16 %v825
        %v1499 = vpack.c.b16 %v1496, %v1495
        %v1500 = vpack.c.b16 %v1498, %v1497
        %v1504 = vsel %vm835, %v1490, 0
        %1506 = vmatprep.subr.bf16.mxu0 0
        %1507 = vmatpush1.bf16.msra.mxu0 %v1499
        %1508 = vmatprep.subr.bf16.mxu0 0
        %1509 = vmatpush1.bf16.msra.mxu0 %v1500
        %1510 = vmatprep.subr.bf16.mxu0 0
        %1511 = vmatpush1.bf16.msra.mxu0 0
        %1512 = vmatprep.subr.bf16.mxu0 0
        %1513 = vmatpush1.bf16.msra.mxu0 0
        %1514 = vmatprep.subr.bf16.mxu0 0
        %1515 = vmatpush1.bf16.msra.mxu0 0
        %1516 = vmatprep.subr.bf16.mxu0 0
        %1517 = vmatpush1.bf16.msra.mxu0 0
        %1518 = vmatprep.subr.bf16.mxu0 0
        %1519 = vmatpush1.bf16.msra.mxu0 0
        %1520 = vmatprep.subr.bf16.mxu0 0
        %1521 = vmatpush1.bf16.msra.mxu0 0
        %1522 = vmatprep.subr.bf16.mxu0 0
        %1523 = vmatpush1.bf16.msra.mxu0 0
        %1524 = vmatprep.subr.bf16.mxu0 0
        %1525 = vmatpush1.bf16.msra.mxu0 0
        %1526 = vmatprep.subr.bf16.mxu0 0
        %1527 = vmatpush1.bf16.msra.mxu0 0
        %1528 = vmatprep.subr.bf16.mxu0 0
        %1529 = vmatpush1.bf16.msra.mxu0 0
        %1530 = vmatprep.subr.bf16.mxu0 0
        %1531 = vmatpush1.bf16.msra.mxu0 0
        %1532 = vmatprep.subr.bf16.mxu0 0
        %1533 = vmatpush1.bf16.msra.mxu0 0
        %1534 = vmatprep.subr.bf16.mxu0 0
        %1535 = vmatpush1.bf16.msra.mxu0 0
        %1536 = vmatprep.subr.bf16.mxu0 0
        %1537 = vmatpush1.bf16.msra.mxu0 0
        %1538 = vmatprep.mubr.bf16.mxu0 0
        %1539 = vmatmul.mubr.bf16.gmra.mrb[0].mxu0 %v1504
        %v1540 = vpop.f32.mrb[0].mxu0
        %v1541 = vadd.f32 0.0, %v1540
        %v1542 = vpop.f32.mrb[0].mxu0
        %v1543 = vpop.f32.mrb[0].mxu0
        %v1544 = vadd.f32 0.0, %v1543
        %v1545 = vpop.f32.mrb[0].mxu0
        %1546 = vdwg.mxu0
        %v1547 = vadd.f32 %v1367, %v1541
        %v1548 = vadd.f32 %v1368, %v1544
        %v1549 = vadd.f32 %v522, %v1547
        %v1550 = vadd.f32 %v523, %v1548
        %v1551 = vld [vmem:[%s5] sm:$0x1]
        %v1553 = vlaneseq
        %v1554 = vshrl.u32 %v1553, 7
        %v1555 = vsub.s32 0, %v1554
        %v1556 = vrot.slane %v1551, %v1555
        %v1558 = vadd.f32 %v1549, %v1556
        %v1559 = vadd.f32 %v1550, %v1556
        %1560 = vadd.xlane.f32.xlu0 %v1558
        %v1561 = vpop.xlane.xlu0 %1560
        %1562 = vadd.xlane.f32.xlu0 %v1559
        %v1563 = vpop.xlane.xlu0 %1562
        %v1564 = vmul.f32 %v1561, %v529
        %v1565 = vmul.f32 %v1563, %v529
        %v1566 = vsub.f32 %v1558, %v1564
        %v1567 = vsub.f32 %v1559, %v1565
        %v1568 = vmul.f32 %v1566, %v1566
        %v1569 = vmul.f32 %v1567, %v1567
        %1570 = vadd.xlane.f32.xlu0 %v1568
        %v1571 = vpop.xlane.xlu0 %1570
        %1572 = vadd.xlane.f32.xlu0 %v1569
        %v1573 = vpop.xlane.xlu0 %1572
        %v1574 = vmul.f32 %v1571, %v529
        %v1575 = vmul.f32 %v1573, %v529
        %v1576 = vadd.f32 %v1574, 1e-05
        %v1577 = vadd.f32 %v1575, 1e-05
        %v1578 = vrsqrt.pop %v1576
        %v1579 = vrsqrt.pop %v1577
        %v1580 = vmul.f32 %v1566, %v1578
        %v1581 = vmul.f32 %v1567, %v1579
        %v1582 = vpack.c.bf16 %v1581, %v1580
        %v1583 = vld [vmem:[%s6] sm:$0xff]
        %v1584 = vld [vmem:[%s6 + $0x8] sm:$0xff]
        %v1585 = vld [vmem:[%s6 + $0x10] sm:$0xff]
        %v1586 = vld [vmem:[%s6 + $0x18] sm:$0xff]
        %v1587 = vld [vmem:[%s6 + $0x20] sm:$0xff]
        %v1588 = vld [vmem:[%s6 + $0x28] sm:$0xff]
        %v1589 = vld [vmem:[%s6 + $0x30] sm:$0xff]
        %v1590 = vld [vmem:[%s6 + $0x38] sm:$0xff]
        %v1591 = vld [vmem:[%s6 + $0x40] sm:$0xff]
        %v1592 = vld [vmem:[%s6 + $0x48] sm:$0xff]
        %v1593 = vld [vmem:[%s6 + $0x50] sm:$0xff]
        %v1594 = vld [vmem:[%s6 + $0x58] sm:$0xff]
        %v1595 = vld [vmem:[%s6 + $0x60] sm:$0xff]
        %v1596 = vld [vmem:[%s6 + $0x68] sm:$0xff]
        %v1597 = vld [vmem:[%s6 + $0x70] sm:$0xff]
        %v1598 = vld [vmem:[%s6 + $0x78] sm:$0xff]
        %v1599 = vld [vmem:[%s7] sm:$0x3]
        %v1601 = vlaneseq
        %v1602 = vshrl.u32 %v1601, 7
        %v1603 = vsub.s32 0, %v1602
        %v1604 = vrot.slane %v1599, %v1603
        %v1605 = vlaneseq
        %v1606 = vshrl.u32 %v1605, 7
        %v1607 = vsub.s32 1, %v1606
        %v1608 = vrot.slane %v1599, %v1607
        %v1627 = vunpack.c.l.b16 %v1583
        %v1628 = vunpack.c.h.b16 %v1583
        %v1629 = vunpack.c.l.b16 %v1584
        %v1630 = vunpack.c.h.b16 %v1584
        %v1631 = vunpack.c.l.b16 %v1585
        %v1632 = vunpack.c.h.b16 %v1585
        %v1633 = vunpack.c.l.b16 %v1586
        %v1634 = vunpack.c.h.b16 %v1586
        %v1635 = vunpack.c.l.b16 %v1587
        %v1636 = vunpack.c.h.b16 %v1587
        %v1637 = vunpack.c.l.b16 %v1588
        %v1638 = vunpack.c.h.b16 %v1588
        %v1639 = vunpack.c.l.b16 %v1589
        %v1640 = vunpack.c.h.b16 %v1589
        %v1641 = vunpack.c.l.b16 %v1590
        %v1642 = vunpack.c.h.b16 %v1590
        %v1643 = vunpack.c.l.b16 %v1591
        %v1644 = vunpack.c.h.b16 %v1591
        %v1645 = vunpack.c.l.b16 %v1592
        %v1646 = vunpack.c.h.b16 %v1592
        %v1647 = vunpack.c.l.b16 %v1593
        %v1648 = vunpack.c.h.b16 %v1593
        %v1649 = vunpack.c.l.b16 %v1594
        %v1650 = vunpack.c.h.b16 %v1594
        %v1651 = vunpack.c.l.b16 %v1595
        %v1652 = vunpack.c.h.b16 %v1595
        %v1653 = vunpack.c.l.b16 %v1596
        %v1654 = vunpack.c.h.b16 %v1596
        %v1655 = vunpack.c.l.b16 %v1597
        %v1656 = vunpack.c.h.b16 %v1597
        %v1657 = vunpack.c.l.b16 %v1598
        %v1658 = vunpack.c.h.b16 %v1598
        %v1659 = vpack.c.b16 %v1629, %v1627
        %v1660 = vpack.c.b16 %v1630, %v1628
        %v1661 = vpack.c.b16 %v1633, %v1631
        %v1662 = vpack.c.b16 %v1634, %v1632
        %v1663 = vpack.c.b16 %v1637, %v1635
        %v1664 = vpack.c.b16 %v1638, %v1636
        %v1665 = vpack.c.b16 %v1641, %v1639
        %v1666 = vpack.c.b16 %v1642, %v1640
        %v1667 = vpack.c.b16 %v1645, %v1643
        %v1668 = vpack.c.b16 %v1646, %v1644
        %v1669 = vpack.c.b16 %v1649, %v1647
        %v1670 = vpack.c.b16 %v1650, %v1648
        %v1671 = vpack.c.b16 %v1653, %v1651
        %v1672 = vpack.c.b16 %v1654, %v1652
        %v1673 = vpack.c.b16 %v1657, %v1655
        %v1674 = vpack.c.b16 %v1658, %v1656
        %1691 = vmatprep.subr.bf16.mxu0 %v1660
        %1692 = vmatpush1.bf16.msra.mxu0 %v1659
        %1693 = vmatprep.subr.bf16.mxu0 %v1662
        %1694 = vmatpush1.bf16.msra.mxu0 %v1661
        %1695 = vmatprep.subr.bf16.mxu0 %v1664
        %1696 = vmatpush1.bf16.msra.mxu0 %v1663
        %1697 = vmatprep.subr.bf16.mxu0 %v1666
        %1698 = vmatpush1.bf16.msra.mxu0 %v1665
        %1699 = vmatprep.subr.bf16.mxu0 %v1668
        %1700 = vmatpush1.bf16.msra.mxu0 %v1667
        %1701 = vmatprep.subr.bf16.mxu0 %v1670
        %1702 = vmatpush1.bf16.msra.mxu0 %v1669
        %1703 = vmatprep.subr.bf16.mxu0 %v1672
        %1704 = vmatpush1.bf16.msra.mxu0 %v1671
        %1705 = vmatprep.subr.bf16.mxu0 %v1674
        %1706 = vmatpush1.bf16.msra.mxu0 %v1673
        %1707 = vmatprep.subr.bf16.mxu0 0
        %1708 = vmatpush1.bf16.msra.mxu0 0
        %1709 = vmatprep.subr.bf16.mxu0 0
        %1710 = vmatpush1.bf16.msra.mxu0 0
        %1711 = vmatprep.subr.bf16.mxu0 0
        %1712 = vmatpush1.bf16.msra.mxu0 0
        %1713 = vmatprep.subr.bf16.mxu0 0
        %1714 = vmatpush1.bf16.msra.mxu0 0
        %1715 = vmatprep.subr.bf16.mxu0 0
        %1716 = vmatpush1.bf16.msra.mxu0 0
        %1717 = vmatprep.subr.bf16.mxu0 0
        %1718 = vmatpush1.bf16.msra.mxu0 0
        %1719 = vmatprep.subr.bf16.mxu0 0
        %1720 = vmatpush1.bf16.msra.mxu0 0
        %1721 = vmatprep.subr.bf16.mxu0 0
        %1722 = vmatpush1.bf16.msra.mxu0 0
        %1723 = vmatprep.mubr.bf16.mxu0 0
        %1724 = vmatmul.mubr.bf16.gmra.mrb[0].mxu0 %v1582
        %v1725 = vpop.f32.mrb[0].mxu0
        %v1726 = vadd.f32 %v1604, %v1725
        %v1727 = vpop.f32.mrb[0].mxu0
        %v1728 = vadd.f32 %v1608, %v1727
        %v1729 = vpop.f32.mrb[0].mxu0
        %v1730 = vadd.f32 %v1604, %v1729
        %v1731 = vpop.f32.mrb[0].mxu0
        %v1732 = vadd.f32 %v1608, %v1731
        %1733 = vdwg.mxu0
        %v1734 = vmul.f32 %v1726, 0.5
        %v1735 = vmul.f32 %v1728, 0.5
        %v1736 = vmul.f32 %v1730, 0.5
        %v1737 = vmul.f32 %v1732, 0.5
        %v1738 = vmul.f32 %v1726, 0.70710677
        %v1739 = vmul.f32 %v1728, 0.70710677
        %v1740 = vmul.f32 %v1730, 0.70710677
        %v1741 = vmul.f32 %v1732, 0.70710677
        %v1742 = verf.f32.pop %v1738
        %v1743 = verf.f32.pop %v1739
        %v1744 = verf.f32.pop %v1740
        %v1745 = verf.f32.pop %v1741
        %v1746 = vadd.f32 %v1742, 1.0
        %v1747 = vadd.f32 %v1743, 1.0
        %v1748 = vadd.f32 %v1744, 1.0
        %v1749 = vadd.f32 %v1745, 1.0
        %v1750 = vmul.f32 %v1734, %v1746
        %v1751 = vmul.f32 %v1735, %v1747
        %v1752 = vmul.f32 %v1736, %v1748
        %v1753 = vmul.f32 %v1737, %v1749
        %v1754 = vpack.c.bf16 %v1752, %v1750
        %v1755 = vpack.c.bf16 %v1753, %v1751
        %v1756 = vld [vmem:[%s8] sm:$0xf]
        %v1757 = vld [vmem:[%s8 + $0x4] sm:$0xf]
        %v1758 = vld [vmem:[%s8 + $0x8] sm:$0xf]
        %v1759 = vld [vmem:[%s8 + $0xc] sm:$0xf]
        %v1760 = vld [vmem:[%s8 + $0x10] sm:$0xf]
        %v1761 = vld [vmem:[%s8 + $0x14] sm:$0xf]
        %v1762 = vld [vmem:[%s8 + $0x18] sm:$0xf]
        %v1763 = vld [vmem:[%s8 + $0x1c] sm:$0xf]
        %v1764 = vld [vmem:[%s8 + $0x20] sm:$0xf]
        %v1765 = vld [vmem:[%s8 + $0x24] sm:$0xf]
        %v1766 = vld [vmem:[%s8 + $0x28] sm:$0xf]
        %v1767 = vld [vmem:[%s8 + $0x2c] sm:$0xf]
        %v1768 = vld [vmem:[%s8 + $0x30] sm:$0xf]
        %v1769 = vld [vmem:[%s8 + $0x34] sm:$0xf]
        %v1770 = vld [vmem:[%s8 + $0x38] sm:$0xf]
        %v1771 = vld [vmem:[%s8 + $0x3c] sm:$0xf]
        %v1772 = vld [vmem:[%s8 + $0x40] sm:$0xf]
        %v1773 = vld [vmem:[%s8 + $0x44] sm:$0xf]
        %v1774 = vld [vmem:[%s8 + $0x48] sm:$0xf]
        %v1775 = vld [vmem:[%s8 + $0x4c] sm:$0xf]
        %v1776 = vld [vmem:[%s8 + $0x50] sm:$0xf]
        %v1777 = vld [vmem:[%s8 + $0x54] sm:$0xf]
        %v1778 = vld [vmem:[%s8 + $0x58] sm:$0xf]
        %v1779 = vld [vmem:[%s8 + $0x5c] sm:$0xf]
        %v1780 = vld [vmem:[%s8 + $0x60] sm:$0xf]
        %v1781 = vld [vmem:[%s8 + $0x64] sm:$0xf]
        %v1782 = vld [vmem:[%s8 + $0x68] sm:$0xf]
        %v1783 = vld [vmem:[%s8 + $0x6c] sm:$0xf]
        %v1784 = vld [vmem:[%s8 + $0x70] sm:$0xf]
        %v1785 = vld [vmem:[%s8 + $0x74] sm:$0xf]
        %v1786 = vld [vmem:[%s8 + $0x78] sm:$0xf]
        %v1787 = vld [vmem:[%s8 + $0x7c] sm:$0xf]
        %v1788 = vld [vmem:[%s9] sm:$0x1]
        %v1790 = vlaneseq
        %v1791 = vshrl.u32 %v1790, 7
        %v1792 = vsub.s32 0, %v1791
        %v1793 = vrot.slane %v1788, %v1792
        %v1827 = vunpack.c.l.b16 %v1756
        %v1828 = vunpack.c.l.b16 %v1757
        %v1829 = vunpack.c.l.b16 %v1758
        %v1830 = vunpack.c.l.b16 %v1759
        %v1831 = vunpack.c.l.b16 %v1760
        %v1832 = vunpack.c.l.b16 %v1761
        %v1833 = vunpack.c.l.b16 %v1762
        %v1834 = vunpack.c.l.b16 %v1763
        %v1835 = vunpack.c.l.b16 %v1764
        %v1836 = vunpack.c.l.b16 %v1765
        %v1837 = vunpack.c.l.b16 %v1766
        %v1838 = vunpack.c.l.b16 %v1767
        %v1839 = vunpack.c.l.b16 %v1768
        %v1840 = vunpack.c.l.b16 %v1769
        %v1841 = vunpack.c.l.b16 %v1770
        %v1842 = vunpack.c.l.b16 %v1771
        %v1843 = vunpack.c.l.b16 %v1772
        %v1844 = vunpack.c.l.b16 %v1773
        %v1845 = vunpack.c.l.b16 %v1774
        %v1846 = vunpack.c.l.b16 %v1775
        %v1847 = vunpack.c.l.b16 %v1776
        %v1848 = vunpack.c.l.b16 %v1777
        %v1849 = vunpack.c.l.b16 %v1778
        %v1850 = vunpack.c.l.b16 %v1779
        %v1851 = vunpack.c.l.b16 %v1780
        %v1852 = vunpack.c.l.b16 %v1781
        %v1853 = vunpack.c.l.b16 %v1782
        %v1854 = vunpack.c.l.b16 %v1783
        %v1855 = vunpack.c.l.b16 %v1784
        %v1856 = vunpack.c.l.b16 %v1785
        %v1857 = vunpack.c.l.b16 %v1786
        %v1858 = vunpack.c.l.b16 %v1787
        %v1859 = vpack.c.b16 %v1828, %v1827
        %v1860 = vpack.c.b16 %v1830, %v1829
        %v1861 = vpack.c.b16 %v1832, %v1831
        %v1862 = vpack.c.b16 %v1834, %v1833
        %v1863 = vpack.c.b16 %v1836, %v1835
        %v1864 = vpack.c.b16 %v1838, %v1837
        %v1865 = vpack.c.b16 %v1840, %v1839
        %v1866 = vpack.c.b16 %v1842, %v1841
        %v1867 = vpack.c.b16 %v1844, %v1843
        %v1868 = vpack.c.b16 %v1846, %v1845
        %v1869 = vpack.c.b16 %v1848, %v1847
        %v1870 = vpack.c.b16 %v1850, %v1849
        %v1871 = vpack.c.b16 %v1852, %v1851
        %v1872 = vpack.c.b16 %v1854, %v1853
        %v1873 = vpack.c.b16 %v1856, %v1855
        %v1874 = vpack.c.b16 %v1858, %v1857
        %1891 = vmatprep.subr.bf16.mxu0 0
        %1892 = vmatpush1.bf16.msra.mxu0 %v1859
        %1893 = vmatprep.subr.bf16.mxu0 0
        %1894 = vmatpush1.bf16.msra.mxu0 %v1860
        %1895 = vmatprep.subr.bf16.mxu0 0
        %1896 = vmatpush1.bf16.msra.mxu0 %v1861
        %1897 = vmatprep.subr.bf16.mxu0 0
        %1898 = vmatpush1.bf16.msra.mxu0 %v1862
        %1899 = vmatprep.subr.bf16.mxu0 0
        %1900 = vmatpush1.bf16.msra.mxu0 %v1863
        %1901 = vmatprep.subr.bf16.mxu0 0
        %1902 = vmatpush1.bf16.msra.mxu0 %v1864
        %1903 = vmatprep.subr.bf16.mxu0 0
        %1904 = vmatpush1.bf16.msra.mxu0 %v1865
        %1905 = vmatprep.subr.bf16.mxu0 0
        %1906 = vmatpush1.bf16.msra.mxu0 %v1866
        %1907 = vmatprep.subr.bf16.mxu0 0
        %1908 = vmatpush1.bf16.msra.mxu0 %v1867
        %1909 = vmatprep.subr.bf16.mxu0 0
        %1910 = vmatpush1.bf16.msra.mxu0 %v1868
        %1911 = vmatprep.subr.bf16.mxu0 0
        %1912 = vmatpush1.bf16.msra.mxu0 %v1869
        %1913 = vmatprep.subr.bf16.mxu0 0
        %1914 = vmatpush1.bf16.msra.mxu0 %v1870
        %1915 = vmatprep.subr.bf16.mxu0 0
        %1916 = vmatpush1.bf16.msra.mxu0 %v1871
        %1917 = vmatprep.subr.bf16.mxu0 0
        %1918 = vmatpush1.bf16.msra.mxu0 %v1872
        %1919 = vmatprep.subr.bf16.mxu0 0
        %1920 = vmatpush1.bf16.msra.mxu0 %v1873
        %1921 = vmatprep.subr.bf16.mxu0 0
        %1922 = vmatpush1.bf16.msra.mxu0 %v1874
        %1923 = vmatprep.mubr.bf16.mxu0 %v1755
        %1924 = vmatmul.mubr.bf16.gmra.mrb[0].mxu0 %v1754
        %v1925 = vpop.f32.mrb[0].mxu0
        %v1926 = vadd.f32 %v1793, %v1925
        %v1927 = vpop.f32.mrb[0].mxu0
        %v1928 = vpop.f32.mrb[0].mxu0
        %v1929 = vadd.f32 %v1793, %v1928
        %v1930 = vpop.f32.mrb[0].mxu0
        %1931 = vdwg.mxu0
        %v1932 = vadd.f32 %v1558, %v1926
        %v1933 = vadd.f32 %v1559, %v1929
        %1934 = vadd.xlane.f32.xlu0 %v1932
        %v1935 = vpop.xlane.xlu0 %1934
        %1936 = vadd.xlane.f32.xlu0 %v1933
        %v1937 = vpop.xlane.xlu0 %1936
        %v1938 = vmul.f32 %v1935, %v529
        %v1939 = vmul.f32 %v1937, %v529
        %v1940 = vsub.f32 %v1932, %v1938
        %v1941 = vsub.f32 %v1933, %v1939
        %v1942 = vmul.f32 %v1940, %v1940
        %v1943 = vmul.f32 %v1941, %v1941
        %1944 = vadd.xlane.f32.xlu0 %v1942
        %v1945 = vpop.xlane.xlu0 %1944
        %1946 = vadd.xlane.f32.xlu0 %v1943
        %v1947 = vpop.xlane.xlu0 %1946
        %v1948 = vmul.f32 %v1945, %v529
        %v1949 = vmul.f32 %v1947, %v529
        %v1950 = vadd.f32 %v1948, 1e-05
        %v1951 = vadd.f32 %v1949, 1e-05
        %v1952 = vrsqrt.pop %v1950
        %v1953 = vrsqrt.pop %v1951
        %v1954 = vmul.f32 %v1940, %v1952
        %v1955 = vmul.f32 %v1941, %v1953
        %v1956 = vpack.c.bf16 %v1955, %v1954
        %s1957 = scalar_lea.vmem %s2, 192
        %v1958 = vld [vmem:[%s1957] sm:$0xff]
        %v1959 = vld [vmem:[%s1957 + $0x8] sm:$0xf]
        %v1960 = vld [vmem:[%s1957 + $0xc] sm:$0xff]
        %v1961 = vld [vmem:[%s1957 + $0x14] sm:$0xf]
        %v1962 = vld [vmem:[%s1957 + $0x18] sm:$0xff]
        %v1963 = vld [vmem:[%s1957 + $0x20] sm:$0xf]
        %v1964 = vld [vmem:[%s1957 + $0x24] sm:$0xff]
        %v1965 = vld [vmem:[%s1957 + $0x2c] sm:$0xf]
        %v1966 = vld [vmem:[%s1957 + $0x30] sm:$0xff]
        %v1967 = vld [vmem:[%s1957 + $0x38] sm:$0xf]
        %v1968 = vld [vmem:[%s1957 + $0x3c] sm:$0xff]
        %v1969 = vld [vmem:[%s1957 + $0x44] sm:$0xf]
        %v1970 = vld [vmem:[%s1957 + $0x48] sm:$0xff]
        %v1971 = vld [vmem:[%s1957 + $0x50] sm:$0xf]
        %v1972 = vld [vmem:[%s1957 + $0x54] sm:$0xff]
        %v1973 = vld [vmem:[%s1957 + $0x5c] sm:$0xf]
        %v1974 = vld [vmem:[%s1957 + $0x60] sm:$0xff]
        %v1975 = vld [vmem:[%s1957 + $0x68] sm:$0xf]
        %v1976 = vld [vmem:[%s1957 + $0x6c] sm:$0xff]
        %v1977 = vld [vmem:[%s1957 + $0x74] sm:$0xf]
        %v1978 = vld [vmem:[%s1957 + $0x78] sm:$0xff]
        %v1979 = vld [vmem:[%s1957 + $0x80] sm:$0xf]
        %v1980 = vld [vmem:[%s1957 + $0x84] sm:$0xff]
        %v1981 = vld [vmem:[%s1957 + $0x8c] sm:$0xf]
        %v1982 = vld [vmem:[%s1957 + $0x90] sm:$0xff]
        %v1983 = vld [vmem:[%s1957 + $0x98] sm:$0xf]
        %v1984 = vld [vmem:[%s1957 + $0x9c] sm:$0xff]
        %v1985 = vld [vmem:[%s1957 + $0xa4] sm:$0xf]
        %v1986 = vld [vmem:[%s1957 + $0xa8] sm:$0xff]
        %v1987 = vld [vmem:[%s1957 + $0xb0] sm:$0xf]
        %v1988 = vld [vmem:[%s1957 + $0xb4] sm:$0xff]
        %v1989 = vld [vmem:[%s1957 + $0xbc] sm:$0xf]
        %s1990 = scalar_lea.vmem %s3, 3
        %v1991 = vld [vmem:[%s1990] sm:$0x7]
        %v1993 = vlaneseq
        %v1994 = vshrl.u32 %v1993, 7
        %v1995 = vsub.s32 0, %v1994
        %v1996 = vrot.slane %v1991, %v1995
        %v1997 = vlaneseq
        %v1998 = vshrl.u32 %v1997, 7
        %v1999 = vsub.s32 1, %v1998
        %v2000 = vrot.slane %v1991, %v1999
        %v2001 = vlaneseq
        %v2002 = vshrl.u32 %v2001, 7
        %v2003 = vsub.s32 2, %v2002
        %v2004 = vrot.slane %v1991, %v2003
        %v2040 = vunpack.c.l.b16 %v1958
        %v2041 = vunpack.c.h.b16 %v1958
        %v2042 = vunpack.c.l.b16 %v1959
        %v2043 = vunpack.c.l.b16 %v1960
        %v2044 = vunpack.c.h.b16 %v1960
        %v2045 = vunpack.c.l.b16 %v1961
        %v2046 = vunpack.c.l.b16 %v1962
        %v2047 = vunpack.c.h.b16 %v1962
        %v2048 = vunpack.c.l.b16 %v1963
        %v2049 = vunpack.c.l.b16 %v1964
        %v2050 = vunpack.c.h.b16 %v1964
        %v2051 = vunpack.c.l.b16 %v1965
        %v2052 = vunpack.c.l.b16 %v1966
        %v2053 = vunpack.c.h.b16 %v1966
        %v2054 = vunpack.c.l.b16 %v1967
        %v2055 = vunpack.c.l.b16 %v1968
        %v2056 = vunpack.c.h.b16 %v1968
        %v2057 = vunpack.c.l.b16 %v1969
        %v2058 = vunpack.c.l.b16 %v1970
        %v2059 = vunpack.c.h.b16 %v1970
        %v2060 = vunpack.c.l.b16 %v1971
        %v2061 = vunpack.c.l.b16 %v1972
        %v2062 = vunpack.c.h.b16 %v1972
        %v2063 = vunpack.c.l.b16 %v1973
        %v2064 = vunpack.c.l.b16 %v1974
        %v2065 = vunpack.c.h.b16 %v1974
        %v2066 = vunpack.c.l.b16 %v1975
        %v2067 = vunpack.c.l.b16 %v1976
        %v2068 = vunpack.c.h.b16 %v1976
        %v2069 = vunpack.c.l.b16 %v1977
        %v2070 = vunpack.c.l.b16 %v1978
        %v2071 = vunpack.c.h.b16 %v1978
        %v2072 = vunpack.c.l.b16 %v1979
        %v2073 = vunpack.c.l.b16 %v1980
        %v2074 = vunpack.c.h.b16 %v1980
        %v2075 = vunpack.c.l.b16 %v1981
        %v2076 = vunpack.c.l.b16 %v1982
        %v2077 = vunpack.c.h.b16 %v1982
        %v2078 = vunpack.c.l.b16 %v1983
        %v2079 = vunpack.c.l.b16 %v1984
        %v2080 = vunpack.c.h.b16 %v1984
        %v2081 = vunpack.c.l.b16 %v1985
        %v2082 = vunpack.c.l.b16 %v1986
        %v2083 = vunpack.c.h.b16 %v1986
        %v2084 = vunpack.c.l.b16 %v1987
        %v2085 = vunpack.c.l.b16 %v1988
        %v2086 = vunpack.c.h.b16 %v1988
        %v2087 = vunpack.c.l.b16 %v1989
        %v2088 = vpack.c.b16 %v2043, %v2040
        %v2089 = vpack.c.b16 %v2044, %v2041
        %v2090 = vpack.c.b16 %v2045, %v2042
        %v2091 = vpack.c.b16 %v2049, %v2046
        %v2092 = vpack.c.b16 %v2050, %v2047
        %v2093 = vpack.c.b16 %v2051, %v2048
        %v2094 = vpack.c.b16 %v2055, %v2052
        %v2095 = vpack.c.b16 %v2056, %v2053
        %v2096 = vpack.c.b16 %v2057, %v2054
        %v2097 = vpack.c.b16 %v2061, %v2058
        %v2098 = vpack.c.b16 %v2062, %v2059
        %v2099 = vpack.c.b16 %v2063, %v2060
        %v2100 = vpack.c.b16 %v2067, %v2064
        %v2101 = vpack.c.b16 %v2068, %v2065
        %v2102 = vpack.c.b16 %v2069, %v2066
        %v2103 = vpack.c.b16 %v2073, %v2070
        %v2104 = vpack.c.b16 %v2074, %v2071
        %v2105 = vpack.c.b16 %v2075, %v2072
        %v2106 = vpack.c.b16 %v2079, %v2076
        %v2107 = vpack.c.b16 %v2080, %v2077
        %v2108 = vpack.c.b16 %v2081, %v2078
        %v2109 = vpack.c.b16 %v2085, %v2082
        %v2110 = vpack.c.b16 %v2086, %v2083
        %v2111 = vpack.c.b16 %v2087, %v2084
        %2136 = vmatprep.subr.bf16.mxu0 %v2089
        %2137 = vmatpush1.bf16.msra.mxu0 %v2088
        %2138 = vmatprep.subr.bf16.mxu0 %v2092
        %2139 = vmatpush1.bf16.msra.mxu0 %v2091
        %2140 = vmatprep.subr.bf16.mxu0 %v2095
        %2141 = vmatpush1.bf16.msra.mxu0 %v2094
        %2142 = vmatprep.subr.bf16.mxu0 %v2098
        %2143 = vmatpush1.bf16.msra.mxu0 %v2097
        %2144 = vmatprep.subr.bf16.mxu0 %v2101
        %2145 = vmatpush1.bf16.msra.mxu0 %v2100
        %2146 = vmatprep.subr.bf16.mxu0 %v2104
        %2147 = vmatpush1.bf16.msra.mxu0 %v2103
        %2148 = vmatprep.subr.bf16.mxu0 %v2107
        %2149 = vmatpush1.bf16.msra.mxu0 %v2106
        %2150 = vmatprep.subr.bf16.mxu0 %v2110
        %2151 = vmatpush1.bf16.msra.mxu0 %v2109
        %2152 = vmatprep.subr.bf16.mxu0 0
        %2153 = vmatpush1.bf16.msra.mxu0 0
        %2154 = vmatprep.subr.bf16.mxu0 0
        %2155 = vmatpush1.bf16.msra.mxu0 0
        %2156 = vmatprep.subr.bf16.mxu0 0
        %2157 = vmatpush1.bf16.msra.mxu0 0
        %2158 = vmatprep.subr.bf16.mxu0 0
        %2159 = vmatpush1.bf16.msra.mxu0 0
        %2160 = vmatprep.subr.bf16.mxu0 0
        %2161 = vmatpush1.bf16.msra.mxu0 0
        %2162 = vmatprep.subr.bf16.mxu0 0
        %2163 = vmatpush1.bf16.msra.mxu0 0
        %2164 = vmatprep.subr.bf16.mxu0 0
        %2165 = vmatpush1.bf16.msra.mxu0 0
        %2166 = vmatprep.subr.bf16.mxu0 0
        %2167 = vmatpush1.bf16.msra.mxu0 0
        %2168 = vmatprep.mubr.bf16.mxu0 0
        %2169 = vmatmul.mubr.bf16.gmra.mrb[0].mxu0 %v1956
        %v2170 = vpop.f32.mrb[0].mxu0
        %v2171 = vadd.f32 %v1996, %v2170
        %v2172 = vpop.f32.mrb[0].mxu0
        %v2173 = vadd.f32 %v2000, %v2172
        %v2174 = vpop.f32.mrb[0].mxu0
        %v2175 = vadd.f32 %v1996, %v2174
        %v2176 = vpop.f32.mrb[0].mxu0
        %v2177 = vadd.f32 %v2000, %v2176
        %2178 = vdwg.mxu0
        %2179 = vmatprep.subr.bf16.mxu0 0
        %2180 = vmatpush1.bf16.msra.mxu0 %v2090
        %2181 = vmatprep.subr.bf16.mxu0 0
        %2182 = vmatpush1.bf16.msra.mxu0 %v2093
        %2183 = vmatprep.subr.bf16.mxu0 0
        %2184 = vmatpush1.bf16.msra.mxu0 %v2096
        %2185 = vmatprep.subr.bf16.mxu0 0
        %2186 = vmatpush1.bf16.msra.mxu0 %v2099
        %2187 = vmatprep.subr.bf16.mxu0 0
        %2188 = vmatpush1.bf16.msra.mxu0 %v2102
        %2189 = vmatprep.subr.bf16.mxu0 0
        %2190 = vmatpush1.bf16.msra.mxu0 %v2105
        %2191 = vmatprep.subr.bf16.mxu0 0
        %2192 = vmatpush1.bf16.msra.mxu0 %v2108
        %2193 = vmatprep.subr.bf16.mxu0 0
        %2194 = vmatpush1.bf16.msra.mxu0 %v2111
        %2195 = vmatprep.subr.bf16.mxu0 0
        %2196 = vmatpush1.bf16.msra.mxu0 0
        %2197 = vmatprep.subr.bf16.mxu0 0
        %2198 = vmatpush1.bf16.msra.mxu0 0
        %2199 = vmatprep.subr.bf16.mxu0 0
        %2200 = vmatpush1.bf16.msra.mxu0 0
        %2201 = vmatprep.subr.bf16.mxu0 0
        %2202 = vmatpush1.bf16.msra.mxu0 0
        %2203 = vmatprep.subr.bf16.mxu0 0
        %2204 = vmatpush1.bf16.msra.mxu0 0
        %2205 = vmatprep.subr.bf16.mxu0 0
        %2206 = vmatpush1.bf16.msra.mxu0 0
        %2207 = vmatprep.subr.bf16.mxu0 0
        %2208 = vmatpush1.bf16.msra.mxu0 0
        %2209 = vmatprep.subr.bf16.mxu0 0
        %2210 = vmatpush1.bf16.msra.mxu0 0
        %2211 = vmatprep.mubr.bf16.mxu0 0
        %2212 = vmatmul.mubr.bf16.gmra.mrb[0].mxu0 %v1956
        %v2213 = vpop.f32.mrb[0].mxu0
        %v2214 = vadd.f32 %v2004, %v2213
        %v2215 = vpop.f32.mrb[0].mxu0
        %v2216 = vpop.f32.mrb[0].mxu0
        %v2217 = vadd.f32 %v2004, %v2216
        %v2218 = vpop.f32.mrb[0].mxu0
        %2219 = vdwg.mxu0
        %s2220 = scalar_lea.vmem [#allocation2], 64
        %v2221 = vld [vmem:[%s2220] sm:$0xf]
        %v2222 = vld [vmem:[%s2220 + $0x4] sm:$0xf]
        %v2223 = vld [vmem:[%s2220 + $0x8] sm:$0xf]
        %v2224 = vld [vmem:[%s2220 + $0xc] sm:$0xf]
        %v2225 = vld [vmem:[%s2220 + $0x10] sm:$0xf]
        %v2226 = vld [vmem:[%s2220 + $0x14] sm:$0xf]
        %v2227 = vld [vmem:[%s2220 + $0x18] sm:$0xf]
        %v2228 = vld [vmem:[%s2220 + $0x1c] sm:$0xf]
        %v2229 = vld [vmem:[%s2220 + $0x20] sm:$0xf]
        %v2230 = vld [vmem:[%s2220 + $0x24] sm:$0xf]
        %v2231 = vld [vmem:[%s2220 + $0x28] sm:$0xf]
        %v2232 = vld [vmem:[%s2220 + $0x2c] sm:$0xf]
        %v2233 = vld [vmem:[%s2220 + $0x30] sm:$0xf]
        %v2234 = vld [vmem:[%s2220 + $0x34] sm:$0xf]
        %v2235 = vld [vmem:[%s2220 + $0x38] sm:$0xf]
        %v2236 = vld [vmem:[%s2220 + $0x3c] sm:$0xf]
        %v2237 = vpack.c.bf16 %v2175, %v2171
        %v2238 = vpack.c.bf16 %v2177, %v2173
        %v2239 = vpack.c.bf16 %v2217, %v2214
        %v2241 = vsel %vm835, %v2237, 0
        %v2244 = vsel %vm835, %v2238, 0
        %2246 = vmatprep.subr.bf16.mxu0 0
        %2247 = vmatpush1.bf16.xpose.msra.mxu0 %v2244
        %2248 = vmatprep.subr.bf16.mxu0 0
        %2249 = vmatpush1.bf16.xpose.msra.mxu0 0
        %2250 = vmatprep.subr.bf16.mxu0 0
        %2251 = vmatpush1.bf16.xpose.msra.mxu0 0
        %2252 = vmatprep.subr.bf16.mxu0 0
        %2253 = vmatpush1.bf16.xpose.msra.mxu0 0
        %2254 = vmatprep.subr.bf16.mxu0 0
        %2255 = vmatpush1.bf16.xpose.msra.mxu0 0
        %2256 = vmatprep.subr.bf16.mxu0 0
        %2257 = vmatpush1.bf16.xpose.msra.mxu0 0
        %2258 = vmatprep.subr.bf16.mxu0 0
        %2259 = vmatpush1.bf16.xpose.msra.mxu0 0
        %2260 = vmatprep.subr.bf16.mxu0 0
        %2261 = vmatpush1.bf16.xpose.msra.mxu0 0
        %2262 = vmatprep.subr.bf16.mxu0 0
        %2263 = vmatpush1.bf16.xpose.msra.mxu0 0
        %2264 = vmatprep.subr.bf16.mxu0 0
        %2265 = vmatpush1.bf16.xpose.msra.mxu0 0
        %2266 = vmatprep.subr.bf16.mxu0 0
        %2267 = vmatpush1.bf16.xpose.msra.mxu0 0
        %2268 = vmatprep.subr.bf16.mxu0 0
        %2269 = vmatpush1.bf16.xpose.msra.mxu0 0
        %2270 = vmatprep.subr.bf16.mxu0 0
        %2271 = vmatpush1.bf16.xpose.msra.mxu0 0
        %2272 = vmatprep.subr.bf16.mxu0 0
        %2273 = vmatpush1.bf16.xpose.msra.mxu0 0
        %2274 = vmatprep.subr.bf16.mxu0 0
        %2275 = vmatpush1.bf16.xpose.msra.mxu0 0
        %2276 = vmatprep.subr.bf16.mxu0 0
        %2277 = vmatpush1.bf16.xpose.msra.mxu0 0
        %2278 = vmatprep.mubr.bf16.mxu0 0
        %2279 = vmatmul.mubr.bf16.gmra.mrb[0].mxu0 %v2241
        %v2280 = vpop.f32.mrb[0].mxu0
        %v2281 = vadd.f32 %v833, %v2280
        %v2282 = vpop.f32.mrb[0].mxu0
        %v2283 = vpop.f32.mrb[0].mxu0
        %v2284 = vadd.f32 %v833, %v2283
        %v2285 = vpop.f32.mrb[0].mxu0
        %2286 = vdwg.mxu0
        %v2287 = vsel %vm883, %v2281, -inf
        %2288 = vmax.xlane.f32.xlu0 %v2287
        %v2289 = vpop.xlane.xlu0 %2288
        %v2290 = vsel %vm883, %v2284, -inf
        %2291 = vmax.xlane.f32.xlu0 %v2290
        %v2292 = vpop.xlane.xlu0 %2291
        %v2293 = vsub.f32 %v2281, %v2289
        %v2294 = vsub.f32 %v2284, %v2292
        %v2295 = vmul.f32 %v2293, 1.442695
        %v2296 = vpow.pop %v2295
        %v2297 = vmul.f32 %v2294, 1.442695
        %v2298 = vpow.pop %v2297
        %v2299 = vsel %vm883, %v2296, 0.0
        %2300 = vadd.xlane.f32.xlu0 %v2299
        %v2301 = vpop.xlane.xlu0 %2300
        %v2302 = vsel %vm883, %v2298, 0.0
        %2303 = vadd.xlane.f32.xlu0 %v2302
        %v2304 = vpop.xlane.xlu0 %2303
        %v2305 = vrcp.pop %v2301
        %v2306 = vrcp.pop %v2304
        %v2307 = vmul.f32 %v2296, %v2305
        %v2308 = vmul.f32 %v2298, %v2306
        %v2309 = vpack.c.bf16 %v2308, %v2307
        %v2311 = vsel %vm883, %v2309, 0
        %2313 = vmatprep.subr.bf16.mxu0 0
        %2314 = vmatpush1.bf16.msra.mxu0 %v2239
        %2315 = vmatprep.subr.bf16.mxu0 0
        %2316 = vmatpush1.bf16.msra.mxu0 0
        %2317 = vmatprep.subr.bf16.mxu0 0
        %2318 = vmatpush1.bf16.msra.mxu0 0
        %2319 = vmatprep.subr.bf16.mxu0 0
        %2320 = vmatpush1.bf16.msra.mxu0 0
        %2321 = vmatprep.subr.bf16.mxu0 0
        %2322 = vmatpush1.bf16.msra.mxu0 0
        %2323 = vmatprep.subr.bf16.mxu0 0
        %2324 = vmatpush1.bf16.msra.mxu0 0
        %2325 = vmatprep.subr.bf16.mxu0 0
        %2326 = vmatpush1.bf16.msra.mxu0 0
        %2327 = vmatprep.subr.bf16.mxu0 0
        %2328 = vmatpush1.bf16.msra.mxu0 0
        %2329 = vmatprep.subr.bf16.mxu0 0
        %2330 = vmatpush1.bf16.msra.mxu0 0
        %2331 = vmatprep.subr.bf16.mxu0 0
        %2332 = vmatpush1.bf16.msra.mxu0 0
        %2333 = vmatprep.subr.bf16.mxu0 0
        %2334 = vmatpush1.bf16.msra.mxu0 0
        %2335 = vmatprep.subr.bf16.mxu0 0
        %2336 = vmatpush1.bf16.msra.mxu0 0
        %2337 = vmatprep.subr.bf16.mxu0 0
        %2338 = vmatpush1.bf16.msra.mxu0 0
        %2339 = vmatprep.subr.bf16.mxu0 0
        %2340 = vmatpush1.bf16.msra.mxu0 0
        %2341 = vmatprep.subr.bf16.mxu0 0
        %2342 = vmatpush1.bf16.msra.mxu0 0
        %2343 = vmatprep.subr.bf16.mxu0 0
        %2344 = vmatpush1.bf16.msra.mxu0 0
        %2345 = vmatprep.mubr.bf16.mxu0 0
        %2346 = vmatmul.mubr.bf16.gmra.mrb[0].mxu0 %v2311
        %v2347 = vpop.f32.mrb[0].mxu0
        %v2348 = vadd.f32 0.0, %v2347
        %v2349 = vpop.f32.mrb[0].mxu0
        %v2350 = vpop.f32.mrb[0].mxu0
        %v2351 = vadd.f32 0.0, %v2350
        %v2352 = vpop.f32.mrb[0].mxu0
        %2353 = vdwg.mxu0
        %v2354 = vpack.c.bf16 %v2351, %v2348
        %2356 = vrot.lane.b32.xlu0 %v2237, 96
        %v2357 = vpop.permute.xlu0 %2356
        %2359 = vrot.lane.b32.xlu0 %v2238, 96
        %v2360 = vpop.permute.xlu0 %2359
        %v2362 = vsel %vm835, %v2357, 0
        %v2365 = vsel %vm835, %v2360, 0
        %2367 = vmatprep.subr.bf16.mxu0 0
        %2368 = vmatpush1.bf16.xpose.msra.mxu0 %v2365
        %2369 = vmatprep.subr.bf16.mxu0 0
        %2370 = vmatpush1.bf16.xpose.msra.mxu0 0
        %2371 = vmatprep.subr.bf16.mxu0 0
        %2372 = vmatpush1.bf16.xpose.msra.mxu0 0
        %2373 = vmatprep.subr.bf16.mxu0 0
        %2374 = vmatpush1.bf16.xpose.msra.mxu0 0
        %2375 = vmatprep.subr.bf16.mxu0 0
        %2376 = vmatpush1.bf16.xpose.msra.mxu0 0
        %2377 = vmatprep.subr.bf16.mxu0 0
        %2378 = vmatpush1.bf16.xpose.msra.mxu0 0
        %2379 = vmatprep.subr.bf16.mxu0 0
        %2380 = vmatpush1.bf16.xpose.msra.mxu0 0
        %2381 = vmatprep.subr.bf16.mxu0 0
        %2382 = vmatpush1.bf16.xpose.msra.mxu0 0
        %2383 = vmatprep.subr.bf16.mxu0 0
        %2384 = vmatpush1.bf16.xpose.msra.mxu0 0
        %2385 = vmatprep.subr.bf16.mxu0 0
        %2386 = vmatpush1.bf16.xpose.msra.mxu0 0
        %2387 = vmatprep.subr.bf16.mxu0 0
        %2388 = vmatpush1.bf16.xpose.msra.mxu0 0
        %2389 = vmatprep.subr.bf16.mxu0 0
        %2390 = vmatpush1.bf16.xpose.msra.mxu0 0
        %2391 = vmatprep.subr.bf16.mxu0 0
        %2392 = vmatpush1.bf16.xpose.msra.mxu0 0
        %2393 = vmatprep.subr.bf16.mxu0 0
        %2394 = vmatpush1.bf16.xpose.msra.mxu0 0
        %2395 = vmatprep.subr.bf16.mxu0 0
        %2396 = vmatpush1.bf16.xpose.msra.mxu0 0
        %2397 = vmatprep.subr.bf16.mxu0 0
        %2398 = vmatpush1.bf16.xpose.msra.mxu0 0
        %2399 = vmatprep.mubr.bf16.mxu0 0
        %2400 = vmatmul.mubr.bf16.gmra.mrb[0].mxu0 %v2362
        %v2401 = vpop.f32.mrb[0].mxu0
        %v2402 = vadd.f32 %v833, %v2401
        %v2403 = vpop.f32.mrb[0].mxu0
        %v2404 = vpop.f32.mrb[0].mxu0
        %v2405 = vadd.f32 %v833, %v2404
        %v2406 = vpop.f32.mrb[0].mxu0
        %2407 = vdwg.mxu0
        %v2408 = vsel %vm883, %v2402, -inf
        %2409 = vmax.xlane.f32.xlu0 %v2408
        %v2410 = vpop.xlane.xlu0 %2409
        %v2411 = vsel %vm883, %v2405, -inf
        %2412 = vmax.xlane.f32.xlu0 %v2411
        %v2413 = vpop.xlane.xlu0 %2412
        %v2414 = vsub.f32 %v2402, %v2410
        %v2415 = vsub.f32 %v2405, %v2413
        %v2416 = vmul.f32 %v2414, 1.442695
        %v2417 = vpow.pop %v2416
        %v2418 = vmul.f32 %v2415, 1.442695
        %v2419 = vpow.pop %v2418
        %v2420 = vsel %vm883, %v2417, 0.0
        %2421 = vadd.xlane.f32.xlu0 %v2420
        %v2422 = vpop.xlane.xlu0 %2421
        %v2423 = vsel %vm883, %v2419, 0.0
        %2424 = vadd.xlane.f32.xlu0 %v2423
        %v2425 = vpop.xlane.xlu0 %2424
        %v2426 = vrcp.pop %v2422
        %v2427 = vrcp.pop %v2425
        %v2428 = vmul.f32 %v2417, %v2426
        %v2429 = vmul.f32 %v2419, %v2427
        %v2430 = vpack.c.bf16 %v2429, %v2428
        %2432 = vrot.lane.b32.xlu0 %v2239, 96
        %v2433 = vpop.permute.xlu0 %2432
        %v2436 = vsel %vm883, %v2430, 0
        %2438 = vmatprep.subr.bf16.mxu0 0
        %2439 = vmatpush1.bf16.msra.mxu0 %v2433
        %2440 = vmatprep.subr.bf16.mxu0 0
        %2441 = vmatpush1.bf16.msra.mxu0 0
        %2442 = vmatprep.subr.bf16.mxu0 0
        %2443 = vmatpush1.bf16.msra.mxu0 0
        %2444 = vmatprep.subr.bf16.mxu0 0
        %2445 = vmatpush1.bf16.msra.mxu0 0
        %2446 = vmatprep.subr.bf16.mxu0 0
        %2447 = vmatpush1.bf16.msra.mxu0 0
        %2448 = vmatprep.subr.bf16.mxu0 0
        %2449 = vmatpush1.bf16.msra.mxu0 0
        %2450 = vmatprep.subr.bf16.mxu0 0
        %2451 = vmatpush1.bf16.msra.mxu0 0
        %2452 = vmatprep.subr.bf16.mxu0 0
        %2453 = vmatpush1.bf16.msra.mxu0 0
        %2454 = vmatprep.subr.bf16.mxu0 0
        %2455 = vmatpush1.bf16.msra.mxu0 0
        %2456 = vmatprep.subr.bf16.mxu0 0
        %2457 = vmatpush1.bf16.msra.mxu0 0
        %2458 = vmatprep.subr.bf16.mxu0 0
        %2459 = vmatpush1.bf16.msra.mxu0 0
        %2460 = vmatprep.subr.bf16.mxu0 0
        %2461 = vmatpush1.bf16.msra.mxu0 0
        %2462 = vmatprep.subr.bf16.mxu0 0
        %2463 = vmatpush1.bf16.msra.mxu0 0
        %2464 = vmatprep.subr.bf16.mxu0 0
        %2465 = vmatpush1.bf16.msra.mxu0 0
        %2466 = vmatprep.subr.bf16.mxu0 0
        %2467 = vmatpush1.bf16.msra.mxu0 0
        %2468 = vmatprep.subr.bf16.mxu0 0
        %2469 = vmatpush1.bf16.msra.mxu0 0
        %2470 = vmatprep.mubr.bf16.mxu0 0
        %2471 = vmatmul.mubr.bf16.gmra.mrb[0].mxu0 %v2436
        %v2472 = vpop.f32.mrb[0].mxu0
        %v2473 = vadd.f32 0.0, %v2472
        %v2474 = vpop.f32.mrb[0].mxu0
        %v2475 = vpop.f32.mrb[0].mxu0
        %v2476 = vadd.f32 0.0, %v2475
        %v2477 = vpop.f32.mrb[0].mxu0
        %2478 = vdwg.mxu0
        %v2479 = vpack.c.bf16 %v2476, %v2473
        %v2484 = vunpack.c.l.b16 %v2225
        %v2485 = vunpack.c.l.b16 %v2226
        %v2486 = vunpack.c.l.b16 %v2227
        %v2487 = vunpack.c.l.b16 %v2228
        %v2488 = vpack.c.b16 %v2485, %v2484
        %v2489 = vpack.c.b16 %v2487, %v2486
        %v2493 = vsel %vm835, %v2479, 0
        %2495 = vmatprep.subr.bf16.mxu0 0
        %2496 = vmatpush1.bf16.msra.mxu0 %v2488
        %2497 = vmatprep.subr.bf16.mxu0 0
        %2498 = vmatpush1.bf16.msra.mxu0 %v2489
        %2499 = vmatprep.subr.bf16.mxu0 0
        %2500 = vmatpush1.bf16.msra.mxu0 0
        %2501 = vmatprep.subr.bf16.mxu0 0
        %2502 = vmatpush1.bf16.msra.mxu0 0
        %2503 = vmatprep.subr.bf16.mxu0 0
        %2504 = vmatpush1.bf16.msra.mxu0 0
        %2505 = vmatprep.subr.bf16.mxu0 0
        %2506 = vmatpush1.bf16.msra.mxu0 0
        %2507 = vmatprep.subr.bf16.mxu0 0
        %2508 = vmatpush1.bf16.msra.mxu0 0
        %2509 = vmatprep.subr.bf16.mxu0 0
        %2510 = vmatpush1.bf16.msra.mxu0 0
        %2511 = vmatprep.subr.bf16.mxu0 0
        %2512 = vmatpush1.bf16.msra.mxu0 0
        %2513 = vmatprep.subr.bf16.mxu0 0
        %2514 = vmatpush1.bf16.msra.mxu0 0
        %2515 = vmatprep.subr.bf16.mxu0 0
        %2516 = vmatpush1.bf16.msra.mxu0 0
        %2517 = vmatprep.subr.bf16.mxu0 0
        %2518 = vmatpush1.bf16.msra.mxu0 0
        %2519 = vmatprep.subr.bf16.mxu0 0
        %2520 = vmatpush1.bf16.msra.mxu0 0
        %2521 = vmatprep.subr.bf16.mxu0 0
        %2522 = vmatpush1.bf16.msra.mxu0 0
        %2523 = vmatprep.subr.bf16.mxu0 0
        %2524 = vmatpush1.bf16.msra.mxu0 0
        %2525 = vmatprep.subr.bf16.mxu0 0
        %2526 = vmatpush1.bf16.msra.mxu0 0
        %2527 = vmatprep.mubr.bf16.mxu0 0
        %2528 = vmatmul.mubr.bf16.gmra.mrb[0].mxu0 %v2493
        %v2529 = vpop.f32.mrb[0].mxu0
        %v2530 = vadd.f32 0.0, %v2529
        %v2531 = vpop.f32.mrb[0].mxu0
        %v2532 = vpop.f32.mrb[0].mxu0
        %v2533 = vadd.f32 0.0, %v2532
        %v2534 = vpop.f32.mrb[0].mxu0
        %2535 = vdwg.mxu0
        %v2540 = vunpack.c.l.b16 %v2221
        %v2541 = vunpack.c.l.b16 %v2222
        %v2542 = vunpack.c.l.b16 %v2223
        %v2543 = vunpack.c.l.b16 %v2224
        %v2544 = vpack.c.b16 %v2541, %v2540
        %v2545 = vpack.c.b16 %v2543, %v2542
        %v2549 = vsel %vm835, %v2354, 0
        %2551 = vmatprep.subr.bf16.mxu0 0
        %2552 = vmatpush1.bf16.msra.mxu0 %v2544
        %2553 = vmatprep.subr.bf16.mxu0 0
        %2554 = vmatpush1.bf16.msra.mxu0 %v2545
        %2555 = vmatprep.subr.bf16.mxu0 0
        %2556 = vmatpush1.bf16.msra.mxu0 0
        %2557 = vmatprep.subr.bf16.mxu0 0
        %2558 = vmatpush1.bf16.msra.mxu0 0
        %2559 = vmatprep.subr.bf16.mxu0 0
        %2560 = vmatpush1.bf16.msra.mxu0 0
        %2561 = vmatprep.subr.bf16.mxu0 0
        %2562 = vmatpush1.bf16.msra.mxu0 0
        %2563 = vmatprep.subr.bf16.mxu0 0
        %2564 = vmatpush1.bf16.msra.mxu0 0
        %2565 = vmatprep.subr.bf16.mxu0 0
        %2566 = vmatpush1.bf16.msra.mxu0 0
        %2567 = vmatprep.subr.bf16.mxu0 0
        %2568 = vmatpush1.bf16.msra.mxu0 0
        %2569 = vmatprep.subr.bf16.mxu0 0
        %2570 = vmatpush1.bf16.msra.mxu0 0
        %2571 = vmatprep.subr.bf16.mxu0 0
        %2572 = vmatpush1.bf16.msra.mxu0 0
        %2573 = vmatprep.subr.bf16.mxu0 0
        %2574 = vmatpush1.bf16.msra.mxu0 0
        %2575 = vmatprep.subr.bf16.mxu0 0
        %2576 = vmatpush1.bf16.msra.mxu0 0
        %2577 = vmatprep.subr.bf16.mxu0 0
        %2578 = vmatpush1.bf16.msra.mxu0 0
        %2579 = vmatprep.subr.bf16.mxu0 0
        %2580 = vmatpush1.bf16.msra.mxu0 0
        %2581 = vmatprep.subr.bf16.mxu0 0
        %2582 = vmatpush1.bf16.msra.mxu0 0
        %2583 = vmatprep.mubr.bf16.mxu0 0
        %2584 = vmatmul.mubr.bf16.gmra.mrb[0].mxu0 %v2549
        %v2585 = vpop.f32.mrb[0].mxu0
        %v2586 = vadd.f32 %v2530, %v2585
        %v2587 = vpop.f32.mrb[0].mxu0
        %v2588 = vpop.f32.mrb[0].mxu0
        %v2589 = vadd.f32 %v2533, %v2588
        %v2590 = vpop.f32.mrb[0].mxu0
        %2591 = vdwg.mxu0
        %2592 = vrot.lane.b32.xlu0 %v2237, 64
        %v2593 = vpop.permute.xlu0 %2592
        %2594 = vrot.lane.b32.xlu0 %v2238, 64
        %v2595 = vpop.permute.xlu0 %2594
        %v2597 = vsel %vm835, %v2593, 0
        %v2600 = vsel %vm835, %v2595, 0
        %2602 = vmatprep.subr.bf16.mxu0 0
        %2603 = vmatpush1.bf16.xpose.msra.mxu0 %v2600
        %2604 = vmatprep.subr.bf16.mxu0 0
        %2605 = vmatpush1.bf16.xpose.msra.mxu0 0
        %2606 = vmatprep.subr.bf16.mxu0 0
        %2607 = vmatpush1.bf16.xpose.msra.mxu0 0
        %2608 = vmatprep.subr.bf16.mxu0 0
        %2609 = vmatpush1.bf16.xpose.msra.mxu0 0
        %2610 = vmatprep.subr.bf16.mxu0 0
        %2611 = vmatpush1.bf16.xpose.msra.mxu0 0
        %2612 = vmatprep.subr.bf16.mxu0 0
        %2613 = vmatpush1.bf16.xpose.msra.mxu0 0
        %2614 = vmatprep.subr.bf16.mxu0 0
        %2615 = vmatpush1.bf16.xpose.msra.mxu0 0
        %2616 = vmatprep.subr.bf16.mxu0 0
        %2617 = vmatpush1.bf16.xpose.msra.mxu0 0
        %2618 = vmatprep.subr.bf16.mxu0 0
        %2619 = vmatpush1.bf16.xpose.msra.mxu0 0
        %2620 = vmatprep.subr.bf16.mxu0 0
        %2621 = vmatpush1.bf16.xpose.msra.mxu0 0
        %2622 = vmatprep.subr.bf16.mxu0 0
        %2623 = vmatpush1.bf16.xpose.msra.mxu0 0
        %2624 = vmatprep.subr.bf16.mxu0 0
        %2625 = vmatpush1.bf16.xpose.msra.mxu0 0
        %2626 = vmatprep.subr.bf16.mxu0 0
        %2627 = vmatpush1.bf16.xpose.msra.mxu0 0
        %2628 = vmatprep.subr.bf16.mxu0 0
        %2629 = vmatpush1.bf16.xpose.msra.mxu0 0
        %2630 = vmatprep.subr.bf16.mxu0 0
        %2631 = vmatpush1.bf16.xpose.msra.mxu0 0
        %2632 = vmatprep.subr.bf16.mxu0 0
        %2633 = vmatpush1.bf16.xpose.msra.mxu0 0
        %2634 = vmatprep.mubr.bf16.mxu0 0
        %2635 = vmatmul.mubr.bf16.gmra.mrb[0].mxu0 %v2597
        %v2636 = vpop.f32.mrb[0].mxu0
        %v2637 = vadd.f32 %v833, %v2636
        %v2638 = vpop.f32.mrb[0].mxu0
        %v2639 = vpop.f32.mrb[0].mxu0
        %v2640 = vadd.f32 %v833, %v2639
        %v2641 = vpop.f32.mrb[0].mxu0
        %2642 = vdwg.mxu0
        %v2643 = vsel %vm883, %v2637, -inf
        %2644 = vmax.xlane.f32.xlu0 %v2643
        %v2645 = vpop.xlane.xlu0 %2644
        %v2646 = vsel %vm883, %v2640, -inf
        %2647 = vmax.xlane.f32.xlu0 %v2646
        %v2648 = vpop.xlane.xlu0 %2647
        %v2649 = vsub.f32 %v2637, %v2645
        %v2650 = vsub.f32 %v2640, %v2648
        %v2651 = vmul.f32 %v2649, 1.442695
        %v2652 = vpow.pop %v2651
        %v2653 = vmul.f32 %v2650, 1.442695
        %v2654 = vpow.pop %v2653
        %v2655 = vsel %vm883, %v2652, 0.0
        %2656 = vadd.xlane.f32.xlu0 %v2655
        %v2657 = vpop.xlane.xlu0 %2656
        %v2658 = vsel %vm883, %v2654, 0.0
        %2659 = vadd.xlane.f32.xlu0 %v2658
        %v2660 = vpop.xlane.xlu0 %2659
        %v2661 = vrcp.pop %v2657
        %v2662 = vrcp.pop %v2660
        %v2663 = vmul.f32 %v2652, %v2661
        %v2664 = vmul.f32 %v2654, %v2662
        %v2665 = vpack.c.bf16 %v2664, %v2663
        %2666 = vrot.lane.b32.xlu0 %v2239, 64
        %v2667 = vpop.permute.xlu0 %2666
        %v2670 = vsel %vm883, %v2665, 0
        %2672 = vmatprep.subr.bf16.mxu0 0
        %2673 = vmatpush1.bf16.msra.mxu0 %v2667
        %2674 = vmatprep.subr.bf16.mxu0 0
        %2675 = vmatpush1.bf16.msra.mxu0 0
        %2676 = vmatprep.subr.bf16.mxu0 0
        %2677 = vmatpush1.bf16.msra.mxu0 0
        %2678 = vmatprep.subr.bf16.mxu0 0
        %2679 = vmatpush1.bf16.msra.mxu0 0
        %2680 = vmatprep.subr.bf16.mxu0 0
        %2681 = vmatpush1.bf16.msra.mxu0 0
        %2682 = vmatprep.subr.bf16.mxu0 0
        %2683 = vmatpush1.bf16.msra.mxu0 0
        %2684 = vmatprep.subr.bf16.mxu0 0
        %2685 = vmatpush1.bf16.msra.mxu0 0
        %2686 = vmatprep.subr.bf16.mxu0 0
        %2687 = vmatpush1.bf16.msra.mxu0 0
        %2688 = vmatprep.subr.bf16.mxu0 0
        %2689 = vmatpush1.bf16.msra.mxu0 0
        %2690 = vmatprep.subr.bf16.mxu0 0
        %2691 = vmatpush1.bf16.msra.mxu0 0
        %2692 = vmatprep.subr.bf16.mxu0 0
        %2693 = vmatpush1.bf16.msra.mxu0 0
        %2694 = vmatprep.subr.bf16.mxu0 0
        %2695 = vmatpush1.bf16.msra.mxu0 0
        %2696 = vmatprep.subr.bf16.mxu0 0
        %2697 = vmatpush1.bf16.msra.mxu0 0
        %2698 = vmatprep.subr.bf16.mxu0 0
        %2699 = vmatpush1.bf16.msra.mxu0 0
        %2700 = vmatprep.subr.bf16.mxu0 0
        %2701 = vmatpush1.bf16.msra.mxu0 0
        %2702 = vmatprep.subr.bf16.mxu0 0
        %2703 = vmatpush1.bf16.msra.mxu0 0
        %2704 = vmatprep.mubr.bf16.mxu0 0
        %2705 = vmatmul.mubr.bf16.gmra.mrb[0].mxu0 %v2670
        %v2706 = vpop.f32.mrb[0].mxu0
        %v2707 = vadd.f32 0.0, %v2706
        %v2708 = vpop.f32.mrb[0].mxu0
        %v2709 = vpop.f32.mrb[0].mxu0
        %v2710 = vadd.f32 0.0, %v2709
        %v2711 = vpop.f32.mrb[0].mxu0
        %2712 = vdwg.mxu0
        %v2713 = vpack.c.bf16 %v2710, %v2707
        %v2718 = vunpack.c.l.b16 %v2229
        %v2719 = vunpack.c.l.b16 %v2230
        %v2720 = vunpack.c.l.b16 %v2231
        %v2721 = vunpack.c.l.b16 %v2232
        %v2722 = vpack.c.b16 %v2719, %v2718
        %v2723 = vpack.c.b16 %v2721, %v2720
        %v2727 = vsel %vm835, %v2713, 0
        %2729 = vmatprep.subr.bf16.mxu0 0
        %2730 = vmatpush1.bf16.msra.mxu0 %v2722
        %2731 = vmatprep.subr.bf16.mxu0 0
        %2732 = vmatpush1.bf16.msra.mxu0 %v2723
        %2733 = vmatprep.subr.bf16.mxu0 0
        %2734 = vmatpush1.bf16.msra.mxu0 0
        %2735 = vmatprep.subr.bf16.mxu0 0
        %2736 = vmatpush1.bf16.msra.mxu0 0
        %2737 = vmatprep.subr.bf16.mxu0 0
        %2738 = vmatpush1.bf16.msra.mxu0 0
        %2739 = vmatprep.subr.bf16.mxu0 0
        %2740 = vmatpush1.bf16.msra.mxu0 0
        %2741 = vmatprep.subr.bf16.mxu0 0
        %2742 = vmatpush1.bf16.msra.mxu0 0
        %2743 = vmatprep.subr.bf16.mxu0 0
        %2744 = vmatpush1.bf16.msra.mxu0 0
        %2745 = vmatprep.subr.bf16.mxu0 0
        %2746 = vmatpush1.bf16.msra.mxu0 0
        %2747 = vmatprep.subr.bf16.mxu0 0
        %2748 = vmatpush1.bf16.msra.mxu0 0
        %2749 = vmatprep.subr.bf16.mxu0 0
        %2750 = vmatpush1.bf16.msra.mxu0 0
        %2751 = vmatprep.subr.bf16.mxu0 0
        %2752 = vmatpush1.bf16.msra.mxu0 0
        %2753 = vmatprep.subr.bf16.mxu0 0
        %2754 = vmatpush1.bf16.msra.mxu0 0
        %2755 = vmatprep.subr.bf16.mxu0 0
        %2756 = vmatpush1.bf16.msra.mxu0 0
        %2757 = vmatprep.subr.bf16.mxu0 0
        %2758 = vmatpush1.bf16.msra.mxu0 0
        %2759 = vmatprep.subr.bf16.mxu0 0
        %2760 = vmatpush1.bf16.msra.mxu0 0
        %2761 = vmatprep.mubr.bf16.mxu0 0
        %2762 = vmatmul.mubr.bf16.gmra.mrb[0].mxu0 %v2727
        %v2763 = vpop.f32.mrb[0].mxu0
        %v2764 = vadd.f32 0.0, %v2763
        %v2765 = vpop.f32.mrb[0].mxu0
        %v2766 = vpop.f32.mrb[0].mxu0
        %v2767 = vadd.f32 0.0, %v2766
        %v2768 = vpop.f32.mrb[0].mxu0
        %2769 = vdwg.mxu0
        %v2770 = vadd.f32 %v2586, %v2764
        %v2771 = vadd.f32 %v2589, %v2767
        %2772 = vrot.lane.b32.xlu0 %v2237, 32
        %v2773 = vpop.permute.xlu0 %2772
        %2774 = vrot.lane.b32.xlu0 %v2238, 32
        %v2775 = vpop.permute.xlu0 %2774
        %v2777 = vsel %vm835, %v2773, 0
        %v2780 = vsel %vm835, %v2775, 0
        %2782 = vmatprep.subr.bf16.mxu0 0
        %2783 = vmatpush1.bf16.xpose.msra.mxu0 %v2780
        %2784 = vmatprep.subr.bf16.mxu0 0
        %2785 = vmatpush1.bf16.xpose.msra.mxu0 0
        %2786 = vmatprep.subr.bf16.mxu0 0
        %2787 = vmatpush1.bf16.xpose.msra.mxu0 0
        %2788 = vmatprep.subr.bf16.mxu0 0
        %2789 = vmatpush1.bf16.xpose.msra.mxu0 0
        %2790 = vmatprep.subr.bf16.mxu0 0
        %2791 = vmatpush1.bf16.xpose.msra.mxu0 0
        %2792 = vmatprep.subr.bf16.mxu0 0
        %2793 = vmatpush1.bf16.xpose.msra.mxu0 0
        %2794 = vmatprep.subr.bf16.mxu0 0
        %2795 = vmatpush1.bf16.xpose.msra.mxu0 0
        %2796 = vmatprep.subr.bf16.mxu0 0
        %2797 = vmatpush1.bf16.xpose.msra.mxu0 0
        %2798 = vmatprep.subr.bf16.mxu0 0
        %2799 = vmatpush1.bf16.xpose.msra.mxu0 0
        %2800 = vmatprep.subr.bf16.mxu0 0
        %2801 = vmatpush1.bf16.xpose.msra.mxu0 0
        %2802 = vmatprep.subr.bf16.mxu0 0
        %2803 = vmatpush1.bf16.xpose.msra.mxu0 0
        %2804 = vmatprep.subr.bf16.mxu0 0
        %2805 = vmatpush1.bf16.xpose.msra.mxu0 0
        %2806 = vmatprep.subr.bf16.mxu0 0
        %2807 = vmatpush1.bf16.xpose.msra.mxu0 0
        %2808 = vmatprep.subr.bf16.mxu0 0
        %2809 = vmatpush1.bf16.xpose.msra.mxu0 0
        %2810 = vmatprep.subr.bf16.mxu0 0
        %2811 = vmatpush1.bf16.xpose.msra.mxu0 0
        %2812 = vmatprep.subr.bf16.mxu0 0
        %2813 = vmatpush1.bf16.xpose.msra.mxu0 0
        %2814 = vmatprep.mubr.bf16.mxu0 0
        %2815 = vmatmul.mubr.bf16.gmra.mrb[0].mxu0 %v2777
        %v2816 = vpop.f32.mrb[0].mxu0
        %v2817 = vadd.f32 %v833, %v2816
        %v2818 = vpop.f32.mrb[0].mxu0
        %v2819 = vpop.f32.mrb[0].mxu0
        %v2820 = vadd.f32 %v833, %v2819
        %v2821 = vpop.f32.mrb[0].mxu0
        %2822 = vdwg.mxu0
        %v2823 = vsel %vm883, %v2817, -inf
        %2824 = vmax.xlane.f32.xlu0 %v2823
        %v2825 = vpop.xlane.xlu0 %2824
        %v2826 = vsel %vm883, %v2820, -inf
        %2827 = vmax.xlane.f32.xlu0 %v2826
        %v2828 = vpop.xlane.xlu0 %2827
        %v2829 = vsub.f32 %v2817, %v2825
        %v2830 = vsub.f32 %v2820, %v2828
        %v2831 = vmul.f32 %v2829, 1.442695
        %v2832 = vpow.pop %v2831
        %v2833 = vmul.f32 %v2830, 1.442695
        %v2834 = vpow.pop %v2833
        %v2835 = vsel %vm883, %v2832, 0.0
        %2836 = vadd.xlane.f32.xlu0 %v2835
        %v2837 = vpop.xlane.xlu0 %2836
        %v2838 = vsel %vm883, %v2834, 0.0
        %2839 = vadd.xlane.f32.xlu0 %v2838
        %v2840 = vpop.xlane.xlu0 %2839
        %v2841 = vrcp.pop %v2837
        %v2842 = vrcp.pop %v2840
        %v2843 = vmul.f32 %v2832, %v2841
        %v2844 = vmul.f32 %v2834, %v2842
        %v2845 = vpack.c.bf16 %v2844, %v2843
        %2846 = vrot.lane.b32.xlu0 %v2239, 32
        %v2847 = vpop.permute.xlu0 %2846
        %v2850 = vsel %vm883, %v2845, 0
        %2852 = vmatprep.subr.bf16.mxu0 0
        %2853 = vmatpush1.bf16.msra.mxu0 %v2847
        %2854 = vmatprep.subr.bf16.mxu0 0
        %2855 = vmatpush1.bf16.msra.mxu0 0
        %2856 = vmatprep.subr.bf16.mxu0 0
        %2857 = vmatpush1.bf16.msra.mxu0 0
        %2858 = vmatprep.subr.bf16.mxu0 0
        %2859 = vmatpush1.bf16.msra.mxu0 0
        %2860 = vmatprep.subr.bf16.mxu0 0
        %2861 = vmatpush1.bf16.msra.mxu0 0
        %2862 = vmatprep.subr.bf16.mxu0 0
        %2863 = vmatpush1.bf16.msra.mxu0 0
        %2864 = vmatprep.subr.bf16.mxu0 0
        %2865 = vmatpush1.bf16.msra.mxu0 0
        %2866 = vmatprep.subr.bf16.mxu0 0
        %2867 = vmatpush1.bf16.msra.mxu0 0
        %2868 = vmatprep.subr.bf16.mxu0 0
        %2869 = vmatpush1.bf16.msra.mxu0 0
        %2870 = vmatprep.subr.bf16.mxu0 0
        %2871 = vmatpush1.bf16.msra.mxu0 0
        %2872 = vmatprep.subr.bf16.mxu0 0
        %2873 = vmatpush1.bf16.msra.mxu0 0
        %2874 = vmatprep.subr.bf16.mxu0 0
        %2875 = vmatpush1.bf16.msra.mxu0 0
        %2876 = vmatprep.subr.bf16.mxu0 0
        %2877 = vmatpush1.bf16.msra.mxu0 0
        %2878 = vmatprep.subr.bf16.mxu0 0
        %2879 = vmatpush1.bf16.msra.mxu0 0
        %2880 = vmatprep.subr.bf16.mxu0 0
        %2881 = vmatpush1.bf16.msra.mxu0 0
        %2882 = vmatprep.subr.bf16.mxu0 0
        %2883 = vmatpush1.bf16.msra.mxu0 0
        %2884 = vmatprep.mubr.bf16.mxu0 0
        %2885 = vmatmul.mubr.bf16.gmra.mrb[0].mxu0 %v2850
        %v2886 = vpop.f32.mrb[0].mxu0
        %v2887 = vadd.f32 0.0, %v2886
        %v2888 = vpop.f32.mrb[0].mxu0
        %v2889 = vpop.f32.mrb[0].mxu0
        %v2890 = vadd.f32 0.0, %v2889
        %v2891 = vpop.f32.mrb[0].mxu0
        %2892 = vdwg.mxu0
        %v2893 = vpack.c.bf16 %v2890, %v2887
        %v2898 = vunpack.c.l.b16 %v2233
        %v2899 = vunpack.c.l.b16 %v2234
        %v2900 = vunpack.c.l.b16 %v2235
        %v2901 = vunpack.c.l.b16 %v2236
        %v2902 = vpack.c.b16 %v2899, %v2898
        %v2903 = vpack.c.b16 %v2901, %v2900
        %v2907 = vsel %vm835, %v2893, 0
        %2909 = vmatprep.subr.bf16.mxu0 0
        %2910 = vmatpush1.bf16.msra.mxu0 %v2902
        %2911 = vmatprep.subr.bf16.mxu0 0
        %2912 = vmatpush1.bf16.msra.mxu0 %v2903
        %2913 = vmatprep.subr.bf16.mxu0 0
        %2914 = vmatpush1.bf16.msra.mxu0 0
        %2915 = vmatprep.subr.bf16.mxu0 0
        %2916 = vmatpush1.bf16.msra.mxu0 0
        %2917 = vmatprep.subr.bf16.mxu0 0
        %2918 = vmatpush1.bf16.msra.mxu0 0
        %2919 = vmatprep.subr.bf16.mxu0 0
        %2920 = vmatpush1.bf16.msra.mxu0 0
        %2921 = vmatprep.subr.bf16.mxu0 0
        %2922 = vmatpush1.bf16.msra.mxu0 0
        %2923 = vmatprep.subr.bf16.mxu0 0
        %2924 = vmatpush1.bf16.msra.mxu0 0
        %2925 = vmatprep.subr.bf16.mxu0 0
        %2926 = vmatpush1.bf16.msra.mxu0 0
        %2927 = vmatprep.subr.bf16.mxu0 0
        %2928 = vmatpush1.bf16.msra.mxu0 0
        %2929 = vmatprep.subr.bf16.mxu0 0
        %2930 = vmatpush1.bf16.msra.mxu0 0
        %2931 = vmatprep.subr.bf16.mxu0 0
        %2932 = vmatpush1.bf16.msra.mxu0 0
        %2933 = vmatprep.subr.bf16.mxu0 0
        %2934 = vmatpush1.bf16.msra.mxu0 0
        %2935 = vmatprep.subr.bf16.mxu0 0
        %2936 = vmatpush1.bf16.msra.mxu0 0
        %2937 = vmatprep.subr.bf16.mxu0 0
        %2938 = vmatpush1.bf16.msra.mxu0 0
        %2939 = vmatprep.subr.bf16.mxu0 0
        %2940 = vmatpush1.bf16.msra.mxu0 0
        %2941 = vmatprep.mubr.bf16.mxu0 0
        %2942 = vmatmul.mubr.bf16.gmra.mrb[0].mxu0 %v2907
        %v2943 = vpop.f32.mrb[0].mxu0
        %v2944 = vadd.f32 0.0, %v2943
        %v2945 = vpop.f32.mrb[0].mxu0
        %v2946 = vpop.f32.mrb[0].mxu0
        %v2947 = vadd.f32 0.0, %v2946
        %v2948 = vpop.f32.mrb[0].mxu0
        %2949 = vdwg.mxu0
        %v2950 = vadd.f32 %v2770, %v2944
        %v2951 = vadd.f32 %v2771, %v2947
        %v2952 = vadd.f32 %v1932, %v2950
        %v2953 = vadd.f32 %v1933, %v2951
        %s2954 = scalar_lea.vmem %s5, 1
        %v2955 = vld [vmem:[%s2954] sm:$0x1]
        %v2957 = vlaneseq
        %v2958 = vshrl.u32 %v2957, 7
        %v2959 = vsub.s32 0, %v2958
        %v2960 = vrot.slane %v2955, %v2959
        %v2962 = vadd.f32 %v2952, %v2960
        %v2963 = vadd.f32 %v2953, %v2960
        %2964 = vadd.xlane.f32.xlu0 %v2962
        %v2965 = vpop.xlane.xlu0 %2964
        %2966 = vadd.xlane.f32.xlu0 %v2963
        %v2967 = vpop.xlane.xlu0 %2966
        %v2968 = vmul.f32 %v2965, %v529
        %v2969 = vmul.f32 %v2967, %v529
        %v2970 = vsub.f32 %v2962, %v2968
        %v2971 = vsub.f32 %v2963, %v2969
        %v2972 = vmul.f32 %v2970, %v2970
        %v2973 = vmul.f32 %v2971, %v2971
        %2974 = vadd.xlane.f32.xlu0 %v2972
        %v2975 = vpop.xlane.xlu0 %2974
        %2976 = vadd.xlane.f32.xlu0 %v2973
        %v2977 = vpop.xlane.xlu0 %2976
        %v2978 = vmul.f32 %v2975, %v529
        %v2979 = vmul.f32 %v2977, %v529
        %v2980 = vadd.f32 %v2978, 1e-05
        %v2981 = vadd.f32 %v2979, 1e-05
        %v2982 = vrsqrt.pop %v2980
        %v2983 = vrsqrt.pop %v2981
        %v2984 = vmul.f32 %v2970, %v2982
        %v2985 = vmul.f32 %v2971, %v2983
        %v2986 = vpack.c.bf16 %v2985, %v2984
        %s2987 = scalar_lea.vmem %s6, 128
        %v2988 = vld [vmem:[%s2987] sm:$0xff]
        %v2989 = vld [vmem:[%s2987 + $0x8] sm:$0xff]
        %v2990 = vld [vmem:[%s2987 + $0x10] sm:$0xff]
        %v2991 = vld [vmem:[%s2987 + $0x18] sm:$0xff]
        %v2992 = vld [vmem:[%s2987 + $0x20] sm:$0xff]
        %v2993 = vld [vmem:[%s2987 + $0x28] sm:$0xff]
        %v2994 = vld [vmem:[%s2987 + $0x30] sm:$0xff]
        %v2995 = vld [vmem:[%s2987 + $0x38] sm:$0xff]
        %v2996 = vld [vmem:[%s2987 + $0x40] sm:$0xff]
        %v2997 = vld [vmem:[%s2987 + $0x48] sm:$0xff]
        %v2998 = vld [vmem:[%s2987 + $0x50] sm:$0xff]
        %v2999 = vld [vmem:[%s2987 + $0x58] sm:$0xff]
        %v3000 = vld [vmem:[%s2987 + $0x60] sm:$0xff]
        %v3001 = vld [vmem:[%s2987 + $0x68] sm:$0xff]
        %v3002 = vld [vmem:[%s2987 + $0x70] sm:$0xff]
        %v3003 = vld [vmem:[%s2987 + $0x78] sm:$0xff]
        %s3004 = scalar_lea.vmem %s7, 2
        %v3005 = vld [vmem:[%s3004] sm:$0x3]
        %v3007 = vlaneseq
        %v3008 = vshrl.u32 %v3007, 7
        %v3009 = vsub.s32 0, %v3008
        %v3010 = vrot.slane %v3005, %v3009
        %v3011 = vlaneseq
        %v3012 = vshrl.u32 %v3011, 7
        %v3013 = vsub.s32 1, %v3012
        %v3014 = vrot.slane %v3005, %v3013
        %v3033 = vunpack.c.l.b16 %v2988
        %v3034 = vunpack.c.h.b16 %v2988
        %v3035 = vunpack.c.l.b16 %v2989
        %v3036 = vunpack.c.h.b16 %v2989
        %v3037 = vunpack.c.l.b16 %v2990
        %v3038 = vunpack.c.h.b16 %v2990
        %v3039 = vunpack.c.l.b16 %v2991
        %v3040 = vunpack.c.h.b16 %v2991
        %v3041 = vunpack.c.l.b16 %v2992
        %v3042 = vunpack.c.h.b16 %v2992
        %v3043 = vunpack.c.l.b16 %v2993
        %v3044 = vunpack.c.h.b16 %v2993
        %v3045 = vunpack.c.l.b16 %v2994
        %v3046 = vunpack.c.h.b16 %v2994
        %v3047 = vunpack.c.l.b16 %v2995
        %v3048 = vunpack.c.h.b16 %v2995
        %v3049 = vunpack.c.l.b16 %v2996
        %v3050 = vunpack.c.h.b16 %v2996
        %v3051 = vunpack.c.l.b16 %v2997
        %v3052 = vunpack.c.h.b16 %v2997
        %v3053 = vunpack.c.l.b16 %v2998
        %v3054 = vunpack.c.h.b16 %v2998
        %v3055 = vunpack.c.l.b16 %v2999
        %v3056 = vunpack.c.h.b16 %v2999
        %v3057 = vunpack.c.l.b16 %v3000
        %v3058 = vunpack.c.h.b16 %v3000
        %v3059 = vunpack.c.l.b16 %v3001
        %v3060 = vunpack.c.h.b16 %v3001
        %v3061 = vunpack.c.l.b16 %v3002
        %v3062 = vunpack.c.h.b16 %v3002
        %v3063 = vunpack.c.l.b16 %v3003
        %v3064 = vunpack.c.h.b16 %v3003
        %v3065 = vpack.c.b16 %v3035, %v3033
        %v3066 = vpack.c.b16 %v3036, %v3034
        %v3067 = vpack.c.b16 %v3039, %v3037
        %v3068 = vpack.c.b16 %v3040, %v3038
        %v3069 = vpack.c.b16 %v3043, %v3041
        %v3070 = vpack.c.b16 %v3044, %v3042
        %v3071 = vpack.c.b16 %v3047, %v3045
        %v3072 = vpack.c.b16 %v3048, %v3046
        %v3073 = vpack.c.b16 %v3051, %v3049
        %v3074 = vpack.c.b16 %v3052, %v3050
        %v3075 = vpack.c.b16 %v3055, %v3053
        %v3076 = vpack.c.b16 %v3056, %v3054
        %v3077 = vpack.c.b16 %v3059, %v3057
        %v3078 = vpack.c.b16 %v3060, %v3058
        %v3079 = vpack.c.b16 %v3063, %v3061
        %v3080 = vpack.c.b16 %v3064, %v3062
        %3097 = vmatprep.subr.bf16.mxu0 %v3066
        %3098 = vmatpush1.bf16.msra.mxu0 %v3065
        %3099 = vmatprep.subr.bf16.mxu0 %v3068
        %3100 = vmatpush1.bf16.msra.mxu0 %v3067
        %3101 = vmatprep.subr.bf16.mxu0 %v3070
        %3102 = vmatpush1.bf16.msra.mxu0 %v3069
        %3103 = vmatprep.subr.bf16.mxu0 %v3072
        %3104 = vmatpush1.bf16.msra.mxu0 %v3071
        %3105 = vmatprep.subr.bf16.mxu0 %v3074
        %3106 = vmatpush1.bf16.msra.mxu0 %v3073
        %3107 = vmatprep.subr.bf16.mxu0 %v3076
        %3108 = vmatpush1.bf16.msra.mxu0 %v3075
        %3109 = vmatprep.subr.bf16.mxu0 %v3078
        %3110 = vmatpush1.bf16.msra.mxu0 %v3077
        %3111 = vmatprep.subr.bf16.mxu0 %v3080
        %3112 = vmatpush1.bf16.msra.mxu0 %v3079
        %3113 = vmatprep.subr.bf16.mxu0 0
        %3114 = vmatpush1.bf16.msra.mxu0 0
        %3115 = vmatprep.subr.bf16.mxu0 0
        %3116 = vmatpush1.bf16.msra.mxu0 0
        %3117 = vmatprep.subr.bf16.mxu0 0
        %3118 = vmatpush1.bf16.msra.mxu0 0
        %3119 = vmatprep.subr.bf16.mxu0 0
        %3120 = vmatpush1.bf16.msra.mxu0 0
        %3121 = vmatprep.subr.bf16.mxu0 0
        %3122 = vmatpush1.bf16.msra.mxu0 0
        %3123 = vmatprep.subr.bf16.mxu0 0
        %3124 = vmatpush1.bf16.msra.mxu0 0
        %3125 = vmatprep.subr.bf16.mxu0 0
        %3126 = vmatpush1.bf16.msra.mxu0 0
        %3127 = vmatprep.subr.bf16.mxu0 0
        %3128 = vmatpush1.bf16.msra.mxu0 0
        %3129 = vmatprep.mubr.bf16.mxu0 0
        %3130 = vmatmul.mubr.bf16.gmra.mrb[0].mxu0 %v2986
        %v3131 = vpop.f32.mrb[0].mxu0
        %v3132 = vadd.f32 %v3010, %v3131
        %v3133 = vpop.f32.mrb[0].mxu0
        %v3134 = vadd.f32 %v3014, %v3133
        %v3135 = vpop.f32.mrb[0].mxu0
        %v3136 = vadd.f32 %v3010, %v3135
        %v3137 = vpop.f32.mrb[0].mxu0
        %v3138 = vadd.f32 %v3014, %v3137
        %3139 = vdwg.mxu0
        %v3140 = vmul.f32 %v3132, 0.5
        %v3141 = vmul.f32 %v3134, 0.5
        %v3142 = vmul.f32 %v3136, 0.5
        %v3143 = vmul.f32 %v3138, 0.5
        %v3144 = vmul.f32 %v3132, 0.70710677
        %v3145 = vmul.f32 %v3134, 0.70710677
        %v3146 = vmul.f32 %v3136, 0.70710677
        %v3147 = vmul.f32 %v3138, 0.70710677
        %v3148 = verf.f32.pop %v3144
        %v3149 = verf.f32.pop %v3145
        %v3150 = verf.f32.pop %v3146
        %v3151 = verf.f32.pop %v3147
        %v3152 = vadd.f32 %v3148, 1.0
        %v3153 = vadd.f32 %v3149, 1.0
        %v3154 = vadd.f32 %v3150, 1.0
        %v3155 = vadd.f32 %v3151, 1.0
        %v3156 = vmul.f32 %v3140, %v3152
        %v3157 = vmul.f32 %v3141, %v3153
        %v3158 = vmul.f32 %v3142, %v3154
        %v3159 = vmul.f32 %v3143, %v3155
        %v3160 = vpack.c.bf16 %v3158, %v3156
        %v3161 = vpack.c.bf16 %v3159, %v3157
        %s3162 = scalar_lea.vmem %s8, 128
        %v3163 = vld [vmem:[%s3162] sm:$0xf]
        %v3164 = vld [vmem:[%s3162 + $0x4] sm:$0xf]
        %v3165 = vld [vmem:[%s3162 + $0x8] sm:$0xf]
        %v3166 = vld [vmem:[%s3162 + $0xc] sm:$0xf]
        %v3167 = vld [vmem:[%s3162 + $0x10] sm:$0xf]
        %v3168 = vld [vmem:[%s3162 + $0x14] sm:$0xf]
        %v3169 = vld [vmem:[%s3162 + $0x18] sm:$0xf]
        %v3170 = vld [vmem:[%s3162 + $0x1c] sm:$0xf]
        %v3171 = vld [vmem:[%s3162 + $0x20] sm:$0xf]
        %v3172 = vld [vmem:[%s3162 + $0x24] sm:$0xf]
        %v3173 = vld [vmem:[%s3162 + $0x28] sm:$0xf]
        %v3174 = vld [vmem:[%s3162 + $0x2c] sm:$0xf]
        %v3175 = vld [vmem:[%s3162 + $0x30] sm:$0xf]
        %v3176 = vld [vmem:[%s3162 + $0x34] sm:$0xf]
        %v3177 = vld [vmem:[%s3162 + $0x38] sm:$0xf]
        %v3178 = vld [vmem:[%s3162 + $0x3c] sm:$0xf]
        %v3179 = vld [vmem:[%s3162 + $0x40] sm:$0xf]
        %v3180 = vld [vmem:[%s3162 + $0x44] sm:$0xf]
        %v3181 = vld [vmem:[%s3162 + $0x48] sm:$0xf]
        %v3182 = vld [vmem:[%s3162 + $0x4c] sm:$0xf]
        %v3183 = vld [vmem:[%s3162 + $0x50] sm:$0xf]
        %v3184 = vld [vmem:[%s3162 + $0x54] sm:$0xf]
        %v3185 = vld [vmem:[%s3162 + $0x58] sm:$0xf]
        %v3186 = vld [vmem:[%s3162 + $0x5c] sm:$0xf]
        %v3187 = vld [vmem:[%s3162 + $0x60] sm:$0xf]
        %v3188 = vld [vmem:[%s3162 + $0x64] sm:$0xf]
        %v3189 = vld [vmem:[%s3162 + $0x68] sm:$0xf]
        %v3190 = vld [vmem:[%s3162 + $0x6c] sm:$0xf]
        %v3191 = vld [vmem:[%s3162 + $0x70] sm:$0xf]
        %v3192 = vld [vmem:[%s3162 + $0x74] sm:$0xf]
        %v3193 = vld [vmem:[%s3162 + $0x78] sm:$0xf]
        %v3194 = vld [vmem:[%s3162 + $0x7c] sm:$0xf]
        %s3195 = scalar_lea.vmem %s9, 1
        %v3196 = vld [vmem:[%s3195] sm:$0x1]
        %v3198 = vlaneseq
        %v3199 = vshrl.u32 %v3198, 7
        %v3200 = vsub.s32 0, %v3199
        %v3201 = vrot.slane %v3196, %v3200
        %v3235 = vunpack.c.l.b16 %v3163
        %v3236 = vunpack.c.l.b16 %v3164
        %v3237 = vunpack.c.l.b16 %v3165
        %v3238 = vunpack.c.l.b16 %v3166
        %v3239 = vunpack.c.l.b16 %v3167
        %v3240 = vunpack.c.l.b16 %v3168
        %v3241 = vunpack.c.l.b16 %v3169
        %v3242 = vunpack.c.l.b16 %v3170
        %v3243 = vunpack.c.l.b16 %v3171
        %v3244 = vunpack.c.l.b16 %v3172
        %v3245 = vunpack.c.l.b16 %v3173
        %v3246 = vunpack.c.l.b16 %v3174
        %v3247 = vunpack.c.l.b16 %v3175
        %v3248 = vunpack.c.l.b16 %v3176
        %v3249 = vunpack.c.l.b16 %v3177
        %v3250 = vunpack.c.l.b16 %v3178
        %v3251 = vunpack.c.l.b16 %v3179
        %v3252 = vunpack.c.l.b16 %v3180
        %v3253 = vunpack.c.l.b16 %v3181
        %v3254 = vunpack.c.l.b16 %v3182
        %v3255 = vunpack.c.l.b16 %v3183
        %v3256 = vunpack.c.l.b16 %v3184
        %v3257 = vunpack.c.l.b16 %v3185
        %v3258 = vunpack.c.l.b16 %v3186
        %v3259 = vunpack.c.l.b16 %v3187
        %v3260 = vunpack.c.l.b16 %v3188
        %v3261 = vunpack.c.l.b16 %v3189
        %v3262 = vunpack.c.l.b16 %v3190
        %v3263 = vunpack.c.l.b16 %v3191
        %v3264 = vunpack.c.l.b16 %v3192
        %v3265 = vunpack.c.l.b16 %v3193
        %v3266 = vunpack.c.l.b16 %v3194
        %v3267 = vpack.c.b16 %v3236, %v3235
        %v3268 = vpack.c.b16 %v3238, %v3237
        %v3269 = vpack.c.b16 %v3240, %v3239
        %v3270 = vpack.c.b16 %v3242, %v3241
        %v3271 = vpack.c.b16 %v3244, %v3243
        %v3272 = vpack.c.b16 %v3246, %v3245
        %v3273 = vpack.c.b16 %v3248, %v3247
        %v3274 = vpack.c.b16 %v3250, %v3249
        %v3275 = vpack.c.b16 %v3252, %v3251
        %v3276 = vpack.c.b16 %v3254, %v3253
        %v3277 = vpack.c.b16 %v3256, %v3255
        %v3278 = vpack.c.b16 %v3258, %v3257
        %v3279 = vpack.c.b16 %v3260, %v3259
        %v3280 = vpack.c.b16 %v3262, %v3261
        %v3281 = vpack.c.b16 %v3264, %v3263
        %v3282 = vpack.c.b16 %v3266, %v3265
        %3299 = vmatprep.subr.bf16.mxu0 0
        %3300 = vmatpush1.bf16.msra.mxu0 %v3267
        %3301 = vmatprep.subr.bf16.mxu0 0
        %3302 = vmatpush1.bf16.msra.mxu0 %v3268
        %3303 = vmatprep.subr.bf16.mxu0 0
        %3304 = vmatpush1.bf16.msra.mxu0 %v3269
        %3305 = vmatprep.subr.bf16.mxu0 0
        %3306 = vmatpush1.bf16.msra.mxu0 %v3270
        %3307 = vmatprep.subr.bf16.mxu0 0
        %3308 = vmatpush1.bf16.msra.mxu0 %v3271
        %3309 = vmatprep.subr.bf16.mxu0 0
        %3310 = vmatpush1.bf16.msra.mxu0 %v3272
        %3311 = vmatprep.subr.bf16.mxu0 0
        %3312 = vmatpush1.bf16.msra.mxu0 %v3273
        %3313 = vmatprep.subr.bf16.mxu0 0
        %3314 = vmatpush1.bf16.msra.mxu0 %v3274
        %3315 = vmatprep.subr.bf16.mxu0 0
        %3316 = vmatpush1.bf16.msra.mxu0 %v3275
        %3317 = vmatprep.subr.bf16.mxu0 0
        %3318 = vmatpush1.bf16.msra.mxu0 %v3276
        %3319 = vmatprep.subr.bf16.mxu0 0
        %3320 = vmatpush1.bf16.msra.mxu0 %v3277
        %3321 = vmatprep.subr.bf16.mxu0 0
        %3322 = vmatpush1.bf16.msra.mxu0 %v3278
        %3323 = vmatprep.subr.bf16.mxu0 0
        %3324 = vmatpush1.bf16.msra.mxu0 %v3279
        %3325 = vmatprep.subr.bf16.mxu0 0
        %3326 = vmatpush1.bf16.msra.mxu0 %v3280
        %3327 = vmatprep.subr.bf16.mxu0 0
        %3328 = vmatpush1.bf16.msra.mxu0 %v3281
        %3329 = vmatprep.subr.bf16.mxu0 0
        %3330 = vmatpush1.bf16.msra.mxu0 %v3282
        %3331 = vmatprep.mubr.bf16.mxu0 %v3161
        %3332 = vmatmul.mubr.bf16.gmra.mrb[0].mxu0 %v3160
        %v3333 = vpop.f32.mrb[0].mxu0
        %v3334 = vadd.f32 %v3201, %v3333
        %v3335 = vpop.f32.mrb[0].mxu0
        %v3336 = vpop.f32.mrb[0].mxu0
        %v3337 = vadd.f32 %v3201, %v3336
        %v3338 = vpop.f32.mrb[0].mxu0
        %3339 = vdwg.mxu0
        %v3340 = vadd.f32 %v2962, %v3334
        %v3341 = vadd.f32 %v2963, %v3337
        %3342 = vadd.xlane.f32.xlu0 %v3340
        %v3343 = vpop.xlane.xlu0 %3342
        %3344 = vadd.xlane.f32.xlu0 %v3341
        %v3345 = vpop.xlane.xlu0 %3344
        %v3346 = vmul.f32 %v3343, %v529
        %v3347 = vmul.f32 %v3345, %v529
        %v3348 = vsub.f32 %v3340, %v3346
        %v3349 = vsub.f32 %v3341, %v3347
        %v3350 = vmul.f32 %v3348, %v3348
        %v3351 = vmul.f32 %v3349, %v3349
        %3352 = vadd.xlane.f32.xlu0 %v3350
        %v3353 = vpop.xlane.xlu0 %3352
        %3354 = vadd.xlane.f32.xlu0 %v3351
        %v3355 = vpop.xlane.xlu0 %3354
        %v3356 = vmul.f32 %v3353, %v529
        %v3357 = vmul.f32 %v3355, %v529
        %v3358 = vadd.f32 %v3356, 1e-05
        %v3359 = vadd.f32 %v3357, 1e-05
        %v3360 = vrsqrt.pop %v3358
        %v3361 = vrsqrt.pop %v3359
        %v3362 = vmul.f32 %v3348, %v3360
        %v3363 = vmul.f32 %v3349, %v3361
        %v3364 = vld [vmem:[%s10] sm:$0x1]
        %v3366 = vlaneseq
        %v3367 = vshrl.u32 %v3366, 7
        %v3368 = vsub.s32 0, %v3367
        %v3369 = vrot.slane %v3364, %v3368
        %v3371 = vmul.f32 %v3362, %v3369
        %v3372 = vmul.f32 %v3363, %v3369
        %v3373 = vld [vmem:[%s11] sm:$0x1]
        %v3375 = vlaneseq
        %v3376 = vshrl.u32 %v3375, 7
        %v3377 = vsub.s32 0, %v3376
        %v3378 = vrot.slane %v3373, %v3377
        %v3380 = vadd.f32 %v3371, %v3378
        %v3381 = vadd.f32 %v3372, %v3378
        %3382 = vst [vmem:[%s505] sm:$0xff] %v3380
        %3383 = vst [vmem:[%s505 + $0x8] sm:$0xff] %v3381
        %v3384 = vpack.c.bf16 %v3381, %v3380
        %v3385 = vld [vmem:[#allocation5] sm:$0xff]
        %v3386 = vld [vmem:[#allocation5 + $0x8] sm:$0xff]
        %v3387 = vld [vmem:[#allocation5 + $0x10] sm:$0xff]
        %v3388 = vld [vmem:[#allocation5 + $0x18] sm:$0xff]
        %v3389 = vld [vmem:[#allocation5 + $0x20] sm:$0xff]
        %v3390 = vld [vmem:[#allocation5 + $0x28] sm:$0xff]
        %v3391 = vld [vmem:[#allocation5 + $0x30] sm:$0xff]
        %v3392 = vld [vmem:[#allocation5 + $0x38] sm:$0xff]
        %v3393 = vld [vmem:[#allocation5 + $0x40] sm:$0xff]
        %v3394 = vld [vmem:[#allocation5 + $0x48] sm:$0xff]
        %v3395 = vld [vmem:[#allocation5 + $0x50] sm:$0xff]
        %v3396 = vld [vmem:[#allocation5 + $0x58] sm:$0xff]
        %v3397 = vld [vmem:[#allocation5 + $0x60] sm:$0xff]
        %v3398 = vld [vmem:[#allocation5 + $0x68] sm:$0xff]
        %v3399 = vld [vmem:[#allocation5 + $0x70] sm:$0xff]
        %v3400 = vld [vmem:[#allocation5 + $0x78] sm:$0xff]
        %v3417 = vunpack.c.l.b16 %v3385
        %v3418 = vunpack.c.h.b16 %v3385
        %v3419 = vunpack.c.l.b16 %v3386
        %v3420 = vunpack.c.h.b16 %v3386
        %v3421 = vunpack.c.l.b16 %v3387
        %v3422 = vunpack.c.h.b16 %v3387
        %v3423 = vunpack.c.l.b16 %v3388
        %v3424 = vunpack.c.h.b16 %v3388
        %v3425 = vunpack.c.l.b16 %v3389
        %v3426 = vunpack.c.h.b16 %v3389
        %v3427 = vunpack.c.l.b16 %v3390
        %v3428 = vunpack.c.h.b16 %v3390
        %v3429 = vunpack.c.l.b16 %v3391
        %v3430 = vunpack.c.h.b16 %v3391
        %v3431 = vunpack.c.l.b16 %v3392
        %v3432 = vunpack.c.h.b16 %v3392
        %v3433 = vunpack.c.l.b16 %v3393
        %v3434 = vunpack.c.h.b16 %v3393
        %v3435 = vunpack.c.l.b16 %v3394
        %v3436 = vunpack.c.h.b16 %v3394
        %v3437 = vunpack.c.l.b16 %v3395
        %v3438 = vunpack.c.h.b16 %v3395
        %v3439 = vunpack.c.l.b16 %v3396
        %v3440 = vunpack.c.h.b16 %v3396
        %v3441 = vunpack.c.l.b16 %v3397
        %v3442 = vunpack.c.h.b16 %v3397
        %v3443 = vunpack.c.l.b16 %v3398
        %v3444 = vunpack.c.h.b16 %v3398
        %v3445 = vunpack.c.l.b16 %v3399
        %v3446 = vunpack.c.h.b16 %v3399
        %v3447 = vunpack.c.l.b16 %v3400
        %v3448 = vunpack.c.h.b16 %v3400
        %v3449 = vpack.c.b16 %v3419, %v3417
        %v3450 = vpack.c.b16 %v3420, %v3418
        %v3451 = vpack.c.b16 %v3423, %v3421
        %v3452 = vpack.c.b16 %v3424, %v3422
        %v3453 = vpack.c.b16 %v3427, %v3425
        %v3454 = vpack.c.b16 %v3428, %v3426
        %v3455 = vpack.c.b16 %v3431, %v3429
        %v3456 = vpack.c.b16 %v3432, %v3430
        %v3457 = vpack.c.b16 %v3435, %v3433
        %v3458 = vpack.c.b16 %v3436, %v3434
        %v3459 = vpack.c.b16 %v3439, %v3437
        %v3460 = vpack.c.b16 %v3440, %v3438
        %v3461 = vpack.c.b16 %v3443, %v3441
        %v3462 = vpack.c.b16 %v3444, %v3442
        %v3463 = vpack.c.b16 %v3447, %v3445
        %v3464 = vpack.c.b16 %v3448, %v3446
        %3481 = vmatprep.subr.bf16.mxu0 %v3450
        %3482 = vmatpush1.bf16.msra.mxu0 %v3449
        %3483 = vmatprep.subr.bf16.mxu0 %v3452
        %3484 = vmatpush1.bf16.msra.mxu0 %v3451
        %3485 = vmatprep.subr.bf16.mxu0 %v3454
        %3486 = vmatpush1.bf16.msra.mxu0 %v3453
        %3487 = vmatprep.subr.bf16.mxu0 %v3456
        %3488 = vmatpush1.bf16.msra.mxu0 %v3455
        %3489 = vmatprep.subr.bf16.mxu0 %v3458
        %3490 = vmatpush1.bf16.msra.mxu0 %v3457
        %3491 = vmatprep.subr.bf16.mxu0 %v3460
        %3492 = vmatpush1.bf16.msra.mxu0 %v3459
        %3493 = vmatprep.subr.bf16.mxu0 %v3462
        %3494 = vmatpush1.bf16.msra.mxu0 %v3461
        %3495 = vmatprep.subr.bf16.mxu0 %v3464
        %3496 = vmatpush1.bf16.msra.mxu0 %v3463
        %3497 = vmatprep.subr.bf16.mxu0 0
        %3498 = vmatpush1.bf16.msra.mxu0 0
        %3499 = vmatprep.subr.bf16.mxu0 0
        %3500 = vmatpush1.bf16.msra.mxu0 0
        %3501 = vmatprep.subr.bf16.mxu0 0
        %3502 = vmatpush1.bf16.msra.mxu0 0
        %3503 = vmatprep.subr.bf16.mxu0 0
        %3504 = vmatpush1.bf16.msra.mxu0 0
        %3505 = vmatprep.subr.bf16.mxu0 0
        %3506 = vmatpush1.bf16.msra.mxu0 0
        %3507 = vmatprep.subr.bf16.mxu0 0
        %3508 = vmatpush1.bf16.msra.mxu0 0
        %3509 = vmatprep.subr.bf16.mxu0 0
        %3510 = vmatpush1.bf16.msra.mxu0 0
        %3511 = vmatprep.subr.bf16.mxu0 0
        %3512 = vmatpush1.bf16.msra.mxu0 0
        %3513 = vmatprep.mubr.bf16.mxu0 0
        %3514 = vmatmul.mubr.bf16.gmra.mrb[0].mxu0 %v3384
        %v3515 = vpop.f32.mrb[0].mxu0
        %v3516 = vadd.f32 0.0, %v3515
        %v3517 = vpop.f32.mrb[0].mxu0
        %v3518 = vadd.f32 0.0, %v3517
        %v3519 = vpop.f32.mrb[0].mxu0
        %v3520 = vadd.f32 0.0, %v3519
        %v3521 = vpop.f32.mrb[0].mxu0
        %v3522 = vadd.f32 0.0, %v3521
        %3523 = vdwg.mxu0
        %3524 = vst [vmem:[%s512] sm:$0xff] %v3516
        %3525 = vst [vmem:[%s512 + $0x8] sm:$0xff] %v3518
        %3526 = vst [vmem:[%s512 + $0x10] sm:$0xff] %v3520
        %3527 = vst [vmem:[%s512 + $0x18] sm:$0xff] %v3522
        %s3528 = sand.u32 %s325, 1
        %s3529 = scalar_lea.sflag [#allocation4], %s3528
        %s3530 = sand.u32 %s325, 1
        %s3531 = smul.addr %s3530, 16
        %s3532 = scalar_lea.vmem [#allocation7], %s3531
        %s3533 = sand.u32 %s351, 1
        %s3534 = scalar_lea.sflag [#allocation9], %s3533
        %s3535 = sand.u32 %s351, 1
        %s3536 = smul.addr %s3535, 32
        %s3537 = scalar_lea.vmem [#allocation8], %s3536
        // Predicated region
        $region81: #{museformer_forward.1} parent=71 // pred_check
          %p3538 = pneg %p335
        $region82: #{museformer_forward.1} parent=71 // pred_check_branch
          %3540 = sbr.rel (%p3538) target = $region84
        $region83: #{museformer_forward.1} parent=71 // pred_region
          %s3542 = ssub.s32 256, 256
          %3543 = vsyncadd %s3529, %s3542
          %s3544 = smul.addr %s34, 2
          %s3545 = smul.addr %s3544, 128
          %s3546 = scalar_lea.hbm %s13, %s3545
          %s3547 = sshll.u32 %s3532, 4
          %s3548 = int_to_ptr.vmem [resolvable:$true] %s3547
          %3553 = dma.vmem_to_hbm [thread:$0]  %s3548, 256, %s3546, %s3529, 128, 128, 8
        $region84: #{museformer_forward.1} parent=71 // pred_fallthru
          _
        // Predicated region
        $region85: #{museformer_forward.1} parent=71 // pred_check
          %p3554 = pneg %p361
        $region86: #{museformer_forward.1} parent=71 // pred_check_branch
          %3556 = sbr.rel (%p3554) target = $region88
        $region87: #{museformer_forward.1} parent=71 // pred_region
          %s3558 = ssub.s32 512, 512
          %3559 = vsyncadd %s3534, %s3558
          %s3560 = smul.addr %s34, 4
          %s3561 = smul.addr %s3560, 128
          %s3562 = scalar_lea.hbm %s14, %s3561
          %s3563 = sshll.u32 %s3537, 4
          %s3564 = int_to_ptr.vmem [resolvable:$true] %s3563
          %3569 = dma.vmem_to_hbm [thread:$0]  %s3564, 512, %s3562, %s3534, 256, 256, 16
        $region88: #{museformer_forward.1} parent=71 // pred_fallthru
          _
      $region72: #{museformer_forward.1} parent=5 // pred_fallthru
        _
      %p3570 = scmp.le.s32.totalorder 2, %s29
      // Predicated region
      $region89: #{museformer_forward.1} parent=5 // pred_check
        %p3571 = pneg %p3570
      $region90: #{museformer_forward.1} parent=5 // pred_check_branch
        %3573 = sbr.rel (%p3571) target = $region92
      $region91: #{museformer_forward.1} parent=5 // pred_region
        %s3574 = ssub.s32 %s29, 2
        // Predicated region
        $region93: #{museformer_forward.1} parent=91 // pred_check
          %p3575 = pneg %p341
        $region94: #{museformer_forward.1} parent=91 // pred_check_branch
          %3577 = sbr.rel (%p3575) target = $region96
        $region95: #{museformer_forward.1} parent=91 // pred_region
          %s3578 = sand.u32 %s326, 1
          %s3579 = scalar_lea.sflag [#allocation4], %s3578
          %s3580 = sand.u32 %s326, 1
          %s3581 = smul.addr %s3580, 16
          %s3582 = scalar_lea.vmem [#allocation7], %s3581
          %3583 = dma.done %s3579, 256
        $region96: #{museformer_forward.1} parent=91 // pred_fallthru
          _
        // Predicated region
        $region97: #{museformer_forward.1} parent=91 // pred_check
          %p3584 = pneg %p367
        $region98: #{museformer_forward.1} parent=91 // pred_check_branch
          %3586 = sbr.rel (%p3584) target = $region100
        $region99: #{museformer_forward.1} parent=91 // pred_region
          %s3587 = sand.u32 %s352, 1
          %s3588 = scalar_lea.sflag [#allocation9], %s3587
          %s3589 = sand.u32 %s352, 1
          %s3590 = smul.addr %s3589, 32
          %s3591 = scalar_lea.vmem [#allocation8], %s3590
          %3592 = dma.done %s3588, 512
        $region100: #{museformer_forward.1} parent=91 // pred_fallthru
          _
      $region92: #{museformer_forward.1} parent=5 // pred_fallthru
        _
    $region6: #{museformer_forward.1} parent=1 // loop_footer
      %s33 = sadd.s32 1, %s29
    $region7: #{museformer_forward.1} parent=1 // loop_footer_branch
      %28 = sbr.rel target = $region3
    $region8: #{museformer_forward.1} parent=1 // loop_exit
      _
    %3593 = vsyncpa [#allocation3], 1
    %s3594 = scalar_lea.sflag [#allocation3], 1
    %3595 = vsyncpa %s3594, 1
    %3596 = vsyncpa [#allocation6], 1
    %3597 = vsyncpa [#allocation4], 1
    %s3598 = scalar_lea.sflag [#allocation4], 1
    %3599 = vsyncpa %s3598, 1
    %3600 = vsyncpa [#allocation9], 1
    %s3601 = scalar_lea.sflag [#allocation9], 1
    %3602 = vsyncpa %s3601, 1

</llo_original>
